<compile_context>
chip_gen: v7x
topology: tpu7x:2x2x1
jax: 0.10.0
libtpu: 0.0.40
codegen_flags: <defaults>
</compile_context>

<pallas_src>
import functools

import jax
import jax.numpy as jnp
from jax import lax
from jax.experimental import pallas as pl
from jax.experimental.pallas import tpu as pltpu

NEG_SLOPE = 0.01   # nn.LeakyReLU default negative_slope
BN_EPS = 1e-5      # nn.BatchNorm2d default eps


# -----------------------------------------------------------------------------
# Fused HarDBlock kernel.
#
# Layout convention ("padded-flat", channel-major):
#   an activation with C channels is stored as (C, (H+4)*(W+2)) bf16, i.e. the
#   zero-padded (H+4, W+2) plane flattened along lanes (2 pad rows top/bottom,
#   1 pad column left/right).  A 3x3 tap (kh, kw) of the conv is then simply
#   the contiguous lane window starting at 2*(W+2) + (kh-1)*(W+2) + (kw-1).
#   Conv outputs are produced for all W+2 columns of the H interior rows
#   (M = H*(W+2) positions); the two pad columns are garbage (row wrap-around)
#   and are zeroed with a column mask before being reused / written out.
# -----------------------------------------------------------------------------
def _hardblock_kernel(*refs, cfg):
    nl = cfg['n_layers']
    H, W = cfg['H'], cfg['W']
    Wp = W + 2
    Mi = H * Wp           # number of (padded-column) output positions
    pad0 = 2 * Wp         # start of the interior rows inside a padded buffer
    ch = cfg['ch']

    x_ref = refs[0]                                   # (1, C0, Mpad)  bf16
    mask_ref = refs[1]                                # (1, Mi)        f32
    w_refs = refs[2:2 + nl]                           # (Cout_l, 9*Cin_l) bf16
    s_refs = refs[2 + nl:2 + 2 * nl]                  # (Cout_l, 1)    f32
    out_ref = refs[2 + 2 * nl]                        # (1, Ctot, Mi)  bf16
    n_buf = len(cfg['needed'])
    buf_refs = refs[3 + 2 * nl:3 + 2 * nl + n_buf]    # (C_j, Mpad)    bf16
    patch_ref = refs[3 + 2 * nl + n_buf]              # (Kp_max, Mi)   bf16
    buf_of = {j: buf_refs[k] for k, j in enumerate(cfg['needed'])}

    # Zero the intermediate buffers once (gives the conv its zero halo rows /
    # columns); interiors are overwritten below.
    for j in cfg['needed']:
        buf_of[j][...] = jnp.zeros(buf_of[j].shape, buf_of[j].dtype)

    colmask = mask_ref[...]                           # (1, Mi) f32 0/1

    # tap lane offsets for the 9 kernel positions (kh, kw)
    taps = [(kh - 1) * Wp + (kw - 1) for kh in range(3) for kw in range(3)]

    out_off = cfg['out_offsets']
    if 0 in out_off:                                  # keepBase
        c0 = ch[0]
        out_ref[0, out_off[0]:out_off[0] + c0, :] = x_ref[0, :, pad0:pad0 + Mi]

    for li in range(nl):
        link = cfg['links'][li]
        cout = ch[li + 1]

        acc = None
        k_off = 0
        for j in link:                                # link sources, in order
            cs = ch[j]
            src = x_ref[0] if j == 0 else buf_of[j][...]        # (cs, Mpad)
            # im2col patch for this source: 9 lane-shifted windows stacked
            # along the contraction dim (written once to VMEM).
            for t, d in enumerate(taps):
                patch_ref[t * cs:(t + 1) * cs, :] = src[:, pad0 + d:pad0 + d + Mi]
            w_s = w_refs[li][:, k_off:k_off + 9 * cs]            # (cout, 9*cs)
            contrib = jnp.dot(w_s, patch_ref[0:9 * cs, :],
                              preferred_element_type=jnp.float32)
            acc = contrib if acc is None else acc + contrib
            k_off += 9 * cs

        y = acc + s_refs[li][...]                     # folded-BN shift
        y = jnp.where(y >= 0, y, NEG_SLOPE * y)       # LeakyReLU
        y = y * colmask                               # zero the pad columns
        y16 = y.astype(jnp.bfloat16)

        jidx = li + 1
        if jidx in buf_of:                            # needed by later layers
            buf_of[jidx][:, pad0:pad0 + Mi] = y16
        if jidx in out_off:                           # part of the block output
            o = out_off[jidx]
            out_ref[0, o:o + cout, :] = y16


def hardblock_forward(x_nchw, blk):
    """HarDBlock forward: NCHW f32 in -> NCHW bf16 out (single fused kernel)."""
    B, C0, H, W = x_nchw.shape
    nl = blk['n_layers']
    Wp = W + 2
    Mi = H * Wp
    Mpad = (H + 4) * Wp

    ch = [blk['in_channels']] + [lp['cout'] for lp in blk['layers']]
    links = blk['links']
    # layer outputs that are read by later layers need a resident VMEM buffer
    needed = sorted({j for lk in links for j in lk if j >= 1})

    # which layers_ entries end up in the block output (PyTorch ordering)
    t = nl + 1
    out_idx = [i for i in range(t)
               if (i == 0 and blk['keep_base']) or i == t - 1 or i % 2 == 1]
    out_offsets, off = {}, 0
    for i in out_idx:
        out_offsets[i] = off
        off += ch[i]
    c_total = off

    kp_max = max(9 * ch[j] for lk in links for j in lk)

    # rough VMEM working-set check (this fused path targets small/moderate HxW)
    est = 2 * (sum(ch[j] for j in needed) * Mpad + kp_max * Mi
               + C0 * Mpad + c_total * Mi
               + sum(int(lp['w'].size) for lp in blk['layers']))
    assert est < 40 * 1024 * 1024, "feature map too large for the fused kernel"

    # single pad+cast pass over the input (2 pad rows, 1 pad col) -> padded-flat
    xpad = jnp.pad(x_nchw.astype(jnp.bfloat16),
                   ((0, 0), (0, 0), (2, 2), (1, 1))).reshape(B, C0, Mpad)
    # 0/1 mask over the Mi padded-column output positions (valid columns 1..W)
    colpos = jnp.arange(Mi, dtype=jnp.int32) % Wp
    colmask = ((colpos >= 1) & (colpos <= W)).astype(jnp.float32).reshape(1, Mi)

    cfg = dict(n_layers=nl, H=H, W=W, links=links, ch=ch,
               needed=needed, out_offsets=out_offsets)

    in_specs = [pl.BlockSpec((1, C0, Mpad), lambda b: (b, 0, 0)),
                pl.BlockSpec((1, Mi), lambda b: (0, 0))]
    for lp in blk['layers']:
        in_specs.append(pl.BlockSpec(lp['w'].shape, lambda b: (0, 0)))
    for lp in blk['layers']:
        in_specs.append(pl.BlockSpec(lp['shift'].shape, lambda b: (0, 0)))

    scratch = [pltpu.VMEM((ch[j], Mpad), jnp.bfloat16) for j in needed]
    scratch.append(pltpu.VMEM((kp_max, Mi), jnp.bfloat16))       # im2col patch

    out = pl.pallas_call(
        functools.partial(_hardblock_kernel, cfg=cfg),
        out_shape=jax.ShapeDtypeStruct((B, c_total, Mi), jnp.bfloat16),
        grid_spec=pltpu.PrefetchScalarGridSpec(
            num_scalar_prefetch=0,
            grid=(B,),
            in_specs=in_specs,
            out_specs=pl.BlockSpec((1, c_total, Mi), lambda b: (b, 0, 0)),
            scratch_shapes=scratch),
        compiler_params=pltpu.CompilerParams(
            dimension_semantics=("parallel",)),
    )(xpad, colmask,
      *[lp['w'] for lp in blk['layers']],
      *[lp['shift'] for lp in blk['layers']])

    # drop the two pad columns; result is already NCHW (lane-dense in-kernel)
    out = out.reshape(B, c_total, H, Wp)[:, :, :, 1:W + 1]
    return out


# -----------------------------------------------------------------------------
# Parameter construction (deterministic, synthetic; BN folded for inference,
# BN scale folded into the conv weights so the kernel epilogue is shift-only).
# -----------------------------------------------------------------------------
def get_link(layer, base_ch, growth_rate, grmul):
    if layer == 0:
        return base_ch, 0, []
    out_channels = growth_rate
    link = []
    for i in range(10):
        dv = 2 ** i
        if layer % dv == 0:
            k = layer - dv
            link.append(k)
            if i > 0:
                out_channels *= grmul
    out_channels = int(int(out_channels + 1) / 2) * 2
    in_channels = 0
    for i in link:
        chn, _, _ = get_link(i, base_ch, growth_rate, grmul)
        in_channels += chn
    return out_channels, in_channels, link


def init_conv_layer(key, link_chs, cout):
    """ConvLayer(inch, outch): Conv2d 3x3 (no bias) + BatchNorm2d + LeakyReLU."""
    cin = sum(link_chs)
    kw_, k1, k2, k3, k4 = jax.random.split(key, 5)
    fan_in = cin * 9
    w = jax.random.normal(kw_, (cout, cin, 3, 3), jnp.float32) / jnp.sqrt(fan_in)
    gamma = 1.0 + 0.1 * jax.random.normal(k1, (cout,), jnp.float32)
    beta = 0.1 * jax.random.normal(k2, (cout,), jnp.float32)
    mean = 0.1 * jax.random.normal(k3, (cout,), jnp.float32)
    var = 1.0 + 0.1 * jnp.abs(jax.random.normal(k4, (cout,), jnp.float32))
    scale = gamma / jnp.sqrt(var + BN_EPS)               # folded BN (inference)
    shift = (beta - mean * scale).reshape(cout, 1)
    w_folded = w * scale[:, None, None, None]            # fold BN scale into W

    # concatenated weight matrix, K ordered as (source, tap(kh,kw), channel)
    parts, off = [], 0
    for c in link_chs:
        ws = w_folded[:, off:off + c]                    # (Cout, c, 3, 3)
        ws = jnp.transpose(ws, (0, 2, 3, 1)).reshape(cout, 9 * c)
        parts.append(ws)
        off += c
    w_cat = jnp.concatenate(parts, axis=1).astype(jnp.bfloat16)   # (Cout, 9*Cin)
    return {'w': w_cat, 'shift': shift, 'w_ref': w_folded, 'cout': cout}


def build_hardblock(key, in_channels, growth_rate, grmul, n_layers,
                    keep_base=False):
    links, layers = [], []
    out_channels = 0
    keys = jax.random.split(key, n_layers)
    for i in range(n_layers):
        outch, inch, link = get_link(i + 1, in_channels, growth_rate, grmul)
        links.append(link)
        link_chs = [get_link(j, in_channels, growth_rate, grmul)[0] for j in link]
        assert sum(link_chs) == inch
        layers.append(init_conv_layer(keys[i], link_chs, outch))
        if i % 2 == 0 or i == n_layers - 1:
            out_channels += outch
    return {'links': links, 'layers': layers, 'out_channels': out_channels,
            'keep_base': keep_base, 'n_layers': n_layers,
            'in_channels': in_channels}


# -----------------------------------------------------------------------------
# Pure-XLA reference (same bf16-operand / f32-accumulate numerics) for checking.
# -----------------------------------------------------------------------------
def _ref_conv_layer(x_nchw, p):
    y = lax.conv_general_dilated(
        x_nchw.astype(jnp.bfloat16), p['w_ref'].astype(jnp.bfloat16),
        window_strides=(1, 1), padding='SAME',
        dimension_numbers=('NCHW', 'OIHW', 'NCHW'),
        preferred_element_type=jnp.float32)
    y = y + p['shift'].reshape(1, -1, 1, 1)
    return jnp.where(y >= 0, y, NEG_SLOPE * y)


def hardblock_forward_ref(x_nchw, blk):
    layers_ = [x_nchw.astype(jnp.float32)]
    for li in range(blk['n_layers']):
        srcs = [layers_[i] for i in blk['links'][li]]
        xin = jnp.concatenate(srcs, axis=1) if len(srcs) > 1 else srcs[0]
        layers_.append(_ref_conv_layer(xin, blk['layers'][li]))
    t = len(layers_)
    outs = [layers_[i] for i in range(t)
            if (i == 0 and blk['keep_base']) or i == t - 1 or i % 2 == 1]
    return jnp.concatenate(outs, axis=1)


# -----------------------------------------------------------------------------
if __name__ == "__main__":
    key = jax.random.PRNGKey(0)
    kparam, kin = jax.random.split(key)

    B, CIN, H, W = 2, 32, 16, 16
    GROWTH_RATE, GRMUL, N_LAYERS = 16, 1.6, 4
    blk = build_hardblock(kparam, CIN, GROWTH_RATE, GRMUL, N_LAYERS)

    x = jax.random.normal(kin, (B, CIN, H, W), jnp.float32)       # NCHW input

    fwd = jax.jit(lambda inp: hardblock_forward(inp, blk))
    out = jax.block_until_ready(fwd(x))

    assert out.shape == (B, blk['out_channels'], H, W), out.shape
    out_f = out.astype(jnp.float32)
    assert bool(jnp.all(jnp.isfinite(out_f)))

    ref = jax.block_until_ready(
        jax.jit(lambda inp: hardblock_forward_ref(inp, blk))(x))
    ref_f = ref.astype(jnp.bfloat16).astype(jnp.float32)
    err = float(jnp.max(jnp.abs(out_f - ref_f)))
    assert bool(jnp.allclose(out_f, ref_f, atol=3e-2, rtol=3e-2)), err

    print("KERNEL_OK")
</pallas_src>

<mosaic_0001>
module attributes {stable_mosaic.version = 11 : i64} {
  func.func @_hardblock_kernel(%arg0: i32, %arg1: memref<1x32x360xbf16, #tpu.memory_space<vmem>>, %arg2: memref<1x288xf32, #tpu.memory_space<vmem>>, %arg3: memref<16x288xbf16, #tpu.memory_space<vmem>>, %arg4: memref<26x432xbf16, #tpu.memory_space<vmem>>, %arg5: memref<16x234xbf16, #tpu.memory_space<vmem>>, %arg6: memref<40x666xbf16, #tpu.memory_space<vmem>>, %arg7: memref<16x1xf32, #tpu.memory_space<vmem>>, %arg8: memref<26x1xf32, #tpu.memory_space<vmem>>, %arg9: memref<16x1xf32, #tpu.memory_space<vmem>>, %arg10: memref<40x1xf32, #tpu.memory_space<vmem>>, %arg11: memref<1x72x288xbf16, #tpu.memory_space<vmem>>, %arg12: memref<16x360xbf16, #tpu.memory_space<vmem>>, %arg13: memref<26x360xbf16, #tpu.memory_space<vmem>>, %arg14: memref<16x360xbf16, #tpu.memory_space<vmem>>, %arg15: memref<288x288xbf16, #tpu.memory_space<vmem>>) attributes {dimension_semantics = [#tpu.dimension_semantics<parallel>], iteration_bounds = array<i64: 2>, scalar_prefetch = 0 : i64, scratch_operands = 4 : i64, tpu.core_type = #tpu.core_type<tc>, window_params = [{transform_indices = @transform_0, window_bounds = array<i64: 1, 32, 360>}, {pipeline_mode = #tpu.pipeline_mode<synchronous>, transform_indices = @transform_1, window_bounds = array<i64: 1, 288>}, {pipeline_mode = #tpu.pipeline_mode<synchronous>, transform_indices = @transform_2, window_bounds = array<i64: 16, 288>}, {pipeline_mode = #tpu.pipeline_mode<synchronous>, transform_indices = @transform_3, window_bounds = array<i64: 26, 432>}, {pipeline_mode = #tpu.pipeline_mode<synchronous>, transform_indices = @transform_4, window_bounds = array<i64: 16, 234>}, {pipeline_mode = #tpu.pipeline_mode<synchronous>, transform_indices = @transform_5, window_bounds = array<i64: 40, 666>}, {pipeline_mode = #tpu.pipeline_mode<synchronous>, transform_indices = @transform_6, window_bounds = array<i64: 16, 1>}, {pipeline_mode = #tpu.pipeline_mode<synchronous>, transform_indices = @transform_7, window_bounds = array<i64: 26, 1>}, {pipeline_mode = #tpu.pipeline_mode<synchronous>, transform_indices = @transform_8, window_bounds = array<i64: 16, 1>}, {pipeline_mode = #tpu.pipeline_mode<synchronous>, transform_indices = @transform_9, window_bounds = array<i64: 40, 1>}, {transform_indices = @transform_10, window_bounds = array<i64: 1, 72, 288>}]} {
    %cst = arith.constant 0.000000e+00 : bf16
    %0 = vector.broadcast %cst : bf16 to vector<16x360xbf16>
    %c0 = arith.constant 0 : index
    %c0_0 = arith.constant 0 : index
    %1 = vector.load %arg12[%c0, %c0_0] : memref<16x360xbf16, #tpu.memory_space<vmem>>, vector<16x360xbf16>
    tpu.vector_store %arg12[%c0, %c0_0], %0 {strides = array<i32>} : memref<16x360xbf16, #tpu.memory_space<vmem>>, vector<16x360xbf16>,
    %cst_1 = arith.constant 0.000000e+00 : bf16
    %2 = vector.broadcast %cst_1 : bf16 to vector<26x360xbf16>
    %c0_2 = arith.constant 0 : index
    %c0_3 = arith.constant 0 : index
    %3 = vector.load %arg13[%c0_2, %c0_3] : memref<26x360xbf16, #tpu.memory_space<vmem>>, vector<26x360xbf16>
    tpu.vector_store %arg13[%c0_2, %c0_3], %2 {strides = array<i32>} : memref<26x360xbf16, #tpu.memory_space<vmem>>, vector<26x360xbf16>,
    %cst_4 = arith.constant 0.000000e+00 : bf16
    %4 = vector.broadcast %cst_4 : bf16 to vector<16x360xbf16>
    %c0_5 = arith.constant 0 : index
    %c0_6 = arith.constant 0 : index
    %5 = vector.load %arg14[%c0_5, %c0_6] : memref<16x360xbf16, #tpu.memory_space<vmem>>, vector<16x360xbf16>
    tpu.vector_store %arg14[%c0_5, %c0_6], %4 {strides = array<i32>} : memref<16x360xbf16, #tpu.memory_space<vmem>>, vector<16x360xbf16>,
    %c0_7 = arith.constant 0 : index
    %c0_8 = arith.constant 0 : index
    %6 = vector.load %arg2[%c0_7, %c0_8] : memref<1x288xf32, #tpu.memory_space<vmem>>, vector<1x288xf32>
    %c0_9 = arith.constant 0 : index
    %c0_10 = arith.constant 0 : index
    %c0_11 = arith.constant 0 : index
    %7 = vector.load %arg1[%c0_9, %c0_10, %c0_11] : memref<1x32x360xbf16, #tpu.memory_space<vmem>>, vector<1x32x360xbf16>
    %8 = vector.shape_cast %7 : vector<1x32x360xbf16> to vector<32x360xbf16>
    %9 = vector.extract_strided_slice %8 {offsets = [0, 17], sizes = [32, 288], strides = [1, 1]} : vector<32x360xbf16> to vector<32x288xbf16>
    %c0_12 = arith.constant 0 : index
    %c0_13 = arith.constant 0 : index
    %10 = vector.load %arg15[%c0_12, %c0_13] : memref<288x288xbf16, #tpu.memory_space<vmem>>, vector<32x288xbf16>
    tpu.vector_store %arg15[%c0_12, %c0_13], %9 {strides = array<i32>} : memref<288x288xbf16, #tpu.memory_space<vmem>>, vector<32x288xbf16>,
    %11 = vector.extract_strided_slice %8 {offsets = [0, 18], sizes = [32, 288], strides = [1, 1]} : vector<32x360xbf16> to vector<32x288xbf16>
    %c32 = arith.constant 32 : index
    %c0_14 = arith.constant 0 : index
    %12 = vector.load %arg15[%c32, %c0_14] : memref<288x288xbf16, #tpu.memory_space<vmem>>, vector<32x288xbf16>
    tpu.vector_store %arg15[%c32, %c0_14], %11 {strides = array<i32>} : memref<288x288xbf16, #tpu.memory_space<vmem>>, vector<32x288xbf16>,
    %13 = vector.extract_strided_slice %8 {offsets = [0, 19], sizes = [32, 288], strides = [1, 1]} : vector<32x360xbf16> to vector<32x288xbf16>
    %c64 = arith.constant 64 : index
    %c0_15 = arith.constant 0 : index
    %14 = vector.load %arg15[%c64, %c0_15] : memref<288x288xbf16, #tpu.memory_space<vmem>>, vector<32x288xbf16>
    tpu.vector_store %arg15[%c64, %c0_15], %13 {strides = array<i32>} : memref<288x288xbf16, #tpu.memory_space<vmem>>, vector<32x288xbf16>,
    %15 = vector.extract_strided_slice %8 {offsets = [0, 35], sizes = [32, 288], strides = [1, 1]} : vector<32x360xbf16> to vector<32x288xbf16>
    %c96 = arith.constant 96 : index
    %c0_16 = arith.constant 0 : index
    %16 = vector.load %arg15[%c96, %c0_16] : memref<288x288xbf16, #tpu.memory_space<vmem>>, vector<32x288xbf16>
    tpu.vector_store %arg15[%c96, %c0_16], %15 {strides = array<i32>} : memref<288x288xbf16, #tpu.memory_space<vmem>>, vector<32x288xbf16>,
    %17 = vector.extract_strided_slice %8 {offsets = [0, 36], sizes = [32, 288], strides = [1, 1]} : vector<32x360xbf16> to vector<32x288xbf16>
    %c128 = arith.constant 128 : index
    %c0_17 = arith.constant 0 : index
    %18 = vector.load %arg15[%c128, %c0_17] : memref<288x288xbf16, #tpu.memory_space<vmem>>, vector<32x288xbf16>
    tpu.vector_store %arg15[%c128, %c0_17], %17 {strides = array<i32>} : memref<288x288xbf16, #tpu.memory_space<vmem>>, vector<32x288xbf16>,
    %19 = vector.extract_strided_slice %8 {offsets = [0, 37], sizes = [32, 288], strides = [1, 1]} : vector<32x360xbf16> to vector<32x288xbf16>
    %c160 = arith.constant 160 : index
    %c0_18 = arith.constant 0 : index
    %20 = vector.load %arg15[%c160, %c0_18] : memref<288x288xbf16, #tpu.memory_space<vmem>>, vector<32x288xbf16>
    tpu.vector_store %arg15[%c160, %c0_18], %19 {strides = array<i32>} : memref<288x288xbf16, #tpu.memory_space<vmem>>, vector<32x288xbf16>,
    %21 = vector.extract_strided_slice %8 {offsets = [0, 53], sizes = [32, 288], strides = [1, 1]} : vector<32x360xbf16> to vector<32x288xbf16>
    %c192 = arith.constant 192 : index
    %c0_19 = arith.constant 0 : index
    %22 = vector.load %arg15[%c192, %c0_19] : memref<288x288xbf16, #tpu.memory_space<vmem>>, vector<32x288xbf16>
    tpu.vector_store %arg15[%c192, %c0_19], %21 {strides = array<i32>} : memref<288x288xbf16, #tpu.memory_space<vmem>>, vector<32x288xbf16>,
    %23 = vector.extract_strided_slice %8 {offsets = [0, 54], sizes = [32, 288], strides = [1, 1]} : vector<32x360xbf16> to vector<32x288xbf16>
    %c224 = arith.constant 224 : index
    %c0_20 = arith.constant 0 : index
    %24 = vector.load %arg15[%c224, %c0_20] : memref<288x288xbf16, #tpu.memory_space<vmem>>, vector<32x288xbf16>
    tpu.vector_store %arg15[%c224, %c0_20], %23 {strides = array<i32>} : memref<288x288xbf16, #tpu.memory_space<vmem>>, vector<32x288xbf16>,
    %25 = vector.extract_strided_slice %8 {offsets = [0, 55], sizes = [32, 288], strides = [1, 1]} : vector<32x360xbf16> to vector<32x288xbf16>
    %c256 = arith.constant 256 : index
    %c0_21 = arith.constant 0 : index
    %26 = vector.load %arg15[%c256, %c0_21] : memref<288x288xbf16, #tpu.memory_space<vmem>>, vector<32x288xbf16>
    tpu.vector_store %arg15[%c256, %c0_21], %25 {strides = array<i32>} : memref<288x288xbf16, #tpu.memory_space<vmem>>, vector<32x288xbf16>,
    %c0_22 = arith.constant 0 : index
    %c0_23 = arith.constant 0 : index
    %27 = vector.load %arg3[%c0_22, %c0_23] : memref<16x288xbf16, #tpu.memory_space<vmem>>, vector<16x288xbf16>
    %c0_24 = arith.constant 0 : index
    %c0_25 = arith.constant 0 : index
    %28 = vector.load %arg15[%c0_24, %c0_25] : memref<288x288xbf16, #tpu.memory_space<vmem>>, vector<288x288xbf16>
    %cst_26 = arith.constant dense<0.000000e+00> : vector<16x288xf32>
    %29 = tpu.matmul %27, %28, %cst_26 {dimension_numbers = #tpu.dot_dimension_numbers<[1], [0], [0], [1], [0, 0, 1, 1], [], []>} : vector<16x288xbf16>, vector<288x288xbf16>, vector<16x288xf32> -> vector<16x288xf32>
    %c0_27 = arith.constant 0 : index
    %c0_28 = arith.constant 0 : index
    %30 = vector.load %arg7[%c0_27, %c0_28] : memref<16x1xf32, #tpu.memory_space<vmem>>, vector<16x1xf32>
    %31 = vector.broadcast %30 : vector<16x1xf32> to vector<16x288xf32>
    %32 = arith.addf %29, %31 : vector<16x288xf32>
    %cst_29 = arith.constant 0.000000e+00 : f32
    %33 = vector.broadcast %cst_29 : f32 to vector<16x288xf32>
    %34 = arith.cmpf oge, %32, %33 : vector<16x288xf32>
    %cst_30 = arith.constant 0.00999999977 : f32
    %35 = vector.broadcast %cst_30 : f32 to vector<16x288xf32>
    %36 = arith.mulf %35, %32 : vector<16x288xf32>
    %37 = arith.select %34, %32, %36 : vector<16x288xi1>, vector<16x288xf32>
    %38 = vector.broadcast %6 : vector<1x288xf32> to vector<16x288xf32>
    %39 = arith.mulf %37, %38 : vector<16x288xf32>
    %40 = arith.truncf %39 : vector<16x288xf32> to vector<16x288xbf16>
    %c0_31 = arith.constant 0 : index
    %c36 = arith.constant 36 : index
    %41 = vector.load %arg12[%c0_31, %c36] : memref<16x360xbf16, #tpu.memory_space<vmem>>, vector<16x288xbf16>
    tpu.vector_store %arg12[%c0_31, %c36], %40 {strides = array<i32>} : memref<16x360xbf16, #tpu.memory_space<vmem>>, vector<16x288xbf16>,
    %c0_32 = arith.constant 0 : index
    %c0_33 = arith.constant 0 : index
    %c0_34 = arith.constant 0 : index
    %42 = vector.load %arg11[%c0_32, %c0_33, %c0_34] : memref<1x72x288xbf16, #tpu.memory_space<vmem>>, vector<1x16x288xbf16>
    %43 = vector.shape_cast %42 : vector<1x16x288xbf16> to vector<16x288xbf16>
    %44 = vector.shape_cast %40 : vector<16x288xbf16> to vector<1x16x288xbf16>
    tpu.vector_store %arg11[%c0_32, %c0_33, %c0_34], %44 {strides = array<i32>} : memref<1x72x288xbf16, #tpu.memory_space<vmem>>, vector<1x16x288xbf16>,
    %c0_35 = arith.constant 0 : index
    %c0_36 = arith.constant 0 : index
    %45 = vector.load %arg12[%c0_35, %c0_36] : memref<16x360xbf16, #tpu.memory_space<vmem>>, vector<16x360xbf16>
    %46 = vector.extract_strided_slice %45 {offsets = [0, 17], sizes = [16, 288], strides = [1, 1]} : vector<16x360xbf16> to vector<16x288xbf16>
    %c0_37 = arith.constant 0 : index
    %c0_38 = arith.constant 0 : index
    %47 = vector.load %arg15[%c0_37, %c0_38] : memref<288x288xbf16, #tpu.memory_space<vmem>>, vector<16x288xbf16>
    tpu.vector_store %arg15[%c0_37, %c0_38], %46 {strides = array<i32>} : memref<288x288xbf16, #tpu.memory_space<vmem>>, vector<16x288xbf16>,
    %48 = vector.extract_strided_slice %45 {offsets = [0, 18], sizes = [16, 288], strides = [1, 1]} : vector<16x360xbf16> to vector<16x288xbf16>
    %c16 = arith.constant 16 : index
    %c0_39 = arith.constant 0 : index
    %49 = vector.load %arg15[%c16, %c0_39] : memref<288x288xbf16, #tpu.memory_space<vmem>>, vector<16x288xbf16>
    tpu.vector_store %arg15[%c16, %c0_39], %48 {strides = array<i32>} : memref<288x288xbf16, #tpu.memory_space<vmem>>, vector<16x288xbf16>,
    %50 = vector.extract_strided_slice %45 {offsets = [0, 19], sizes = [16, 288], strides = [1, 1]} : vector<16x360xbf16> to vector<16x288xbf16>
    %c32_40 = arith.constant 32 : index
    %c0_41 = arith.constant 0 : index
    %51 = vector.load %arg15[%c32_40, %c0_41] : memref<288x288xbf16, #tpu.memory_space<vmem>>, vector<16x288xbf16>
    tpu.vector_store %arg15[%c32_40, %c0_41], %50 {strides = array<i32>} : memref<288x288xbf16, #tpu.memory_space<vmem>>, vector<16x288xbf16>,
    %52 = vector.extract_strided_slice %45 {offsets = [0, 35], sizes = [16, 288], strides = [1, 1]} : vector<16x360xbf16> to vector<16x288xbf16>
    %c48 = arith.constant 48 : index
    %c0_42 = arith.constant 0 : index
    %53 = vector.load %arg15[%c48, %c0_42] : memref<288x288xbf16, #tpu.memory_space<vmem>>, vector<16x288xbf16>
    tpu.vector_store %arg15[%c48, %c0_42], %52 {strides = array<i32>} : memref<288x288xbf16, #tpu.memory_space<vmem>>, vector<16x288xbf16>,
    %54 = vector.extract_strided_slice %45 {offsets = [0, 36], sizes = [16, 288], strides = [1, 1]} : vector<16x360xbf16> to vector<16x288xbf16>
    %c64_43 = arith.constant 64 : index
    %c0_44 = arith.constant 0 : index
    %55 = vector.load %arg15[%c64_43, %c0_44] : memref<288x288xbf16, #tpu.memory_space<vmem>>, vector<16x288xbf16>
    tpu.vector_store %arg15[%c64_43, %c0_44], %54 {strides = array<i32>} : memref<288x288xbf16, #tpu.memory_space<vmem>>, vector<16x288xbf16>,
    %56 = vector.extract_strided_slice %45 {offsets = [0, 37], sizes = [16, 288], strides = [1, 1]} : vector<16x360xbf16> to vector<16x288xbf16>
    %c80 = arith.constant 80 : index
    %c0_45 = arith.constant 0 : index
    %57 = vector.load %arg15[%c80, %c0_45] : memref<288x288xbf16, #tpu.memory_space<vmem>>, vector<16x288xbf16>
    tpu.vector_store %arg15[%c80, %c0_45], %56 {strides = array<i32>} : memref<288x288xbf16, #tpu.memory_space<vmem>>, vector<16x288xbf16>,
    %58 = vector.extract_strided_slice %45 {offsets = [0, 53], sizes = [16, 288], strides = [1, 1]} : vector<16x360xbf16> to vector<16x288xbf16>
    %c96_46 = arith.constant 96 : index
    %c0_47 = arith.constant 0 : index
    %59 = vector.load %arg15[%c96_46, %c0_47] : memref<288x288xbf16, #tpu.memory_space<vmem>>, vector<16x288xbf16>
    tpu.vector_store %arg15[%c96_46, %c0_47], %58 {strides = array<i32>} : memref<288x288xbf16, #tpu.memory_space<vmem>>, vector<16x288xbf16>,
    %60 = vector.extract_strided_slice %45 {offsets = [0, 54], sizes = [16, 288], strides = [1, 1]} : vector<16x360xbf16> to vector<16x288xbf16>
    %c112 = arith.constant 112 : index
    %c0_48 = arith.constant 0 : index
    %61 = vector.load %arg15[%c112, %c0_48] : memref<288x288xbf16, #tpu.memory_space<vmem>>, vector<16x288xbf16>
    tpu.vector_store %arg15[%c112, %c0_48], %60 {strides = array<i32>} : memref<288x288xbf16, #tpu.memory_space<vmem>>, vector<16x288xbf16>,
    %62 = vector.extract_strided_slice %45 {offsets = [0, 55], sizes = [16, 288], strides = [1, 1]} : vector<16x360xbf16> to vector<16x288xbf16>
    %c128_49 = arith.constant 128 : index
    %c0_50 = arith.constant 0 : index
    %63 = vector.load %arg15[%c128_49, %c0_50] : memref<288x288xbf16, #tpu.memory_space<vmem>>, vector<16x288xbf16>
    tpu.vector_store %arg15[%c128_49, %c0_50], %62 {strides = array<i32>} : memref<288x288xbf16, #tpu.memory_space<vmem>>, vector<16x288xbf16>,
    %c0_51 = arith.constant 0 : index
    %c0_52 = arith.constant 0 : index
    %64 = vector.load %arg4[%c0_51, %c0_52] : memref<26x432xbf16, #tpu.memory_space<vmem>>, vector<26x144xbf16>
    %c0_53 = arith.constant 0 : index
    %c0_54 = arith.constant 0 : index
    %65 = vector.load %arg15[%c0_53, %c0_54] : memref<288x288xbf16, #tpu.memory_space<vmem>>, vector<144x288xbf16>
    %cst_55 = arith.constant dense<0.000000e+00> : vector<26x288xf32>
    %66 = tpu.matmul %64, %65, %cst_55 {dimension_numbers = #tpu.dot_dimension_numbers<[1], [0], [0], [1], [0, 0, 1, 1], [], []>} : vector<26x144xbf16>, vector<144x288xbf16>, vector<26x288xf32> -> vector<26x288xf32>
    %c0_56 = arith.constant 0 : index
    %c0_57 = arith.constant 0 : index
    %c0_58 = arith.constant 0 : index
    %67 = vector.load %arg1[%c0_56, %c0_57, %c0_58] : memref<1x32x360xbf16, #tpu.memory_space<vmem>>, vector<1x32x360xbf16>
    %68 = vector.shape_cast %67 : vector<1x32x360xbf16> to vector<32x360xbf16>
    %69 = vector.extract_strided_slice %68 {offsets = [0, 17], sizes = [32, 288], strides = [1, 1]} : vector<32x360xbf16> to vector<32x288xbf16>
    %c0_59 = arith.constant 0 : index
    %c0_60 = arith.constant 0 : index
    %70 = vector.load %arg15[%c0_59, %c0_60] : memref<288x288xbf16, #tpu.memory_space<vmem>>, vector<32x288xbf16>
    tpu.vector_store %arg15[%c0_59, %c0_60], %69 {strides = array<i32>} : memref<288x288xbf16, #tpu.memory_space<vmem>>, vector<32x288xbf16>,
    %71 = vector.extract_strided_slice %68 {offsets = [0, 18], sizes = [32, 288], strides = [1, 1]} : vector<32x360xbf16> to vector<32x288xbf16>
    %c32_61 = arith.constant 32 : index
    %c0_62 = arith.constant 0 : index
    %72 = vector.load %arg15[%c32_61, %c0_62] : memref<288x288xbf16, #tpu.memory_space<vmem>>, vector<32x288xbf16>
    tpu.vector_store %arg15[%c32_61, %c0_62], %71 {strides = array<i32>} : memref<288x288xbf16, #tpu.memory_space<vmem>>, vector<32x288xbf16>,
    %73 = vector.extract_strided_slice %68 {offsets = [0, 19], sizes = [32, 288], strides = [1, 1]} : vector<32x360xbf16> to vector<32x288xbf16>
    %c64_63 = arith.constant 64 : index
    %c0_64 = arith.constant 0 : index
    %74 = vector.load %arg15[%c64_63, %c0_64] : memref<288x288xbf16, #tpu.memory_space<vmem>>, vector<32x288xbf16>
    tpu.vector_store %arg15[%c64_63, %c0_64], %73 {strides = array<i32>} : memref<288x288xbf16, #tpu.memory_space<vmem>>, vector<32x288xbf16>,
    %75 = vector.extract_strided_slice %68 {offsets = [0, 35], sizes = [32, 288], strides = [1, 1]} : vector<32x360xbf16> to vector<32x288xbf16>
    %c96_65 = arith.constant 96 : index
    %c0_66 = arith.constant 0 : index
    %76 = vector.load %arg15[%c96_65, %c0_66] : memref<288x288xbf16, #tpu.memory_space<vmem>>, vector<32x288xbf16>
    tpu.vector_store %arg15[%c96_65, %c0_66], %75 {strides = array<i32>} : memref<288x288xbf16, #tpu.memory_space<vmem>>, vector<32x288xbf16>,
    %77 = vector.extract_strided_slice %68 {offsets = [0, 36], sizes = [32, 288], strides = [1, 1]} : vector<32x360xbf16> to vector<32x288xbf16>
    %c128_67 = arith.constant 128 : index
    %c0_68 = arith.constant 0 : index
    %78 = vector.load %arg15[%c128_67, %c0_68] : memref<288x288xbf16, #tpu.memory_space<vmem>>, vector<32x288xbf16>
    tpu.vector_store %arg15[%c128_67, %c0_68], %77 {strides = array<i32>} : memref<288x288xbf16, #tpu.memory_space<vmem>>, vector<32x288xbf16>,
    %79 = vector.extract_strided_slice %68 {offsets = [0, 37], sizes = [32, 288], strides = [1, 1]} : vector<32x360xbf16> to vector<32x288xbf16>
    %c160_69 = arith.constant 160 : index
    %c0_70 = arith.constant 0 : index
    %80 = vector.load %arg15[%c160_69, %c0_70] : memref<288x288xbf16, #tpu.memory_space<vmem>>, vector<32x288xbf16>
    tpu.vector_store %arg15[%c160_69, %c0_70], %79 {strides = array<i32>} : memref<288x288xbf16, #tpu.memory_space<vmem>>, vector<32x288xbf16>,
    %81 = vector.extract_strided_slice %68 {offsets = [0, 53], sizes = [32, 288], strides = [1, 1]} : vector<32x360xbf16> to vector<32x288xbf16>
    %c192_71 = arith.constant 192 : index
    %c0_72 = arith.constant 0 : index
    %82 = vector.load %arg15[%c192_71, %c0_72] : memref<288x288xbf16, #tpu.memory_space<vmem>>, vector<32x288xbf16>
    tpu.vector_store %arg15[%c192_71, %c0_72], %81 {strides = array<i32>} : memref<288x288xbf16, #tpu.memory_space<vmem>>, vector<32x288xbf16>,
    %83 = vector.extract_strided_slice %68 {offsets = [0, 54], sizes = [32, 288], strides = [1, 1]} : vector<32x360xbf16> to vector<32x288xbf16>
    %c224_73 = arith.constant 224 : index
    %c0_74 = arith.constant 0 : index
    %84 = vector.load %arg15[%c224_73, %c0_74] : memref<288x288xbf16, #tpu.memory_space<vmem>>, vector<32x288xbf16>
    tpu.vector_store %arg15[%c224_73, %c0_74], %83 {strides = array<i32>} : memref<288x288xbf16, #tpu.memory_space<vmem>>, vector<32x288xbf16>,
    %85 = vector.extract_strided_slice %68 {offsets = [0, 55], sizes = [32, 288], strides = [1, 1]} : vector<32x360xbf16> to vector<32x288xbf16>
    %c256_75 = arith.constant 256 : index
    %c0_76 = arith.constant 0 : index
    %86 = vector.load %arg15[%c256_75, %c0_76] : memref<288x288xbf16, #tpu.memory_space<vmem>>, vector<32x288xbf16>
    tpu.vector_store %arg15[%c256_75, %c0_76], %85 {strides = array<i32>} : memref<288x288xbf16, #tpu.memory_space<vmem>>, vector<32x288xbf16>,
    %c0_77 = arith.constant 0 : index
    %c144 = arith.constant 144 : index
    %87 = vector.load %arg4[%c0_77, %c144] : memref<26x432xbf16, #tpu.memory_space<vmem>>, vector<26x288xbf16>
    %c0_78 = arith.constant 0 : index
    %c0_79 = arith.constant 0 : index
    %88 = vector.load %arg15[%c0_78, %c0_79] : memref<288x288xbf16, #tpu.memory_space<vmem>>, vector<288x288xbf16>
    %cst_80 = arith.constant dense<0.000000e+00> : vector<26x288xf32>
    %89 = tpu.matmul %87, %88, %cst_80 {dimension_numbers = #tpu.dot_dimension_numbers<[1], [0], [0], [1], [0, 0, 1, 1], [], []>} : vector<26x288xbf16>, vector<288x288xbf16>, vector<26x288xf32> -> vector<26x288xf32>
    %90 = arith.addf %66, %89 : vector<26x288xf32>
    %c0_81 = arith.constant 0 : index
    %c0_82 = arith.constant 0 : index
    %91 = vector.load %arg8[%c0_81, %c0_82] : memref<26x1xf32, #tpu.memory_space<vmem>>, vector<26x1xf32>
    %92 = vector.broadcast %91 : vector<26x1xf32> to vector<26x288xf32>
    %93 = arith.addf %90, %92 : vector<26x288xf32>
    %cst_83 = arith.constant 0.000000e+00 : f32
    %94 = vector.broadcast %cst_83 : f32 to vector<26x288xf32>
    %95 = arith.cmpf oge, %93, %94 : vector<26x288xf32>
    %cst_84 = arith.constant 0.00999999977 : f32
    %96 = vector.broadcast %cst_84 : f32 to vector<26x288xf32>
    %97 = arith.mulf %96, %93 : vector<26x288xf32>
    %98 = arith.select %95, %93, %97 : vector<26x288xi1>, vector<26x288xf32>
    %99 = vector.broadcast %6 : vector<1x288xf32> to vector<26x288xf32>
    %100 = arith.mulf %98, %99 : vector<26x288xf32>
    %101 = arith.truncf %100 : vector<26x288xf32> to vector<26x288xbf16>
    %c0_85 = arith.constant 0 : index
    %c36_86 = arith.constant 36 : index
    %102 = vector.load %arg13[%c0_85, %c36_86] : memref<26x360xbf16, #tpu.memory_space<vmem>>, vector<26x288xbf16>
    tpu.vector_store %arg13[%c0_85, %c36_86], %101 {strides = array<i32>} : memref<26x360xbf16, #tpu.memory_space<vmem>>, vector<26x288xbf16>,
    %c0_87 = arith.constant 0 : index
    %c0_88 = arith.constant 0 : index
    %103 = vector.load %arg13[%c0_87, %c0_88] : memref<26x360xbf16, #tpu.memory_space<vmem>>, vector<26x360xbf16>
    %104 = vector.extract_strided_slice %103 {offsets = [0, 17], sizes = [26, 288], strides = [1, 1]} : vector<26x360xbf16> to vector<26x288xbf16>
    %c0_89 = arith.constant 0 : index
    %c0_90 = arith.constant 0 : index
    %105 = vector.load %arg15[%c0_89, %c0_90] : memref<288x288xbf16, #tpu.memory_space<vmem>>, vector<26x288xbf16>
    tpu.vector_store %arg15[%c0_89, %c0_90], %104 {strides = array<i32>} : memref<288x288xbf16, #tpu.memory_space<vmem>>, vector<26x288xbf16>,
    %106 = vector.extract_strided_slice %103 {offsets = [0, 18], sizes = [26, 288], strides = [1, 1]} : vector<26x360xbf16> to vector<26x288xbf16>
    %c26 = arith.constant 26 : index
    %c0_91 = arith.constant 0 : index
    %107 = vector.load %arg15[%c26, %c0_91] : memref<288x288xbf16, #tpu.memory_space<vmem>>, vector<26x288xbf16>
    tpu.vector_store %arg15[%c26, %c0_91], %106 {strides = array<i32>} : memref<288x288xbf16, #tpu.memory_space<vmem>>, vector<26x288xbf16>,
    %108 = vector.extract_strided_slice %103 {offsets = [0, 19], sizes = [26, 288], strides = [1, 1]} : vector<26x360xbf16> to vector<26x288xbf16>
    %c52 = arith.constant 52 : index
    %c0_92 = arith.constant 0 : index
    %109 = vector.load %arg15[%c52, %c0_92] : memref<288x288xbf16, #tpu.memory_space<vmem>>, vector<26x288xbf16>
    tpu.vector_store %arg15[%c52, %c0_92], %108 {strides = array<i32>} : memref<288x288xbf16, #tpu.memory_space<vmem>>, vector<26x288xbf16>,
    %110 = vector.extract_strided_slice %103 {offsets = [0, 35], sizes = [26, 288], strides = [1, 1]} : vector<26x360xbf16> to vector<26x288xbf16>
    %c78 = arith.constant 78 : index
    %c0_93 = arith.constant 0 : index
    %111 = vector.load %arg15[%c78, %c0_93] : memref<288x288xbf16, #tpu.memory_space<vmem>>, vector<26x288xbf16>
    tpu.vector_store %arg15[%c78, %c0_93], %110 {strides = array<i32>} : memref<288x288xbf16, #tpu.memory_space<vmem>>, vector<26x288xbf16>,
    %112 = vector.extract_strided_slice %103 {offsets = [0, 36], sizes = [26, 288], strides = [1, 1]} : vector<26x360xbf16> to vector<26x288xbf16>
    %c104 = arith.constant 104 : index
    %c0_94 = arith.constant 0 : index
    %113 = vector.load %arg15[%c104, %c0_94] : memref<288x288xbf16, #tpu.memory_space<vmem>>, vector<26x288xbf16>
    tpu.vector_store %arg15[%c104, %c0_94], %112 {strides = array<i32>} : memref<288x288xbf16, #tpu.memory_space<vmem>>, vector<26x288xbf16>,
    %114 = vector.extract_strided_slice %103 {offsets = [0, 37], sizes = [26, 288], strides = [1, 1]} : vector<26x360xbf16> to vector<26x288xbf16>
    %c130 = arith.constant 130 : index
    %c0_95 = arith.constant 0 : index
    %115 = vector.load %arg15[%c130, %c0_95] : memref<288x288xbf16, #tpu.memory_space<vmem>>, vector<26x288xbf16>
    tpu.vector_store %arg15[%c130, %c0_95], %114 {strides = array<i32>} : memref<288x288xbf16, #tpu.memory_space<vmem>>, vector<26x288xbf16>,
    %116 = vector.extract_strided_slice %103 {offsets = [0, 53], sizes = [26, 288], strides = [1, 1]} : vector<26x360xbf16> to vector<26x288xbf16>
    %c156 = arith.constant 156 : index
    %c0_96 = arith.constant 0 : index
    %117 = vector.load %arg15[%c156, %c0_96] : memref<288x288xbf16, #tpu.memory_space<vmem>>, vector<26x288xbf16>
    tpu.vector_store %arg15[%c156, %c0_96], %116 {strides = array<i32>} : memref<288x288xbf16, #tpu.memory_space<vmem>>, vector<26x288xbf16>,
    %118 = vector.extract_strided_slice %103 {offsets = [0, 54], sizes = [26, 288], strides = [1, 1]} : vector<26x360xbf16> to vector<26x288xbf16>
    %c182 = arith.constant 182 : index
    %c0_97 = arith.constant 0 : index
    %119 = vector.load %arg15[%c182, %c0_97] : memref<288x288xbf16, #tpu.memory_space<vmem>>, vector<26x288xbf16>
    tpu.vector_store %arg15[%c182, %c0_97], %118 {strides = array<i32>} : memref<288x288xbf16, #tpu.memory_space<vmem>>, vector<26x288xbf16>,
    %120 = vector.extract_strided_slice %103 {offsets = [0, 55], sizes = [26, 288], strides = [1, 1]} : vector<26x360xbf16> to vector<26x288xbf16>
    %c208 = arith.constant 208 : index
    %c0_98 = arith.constant 0 : index
    %121 = vector.load %arg15[%c208, %c0_98] : memref<288x288xbf16, #tpu.memory_space<vmem>>, vector<26x288xbf16>
    tpu.vector_store %arg15[%c208, %c0_98], %120 {strides = array<i32>} : memref<288x288xbf16, #tpu.memory_space<vmem>>, vector<26x288xbf16>,
    %c0_99 = arith.constant 0 : index
    %c0_100 = arith.constant 0 : index
    %122 = vector.load %arg5[%c0_99, %c0_100] : memref<16x234xbf16, #tpu.memory_space<vmem>>, vector<16x234xbf16>
    %c0_101 = arith.constant 0 : index
    %c0_102 = arith.constant 0 : index
    %123 = vector.load %arg15[%c0_101, %c0_102] : memref<288x288xbf16, #tpu.memory_space<vmem>>, vector<234x288xbf16>
    %cst_103 = arith.constant dense<0.000000e+00> : vector<16x288xf32>
    %124 = tpu.matmul %122, %123, %cst_103 {dimension_numbers = #tpu.dot_dimension_numbers<[1], [0], [0], [1], [0, 0, 1, 1], [], []>} : vector<16x234xbf16>, vector<234x288xbf16>, vector<16x288xf32> -> vector<16x288xf32>
    %c0_104 = arith.constant 0 : index
    %c0_105 = arith.constant 0 : index
    %125 = vector.load %arg9[%c0_104, %c0_105] : memref<16x1xf32, #tpu.memory_space<vmem>>, vector<16x1xf32>
    %126 = vector.broadcast %125 : vector<16x1xf32> to vector<16x288xf32>
    %127 = arith.addf %124, %126 : vector<16x288xf32>
    %cst_106 = arith.constant 0.000000e+00 : f32
    %128 = vector.broadcast %cst_106 : f32 to vector<16x288xf32>
    %129 = arith.cmpf oge, %127, %128 : vector<16x288xf32>
    %cst_107 = arith.constant 0.00999999977 : f32
    %130 = vector.broadcast %cst_107 : f32 to vector<16x288xf32>
    %131 = arith.mulf %130, %127 : vector<16x288xf32>
    %132 = arith.select %129, %127, %131 : vector<16x288xi1>, vector<16x288xf32>
    %133 = vector.broadcast %6 : vector<1x288xf32> to vector<16x288xf32>
    %134 = arith.mulf %132, %133 : vector<16x288xf32>
    %135 = arith.truncf %134 : vector<16x288xf32> to vector<16x288xbf16>
    %c0_108 = arith.constant 0 : index
    %c36_109 = arith.constant 36 : index
    %136 = vector.load %arg14[%c0_108, %c36_109] : memref<16x360xbf16, #tpu.memory_space<vmem>>, vector<16x288xbf16>
    tpu.vector_store %arg14[%c0_108, %c36_109], %135 {strides = array<i32>} : memref<16x360xbf16, #tpu.memory_space<vmem>>, vector<16x288xbf16>,
    %c0_110 = arith.constant 0 : index
    %c16_111 = arith.constant 16 : index
    %c0_112 = arith.constant 0 : index
    %137 = vector.load %arg11[%c0_110, %c16_111, %c0_112] : memref<1x72x288xbf16, #tpu.memory_space<vmem>>, vector<1x16x288xbf16>
    %138 = vector.shape_cast %137 : vector<1x16x288xbf16> to vector<16x288xbf16>
    %139 = vector.shape_cast %135 : vector<16x288xbf16> to vector<1x16x288xbf16>
    tpu.vector_store %arg11[%c0_110, %c16_111, %c0_112], %139 {strides = array<i32>} : memref<1x72x288xbf16, #tpu.memory_space<vmem>>, vector<1x16x288xbf16>,
    %c0_113 = arith.constant 0 : index
    %c0_114 = arith.constant 0 : index
    %140 = vector.load %arg14[%c0_113, %c0_114] : memref<16x360xbf16, #tpu.memory_space<vmem>>, vector<16x360xbf16>
    %141 = vector.extract_strided_slice %140 {offsets = [0, 17], sizes = [16, 288], strides = [1, 1]} : vector<16x360xbf16> to vector<16x288xbf16>
    %c0_115 = arith.constant 0 : index
    %c0_116 = arith.constant 0 : index
    %142 = vector.load %arg15[%c0_115, %c0_116] : memref<288x288xbf16, #tpu.memory_space<vmem>>, vector<16x288xbf16>
    tpu.vector_store %arg15[%c0_115, %c0_116], %141 {strides = array<i32>} : memref<288x288xbf16, #tpu.memory_space<vmem>>, vector<16x288xbf16>,
    %143 = vector.extract_strided_slice %140 {offsets = [0, 18], sizes = [16, 288], strides = [1, 1]} : vector<16x360xbf16> to vector<16x288xbf16>
    %c16_117 = arith.constant 16 : index
    %c0_118 = arith.constant 0 : index
    %144 = vector.load %arg15[%c16_117, %c0_118] : memref<288x288xbf16, #tpu.memory_space<vmem>>, vector<16x288xbf16>
    tpu.vector_store %arg15[%c16_117, %c0_118], %143 {strides = array<i32>} : memref<288x288xbf16, #tpu.memory_space<vmem>>, vector<16x288xbf16>,
    %145 = vector.extract_strided_slice %140 {offsets = [0, 19], sizes = [16, 288], strides = [1, 1]} : vector<16x360xbf16> to vector<16x288xbf16>
    %c32_119 = arith.constant 32 : index
    %c0_120 = arith.constant 0 : index
    %146 = vector.load %arg15[%c32_119, %c0_120] : memref<288x288xbf16, #tpu.memory_space<vmem>>, vector<16x288xbf16>
    tpu.vector_store %arg15[%c32_119, %c0_120], %145 {strides = array<i32>} : memref<288x288xbf16, #tpu.memory_space<vmem>>, vector<16x288xbf16>,
    %147 = vector.extract_strided_slice %140 {offsets = [0, 35], sizes = [16, 288], strides = [1, 1]} : vector<16x360xbf16> to vector<16x288xbf16>
    %c48_121 = arith.constant 48 : index
    %c0_122 = arith.constant 0 : index
    %148 = vector.load %arg15[%c48_121, %c0_122] : memref<288x288xbf16, #tpu.memory_space<vmem>>, vector<16x288xbf16>
    tpu.vector_store %arg15[%c48_121, %c0_122], %147 {strides = array<i32>} : memref<288x288xbf16, #tpu.memory_space<vmem>>, vector<16x288xbf16>,
    %149 = vector.extract_strided_slice %140 {offsets = [0, 36], sizes = [16, 288], strides = [1, 1]} : vector<16x360xbf16> to vector<16x288xbf16>
    %c64_123 = arith.constant 64 : index
    %c0_124 = arith.constant 0 : index
    %150 = vector.load %arg15[%c64_123, %c0_124] : memref<288x288xbf16, #tpu.memory_space<vmem>>, vector<16x288xbf16>
    tpu.vector_store %arg15[%c64_123, %c0_124], %149 {strides = array<i32>} : memref<288x288xbf16, #tpu.memory_space<vmem>>, vector<16x288xbf16>,
    %151 = vector.extract_strided_slice %140 {offsets = [0, 37], sizes = [16, 288], strides = [1, 1]} : vector<16x360xbf16> to vector<16x288xbf16>
    %c80_125 = arith.constant 80 : index
    %c0_126 = arith.constant 0 : index
    %152 = vector.load %arg15[%c80_125, %c0_126] : memref<288x288xbf16, #tpu.memory_space<vmem>>, vector<16x288xbf16>
    tpu.vector_store %arg15[%c80_125, %c0_126], %151 {strides = array<i32>} : memref<288x288xbf16, #tpu.memory_space<vmem>>, vector<16x288xbf16>,
    %153 = vector.extract_strided_slice %140 {offsets = [0, 53], sizes = [16, 288], strides = [1, 1]} : vector<16x360xbf16> to vector<16x288xbf16>
    %c96_127 = arith.constant 96 : index
    %c0_128 = arith.constant 0 : index
    %154 = vector.load %arg15[%c96_127, %c0_128] : memref<288x288xbf16, #tpu.memory_space<vmem>>, vector<16x288xbf16>
    tpu.vector_store %arg15[%c96_127, %c0_128], %153 {strides = array<i32>} : memref<288x288xbf16, #tpu.memory_space<vmem>>, vector<16x288xbf16>,
    %155 = vector.extract_strided_slice %140 {offsets = [0, 54], sizes = [16, 288], strides = [1, 1]} : vector<16x360xbf16> to vector<16x288xbf16>
    %c112_129 = arith.constant 112 : index
    %c0_130 = arith.constant 0 : index
    %156 = vector.load %arg15[%c112_129, %c0_130] : memref<288x288xbf16, #tpu.memory_space<vmem>>, vector<16x288xbf16>
    tpu.vector_store %arg15[%c112_129, %c0_130], %155 {strides = array<i32>} : memref<288x288xbf16, #tpu.memory_space<vmem>>, vector<16x288xbf16>,
    %157 = vector.extract_strided_slice %140 {offsets = [0, 55], sizes = [16, 288], strides = [1, 1]} : vector<16x360xbf16> to vector<16x288xbf16>
    %c128_131 = arith.constant 128 : index
    %c0_132 = arith.constant 0 : index
    %158 = vector.load %arg15[%c128_131, %c0_132] : memref<288x288xbf16, #tpu.memory_space<vmem>>, vector<16x288xbf16>
    tpu.vector_store %arg15[%c128_131, %c0_132], %157 {strides = array<i32>} : memref<288x288xbf16, #tpu.memory_space<vmem>>, vector<16x288xbf16>,
    %c0_133 = arith.constant 0 : index
    %c0_134 = arith.constant 0 : index
    %159 = vector.load %arg6[%c0_133, %c0_134] : memref<40x666xbf16, #tpu.memory_space<vmem>>, vector<40x144xbf16>
    %c0_135 = arith.constant 0 : index
    %c0_136 = arith.constant 0 : index
    %160 = vector.load %arg15[%c0_135, %c0_136] : memref<288x288xbf16, #tpu.memory_space<vmem>>, vector<144x288xbf16>
    %cst_137 = arith.constant dense<0.000000e+00> : vector<40x288xf32>
    %161 = tpu.matmul %159, %160, %cst_137 {dimension_numbers = #tpu.dot_dimension_numbers<[1], [0], [0], [1], [0, 0, 1, 1], [], []>} : vector<40x144xbf16>, vector<144x288xbf16>, vector<40x288xf32> -> vector<40x288xf32>
    %c0_138 = arith.constant 0 : index
    %c0_139 = arith.constant 0 : index
    %162 = vector.load %arg13[%c0_138, %c0_139] : memref<26x360xbf16, #tpu.memory_space<vmem>>, vector<26x360xbf16>
    %163 = vector.extract_strided_slice %162 {offsets = [0, 17], sizes = [26, 288], strides = [1, 1]} : vector<26x360xbf16> to vector<26x288xbf16>
    %c0_140 = arith.constant 0 : index
    %c0_141 = arith.constant 0 : index
    %164 = vector.load %arg15[%c0_140, %c0_141] : memref<288x288xbf16, #tpu.memory_space<vmem>>, vector<26x288xbf16>
    tpu.vector_store %arg15[%c0_140, %c0_141], %163 {strides = array<i32>} : memref<288x288xbf16, #tpu.memory_space<vmem>>, vector<26x288xbf16>,
    %165 = vector.extract_strided_slice %162 {offsets = [0, 18], sizes = [26, 288], strides = [1, 1]} : vector<26x360xbf16> to vector<26x288xbf16>
    %c26_142 = arith.constant 26 : index
    %c0_143 = arith.constant 0 : index
    %166 = vector.load %arg15[%c26_142, %c0_143] : memref<288x288xbf16, #tpu.memory_space<vmem>>, vector<26x288xbf16>
    tpu.vector_store %arg15[%c26_142, %c0_143], %165 {strides = array<i32>} : memref<288x288xbf16, #tpu.memory_space<vmem>>, vector<26x288xbf16>,
    %167 = vector.extract_strided_slice %162 {offsets = [0, 19], sizes = [26, 288], strides = [1, 1]} : vector<26x360xbf16> to vector<26x288xbf16>
    %c52_144 = arith.constant 52 : index
    %c0_145 = arith.constant 0 : index
    %168 = vector.load %arg15[%c52_144, %c0_145] : memref<288x288xbf16, #tpu.memory_space<vmem>>, vector<26x288xbf16>
    tpu.vector_store %arg15[%c52_144, %c0_145], %167 {strides = array<i32>} : memref<288x288xbf16, #tpu.memory_space<vmem>>, vector<26x288xbf16>,
    %169 = vector.extract_strided_slice %162 {offsets = [0, 35], sizes = [26, 288], strides = [1, 1]} : vector<26x360xbf16> to vector<26x288xbf16>
    %c78_146 = arith.constant 78 : index
    %c0_147 = arith.constant 0 : index
    %170 = vector.load %arg15[%c78_146, %c0_147] : memref<288x288xbf16, #tpu.memory_space<vmem>>, vector<26x288xbf16>
    tpu.vector_store %arg15[%c78_146, %c0_147], %169 {strides = array<i32>} : memref<288x288xbf16, #tpu.memory_space<vmem>>, vector<26x288xbf16>,
    %171 = vector.extract_strided_slice %162 {offsets = [0, 36], sizes = [26, 288], strides = [1, 1]} : vector<26x360xbf16> to vector<26x288xbf16>
    %c104_148 = arith.constant 104 : index
    %c0_149 = arith.constant 0 : index
    %172 = vector.load %arg15[%c104_148, %c0_149] : memref<288x288xbf16, #tpu.memory_space<vmem>>, vector<26x288xbf16>
    tpu.vector_store %arg15[%c104_148, %c0_149], %171 {strides = array<i32>} : memref<288x288xbf16, #tpu.memory_space<vmem>>, vector<26x288xbf16>,
    %173 = vector.extract_strided_slice %162 {offsets = [0, 37], sizes = [26, 288], strides = [1, 1]} : vector<26x360xbf16> to vector<26x288xbf16>
    %c130_150 = arith.constant 130 : index
    %c0_151 = arith.constant 0 : index
    %174 = vector.load %arg15[%c130_150, %c0_151] : memref<288x288xbf16, #tpu.memory_space<vmem>>, vector<26x288xbf16>
    tpu.vector_store %arg15[%c130_150, %c0_151], %173 {strides = array<i32>} : memref<288x288xbf16, #tpu.memory_space<vmem>>, vector<26x288xbf16>,
    %175 = vector.extract_strided_slice %162 {offsets = [0, 53], sizes = [26, 288], strides = [1, 1]} : vector<26x360xbf16> to vector<26x288xbf16>
    %c156_152 = arith.constant 156 : index
    %c0_153 = arith.constant 0 : index
    %176 = vector.load %arg15[%c156_152, %c0_153] : memref<288x288xbf16, #tpu.memory_space<vmem>>, vector<26x288xbf16>
    tpu.vector_store %arg15[%c156_152, %c0_153], %175 {strides = array<i32>} : memref<288x288xbf16, #tpu.memory_space<vmem>>, vector<26x288xbf16>,
    %177 = vector.extract_strided_slice %162 {offsets = [0, 54], sizes = [26, 288], strides = [1, 1]} : vector<26x360xbf16> to vector<26x288xbf16>
    %c182_154 = arith.constant 182 : index
    %c0_155 = arith.constant 0 : index
    %178 = vector.load %arg15[%c182_154, %c0_155] : memref<288x288xbf16, #tpu.memory_space<vmem>>, vector<26x288xbf16>
    tpu.vector_store %arg15[%c182_154, %c0_155], %177 {strides = array<i32>} : memref<288x288xbf16, #tpu.memory_space<vmem>>, vector<26x288xbf16>,
    %179 = vector.extract_strided_slice %162 {offsets = [0, 55], sizes = [26, 288], strides = [1, 1]} : vector<26x360xbf16> to vector<26x288xbf16>
    %c208_156 = arith.constant 208 : index
    %c0_157 = arith.constant 0 : index
    %180 = vector.load %arg15[%c208_156, %c0_157] : memref<288x288xbf16, #tpu.memory_space<vmem>>, vector<26x288xbf16>
    tpu.vector_store %arg15[%c208_156, %c0_157], %179 {strides = array<i32>} : memref<288x288xbf16, #tpu.memory_space<vmem>>, vector<26x288xbf16>,
    %c0_158 = arith.constant 0 : index
    %c144_159 = arith.constant 144 : index
    %181 = vector.load %arg6[%c0_158, %c144_159] : memref<40x666xbf16, #tpu.memory_space<vmem>>, vector<40x234xbf16>
    %c0_160 = arith.constant 0 : index
    %c0_161 = arith.constant 0 : index
    %182 = vector.load %arg15[%c0_160, %c0_161] : memref<288x288xbf16, #tpu.memory_space<vmem>>, vector<234x288xbf16>
    %cst_162 = arith.constant dense<0.000000e+00> : vector<40x288xf32>
    %183 = tpu.matmul %181, %182, %cst_162 {dimension_numbers = #tpu.dot_dimension_numbers<[1], [0], [0], [1], [0, 0, 1, 1], [], []>} : vector<40x234xbf16>, vector<234x288xbf16>, vector<40x288xf32> -> vector<40x288xf32>
    %184 = arith.addf %161, %183 : vector<40x288xf32>
    %c0_163 = arith.constant 0 : index
    %c0_164 = arith.constant 0 : index
    %c0_165 = arith.constant 0 : index
    %185 = vector.load %arg1[%c0_163, %c0_164, %c0_165] : memref<1x32x360xbf16, #tpu.memory_space<vmem>>, vector<1x32x360xbf16>
    %186 = vector.shape_cast %185 : vector<1x32x360xbf16> to vector<32x360xbf16>
    %187 = vector.extract_strided_slice %186 {offsets = [0, 17], sizes = [32, 288], strides = [1, 1]} : vector<32x360xbf16> to vector<32x288xbf16>
    %c0_166 = arith.constant 0 : index
    %c0_167 = arith.constant 0 : index
    %188 = vector.load %arg15[%c0_166, %c0_167] : memref<288x288xbf16, #tpu.memory_space<vmem>>, vector<32x288xbf16>
    tpu.vector_store %arg15[%c0_166, %c0_167], %187 {strides = array<i32>} : memref<288x288xbf16, #tpu.memory_space<vmem>>, vector<32x288xbf16>,
    %189 = vector.extract_strided_slice %186 {offsets = [0, 18], sizes = [32, 288], strides = [1, 1]} : vector<32x360xbf16> to vector<32x288xbf16>
    %c32_168 = arith.constant 32 : index
    %c0_169 = arith.constant 0 : index
    %190 = vector.load %arg15[%c32_168, %c0_169] : memref<288x288xbf16, #tpu.memory_space<vmem>>, vector<32x288xbf16>
    tpu.vector_store %arg15[%c32_168, %c0_169], %189 {strides = array<i32>} : memref<288x288xbf16, #tpu.memory_space<vmem>>, vector<32x288xbf16>,
    %191 = vector.extract_strided_slice %186 {offsets = [0, 19], sizes = [32, 288], strides = [1, 1]} : vector<32x360xbf16> to vector<32x288xbf16>
    %c64_170 = arith.constant 64 : index
    %c0_171 = arith.constant 0 : index
    %192 = vector.load %arg15[%c64_170, %c0_171] : memref<288x288xbf16, #tpu.memory_space<vmem>>, vector<32x288xbf16>
    tpu.vector_store %arg15[%c64_170, %c0_171], %191 {strides = array<i32>} : memref<288x288xbf16, #tpu.memory_space<vmem>>, vector<32x288xbf16>,
    %193 = vector.extract_strided_slice %186 {offsets = [0, 35], sizes = [32, 288], strides = [1, 1]} : vector<32x360xbf16> to vector<32x288xbf16>
    %c96_172 = arith.constant 96 : index
    %c0_173 = arith.constant 0 : index
    %194 = vector.load %arg15[%c96_172, %c0_173] : memref<288x288xbf16, #tpu.memory_space<vmem>>, vector<32x288xbf16>
    tpu.vector_store %arg15[%c96_172, %c0_173], %193 {strides = array<i32>} : memref<288x288xbf16, #tpu.memory_space<vmem>>, vector<32x288xbf16>,
    %195 = vector.extract_strided_slice %186 {offsets = [0, 36], sizes = [32, 288], strides = [1, 1]} : vector<32x360xbf16> to vector<32x288xbf16>
    %c128_174 = arith.constant 128 : index
    %c0_175 = arith.constant 0 : index
    %196 = vector.load %arg15[%c128_174, %c0_175] : memref<288x288xbf16, #tpu.memory_space<vmem>>, vector<32x288xbf16>
    tpu.vector_store %arg15[%c128_174, %c0_175], %195 {strides = array<i32>} : memref<288x288xbf16, #tpu.memory_space<vmem>>, vector<32x288xbf16>,
    %197 = vector.extract_strided_slice %186 {offsets = [0, 37], sizes = [32, 288], strides = [1, 1]} : vector<32x360xbf16> to vector<32x288xbf16>
    %c160_176 = arith.constant 160 : index
    %c0_177 = arith.constant 0 : index
    %198 = vector.load %arg15[%c160_176, %c0_177] : memref<288x288xbf16, #tpu.memory_space<vmem>>, vector<32x288xbf16>
    tpu.vector_store %arg15[%c160_176, %c0_177], %197 {strides = array<i32>} : memref<288x288xbf16, #tpu.memory_space<vmem>>, vector<32x288xbf16>,
    %199 = vector.extract_strided_slice %186 {offsets = [0, 53], sizes = [32, 288], strides = [1, 1]} : vector<32x360xbf16> to vector<32x288xbf16>
    %c192_178 = arith.constant 192 : index
    %c0_179 = arith.constant 0 : index
    %200 = vector.load %arg15[%c192_178, %c0_179] : memref<288x288xbf16, #tpu.memory_space<vmem>>, vector<32x288xbf16>
    tpu.vector_store %arg15[%c192_178, %c0_179], %199 {strides = array<i32>} : memref<288x288xbf16, #tpu.memory_space<vmem>>, vector<32x288xbf16>,
    %201 = vector.extract_strided_slice %186 {offsets = [0, 54], sizes = [32, 288], strides = [1, 1]} : vector<32x360xbf16> to vector<32x288xbf16>
    %c224_180 = arith.constant 224 : index
    %c0_181 = arith.constant 0 : index
    %202 = vector.load %arg15[%c224_180, %c0_181] : memref<288x288xbf16, #tpu.memory_space<vmem>>, vector<32x288xbf16>
    tpu.vector_store %arg15[%c224_180, %c0_181], %201 {strides = array<i32>} : memref<288x288xbf16, #tpu.memory_space<vmem>>, vector<32x288xbf16>,
    %203 = vector.extract_strided_slice %186 {offsets = [0, 55], sizes = [32, 288], strides = [1, 1]} : vector<32x360xbf16> to vector<32x288xbf16>
    %c256_182 = arith.constant 256 : index
    %c0_183 = arith.constant 0 : index
    %204 = vector.load %arg15[%c256_182, %c0_183] : memref<288x288xbf16, #tpu.memory_space<vmem>>, vector<32x288xbf16>
    tpu.vector_store %arg15[%c256_182, %c0_183], %203 {strides = array<i32>} : memref<288x288xbf16, #tpu.memory_space<vmem>>, vector<32x288xbf16>,
    %c0_184 = arith.constant 0 : index
    %c378 = arith.constant 378 : index
    %205 = vector.load %arg6[%c0_184, %c378] : memref<40x666xbf16, #tpu.memory_space<vmem>>, vector<40x288xbf16>
    %c0_185 = arith.constant 0 : index
    %c0_186 = arith.constant 0 : index
    %206 = vector.load %arg15[%c0_185, %c0_186] : memref<288x288xbf16, #tpu.memory_space<vmem>>, vector<288x288xbf16>
    %cst_187 = arith.constant dense<0.000000e+00> : vector<40x288xf32>
    %207 = tpu.matmul %205, %206, %cst_187 {dimension_numbers = #tpu.dot_dimension_numbers<[1], [0], [0], [1], [0, 0, 1, 1], [], []>} : vector<40x288xbf16>, vector<288x288xbf16>, vector<40x288xf32> -> vector<40x288xf32>
    %208 = arith.addf %184, %207 : vector<40x288xf32>
    %c0_188 = arith.constant 0 : index
    %c0_189 = arith.constant 0 : index
    %209 = vector.load %arg10[%c0_188, %c0_189] : memref<40x1xf32, #tpu.memory_space<vmem>>, vector<40x1xf32>
    %210 = vector.broadcast %209 : vector<40x1xf32> to vector<40x288xf32>
    %211 = arith.addf %208, %210 : vector<40x288xf32>
    %cst_190 = arith.constant 0.000000e+00 : f32
    %212 = vector.broadcast %cst_190 : f32 to vector<40x288xf32>
    %213 = arith.cmpf oge, %211, %212 : vector<40x288xf32>
    %cst_191 = arith.constant 0.00999999977 : f32
    %214 = vector.broadcast %cst_191 : f32 to vector<40x288xf32>
    %215 = arith.mulf %214, %211 : vector<40x288xf32>
    %216 = arith.select %213, %211, %215 : vector<40x288xi1>, vector<40x288xf32>
    %217 = vector.broadcast %6 : vector<1x288xf32> to vector<40x288xf32>
    %218 = arith.mulf %216, %217 : vector<40x288xf32>
    %219 = arith.truncf %218 : vector<40x288xf32> to vector<40x288xbf16>
    %c0_192 = arith.constant 0 : index
    %c32_193 = arith.constant 32 : index
    %c0_194 = arith.constant 0 : index
    %220 = vector.load %arg11[%c0_192, %c32_193, %c0_194] : memref<1x72x288xbf16, #tpu.memory_space<vmem>>, vector<1x40x288xbf16>
    %221 = vector.shape_cast %220 : vector<1x40x288xbf16> to vector<40x288xbf16>
    %222 = vector.shape_cast %219 : vector<40x288xbf16> to vector<1x40x288xbf16>
    tpu.vector_store %arg11[%c0_192, %c32_193, %c0_194], %222 {strides = array<i32>} : memref<1x72x288xbf16, #tpu.memory_space<vmem>>, vector<1x40x288xbf16>,
    return
  }
  func.func @transform_0(%arg0: i32) -> (i32, i32, i32) {
    %c0_i32 = arith.constant 0 : i32
    %c0_i32_0 = arith.constant 0 : i32
    %c0_i32_1 = arith.constant 0 : i32
    return %arg0, %c0_i32, %c0_i32_0 : i32, i32, i32
  }
  func.func @transform_1(%arg0: i32) -> (i32, i32) {
    %c0_i32 = arith.constant 0 : i32
    %c0_i32_0 = arith.constant 0 : i32
    %c0_i32_1 = arith.constant 0 : i32
    return %c0_i32, %c0_i32_0 : i32, i32
  }
  func.func @transform_2(%arg0: i32) -> (i32, i32) {
    %c0_i32 = arith.constant 0 : i32
    %c0_i32_0 = arith.constant 0 : i32
    %c0_i32_1 = arith.constant 0 : i32
    return %c0_i32, %c0_i32_0 : i32, i32
  }
  func.func @transform_3(%arg0: i32) -> (i32, i32) {
    %c0_i32 = arith.constant 0 : i32
    %c0_i32_0 = arith.constant 0 : i32
    %c0_i32_1 = arith.constant 0 : i32
    return %c0_i32, %c0_i32_0 : i32, i32
  }
  func.func @transform_4(%arg0: i32) -> (i32, i32) {
    %c0_i32 = arith.constant 0 : i32
    %c0_i32_0 = arith.constant 0 : i32
    %c0_i32_1 = arith.constant 0 : i32
    return %c0_i32, %c0_i32_0 : i32, i32
  }
  func.func @transform_5(%arg0: i32) -> (i32, i32) {
    %c0_i32 = arith.constant 0 : i32
    %c0_i32_0 = arith.constant 0 : i32
    %c0_i32_1 = arith.constant 0 : i32
    return %c0_i32, %c0_i32_0 : i32, i32
  }
  func.func @transform_6(%arg0: i32) -> (i32, i32) {
    %c0_i32 = arith.constant 0 : i32
    %c0_i32_0 = arith.constant 0 : i32
    %c0_i32_1 = arith.constant 0 : i32
    return %c0_i32, %c0_i32_0 : i32, i32
  }
  func.func @transform_7(%arg0: i32) -> (i32, i32) {
    %c0_i32 = arith.constant 0 : i32
    %c0_i32_0 = arith.constant 0 : i32
    %c0_i32_1 = arith.constant 0 : i32
    return %c0_i32, %c0_i32_0 : i32, i32
  }
  func.func @transform_8(%arg0: i32) -> (i32, i32) {
    %c0_i32 = arith.constant 0 : i32
    %c0_i32_0 = arith.constant 0 : i32
    %c0_i32_1 = arith.constant 0 : i32
    return %c0_i32, %c0_i32_0 : i32, i32
  }
  func.func @transform_9(%arg0: i32) -> (i32, i32) {
    %c0_i32 = arith.constant 0 : i32
    %c0_i32_0 = arith.constant 0 : i32
    %c0_i32_1 = arith.constant 0 : i32
    return %c0_i32, %c0_i32_0 : i32, i32
  }
  func.func @transform_10(%arg0: i32) -> (i32, i32, i32) {
    %c0_i32 = arith.constant 0 : i32
    %c0_i32_0 = arith.constant 0 : i32
    %c0_i32_1 = arith.constant 0 : i32
    return %arg0, %c0_i32, %c0_i32_0 : i32, i32, i32
  }
}

</mosaic_0001>

<llo_original>
// kernel: _lambda_.1
$region0: #{_lambda_.1}
  #allocation0 [shape = 'u32[]', space=smem, size = 0x4, offset = 0x4, fixed_abs, tag = 'smem constant byte address 0x4 - core index']
  #allocation1 [shape = 'u32[144,128]{1,0:T(1,128)}', space=vmem, size = 0x12000, scoped, tag = 'internal scratch']
  #allocation2 [shape = 'bf16[16,360]{1,0:T(16,128)(2,1)}', space=vmem, size = 0x3000, scoped, tag = 'scratch operand']
  #allocation3 [shape = 'bf16[26,360]{1,0:T(8,128)(2,1)}', space=vmem, size = 0x6000, scoped, tag = 'scratch operand']
  #allocation4 [shape = 'bf16[16,360]{1,0:T(16,128)(2,1)}', space=vmem, size = 0x3000, scoped, tag = 'scratch operand']
  #allocation5 [shape = 'bf16[288,288]{1,0:T(16,128)(2,1)}', space=vmem, size = 0x36000, scoped, tag = 'scratch operand']
  %s0 = inlined_call_operand.vmem [shape: bf16[2,32,360], index: 0, kind: input, shape index: {}]
  %s1 = inlined_call_operand.vmem [shape: f32[1,288], index: 1, kind: input, shape index: {}]
  %s2 = inlined_call_operand.vmem [shape: bf16[16,288], index: 2, kind: input, shape index: {}]
  %s3 = inlined_call_operand.vmem [shape: bf16[26,432], index: 3, kind: input, shape index: {}]
  %s4 = inlined_call_operand.vmem [shape: bf16[16,234], index: 4, kind: input, shape index: {}]
  %s5 = inlined_call_operand.vmem [shape: bf16[40,666], index: 5, kind: input, shape index: {}]
  %s6 = inlined_call_operand.vmem [shape: f32[16,1], index: 6, kind: input, shape index: {}]
  %s7 = inlined_call_operand.vmem [shape: f32[26,1], index: 7, kind: input, shape index: {}]
  %s8 = inlined_call_operand.vmem [shape: f32[16,1], index: 8, kind: input, shape index: {}]
  %s9 = inlined_call_operand.vmem [shape: f32[40,1], index: 9, kind: input, shape index: {}]
  %s10 = inlined_call_operand.vmem [shape: bf16[2,72,288], index: 10, kind: output, shape index: {}]
  %s11 = sld [smem:[#allocation0]]
  $region73: #{_lambda_.1} parent=0
    _
  %s13 = ssub.s32 1, %s11
  %s14 = scalar_select 0, %s13, %s11
  loop: start=0, step=1, limit=4
  $region2: #{_lambda_.1} parent=0 // loop_pre_header
    _
  $region3: #{_lambda_.1} parent=0 // loop_header
    %s16 = sphi 0, %s20
    %p17 = scmp.ge.s32.totalorder %s16, 4
    %s26 = sphi 0, %s28
    %s29 = sphi 0, %s26
    %s30 = sphi 0, %s29
    %s46 = sphi 0, %s30
    %s50 = sphi 0, %s50
    %s52 = sphi 0, %s50
    %s53 = sphi 0, %s52
    %s67 = sphi 0, %s53
    %s71 = sphi 0, %s71
    %s73 = sphi 0, %s71
    %s74 = sphi 0, %s73
    %s88 = sphi 0, %s74
    %s92 = sphi 0, %s92
    %s94 = sphi 0, %s92
    %s95 = sphi 0, %s94
    %s109 = sphi 0, %s95
    %s113 = sphi 0, %s113
    %s115 = sphi 0, %s113
    %s116 = sphi 0, %s115
    %s130 = sphi 0, %s116
    %s134 = sphi 0, %s134
    %s136 = sphi 0, %s134
    %s137 = sphi 0, %s136
    %s151 = sphi 0, %s137
    %s155 = sphi 0, %s155
    %s157 = sphi 0, %s155
    %s158 = sphi 0, %s157
    %s172 = sphi 0, %s158
    %s176 = sphi 0, %s176
    %s178 = sphi 0, %s176
    %s179 = sphi 0, %s178
    %s193 = sphi 0, %s179
    %s197 = sphi 0, %s197
    %s199 = sphi 0, %s197
    %s200 = sphi 0, %s199
    %s214 = sphi 0, %s200
    %s218 = sphi 0, %s218
    %s220 = sphi 0, %s218
    %s221 = sphi 0, %s220
    %s235 = sphi 0, %s221
    %s241 = sphi 0, %s243
    %s244 = sphi 0, %s241
    %s245 = sphi 0, %s244
    %s261 = sphi 0, %s245
  $region4: #{_lambda_.1} parent=0 // loop_header_branch
    %19 = sbr.rel (%p17) target = $region8
  $region5: #{_lambda_.1} parent=0 // loop_body
    %s21 = ssub.s32 %s16, 1
    %s22 = ssub.s32 %s16, 2
    %s23 = sadd.s32 %s16, 1
    %s24 = ssub.s32 %s16, %s23
    %p25 = scmp.eq.s32.totalorder %s24, 0
    %s27 = sadd.s32 %s26, 1
    %s28 = scalar_select %p25, %s26, %s27
    %p31 = pneg %p25
    %p32 = scmp.eq.s32.totalorder %s16, 1
    %p33 = por %p31, %p32
    %p34 = scmp.ne.s32.totalorder %s26, %s29
    %p35 = scmp.eq.s32.totalorder %s16, 0
    %p36 = por %p34, %p35
    %p37 = scmp.ne.s32.totalorder %s26, %s29
    %p38 = scmp.eq.s32.totalorder %s21, 1
    %p39 = por %p37, %p38
    %p40 = scmp.ne.s32.totalorder %s29, %s30
    %p41 = scmp.eq.s32.totalorder %s21, 0
    %p42 = por %p40, %p41
    %p43 = scmp.ne.s32.totalorder %s29, %s30
    %p44 = scmp.eq.s32.totalorder %s22, 1
    %p45 = por %p43, %p44
    %p47 = scmp.ne.s32.totalorder %s30, %s46
    %p48 = scmp.eq.s32.totalorder %s22, 0
    %p49 = por %p47, %p48
    %s51 = sadd.s32 %s50, 1
    %p54 = scmp.eq.s32.totalorder %s16, 1
    %p55 = scmp.ne.s32.totalorder %s50, %s52
    %p56 = scmp.eq.s32.totalorder %s16, 0
    %p57 = por %p55, %p56
    %p58 = scmp.ne.s32.totalorder %s50, %s52
    %p59 = scmp.eq.s32.totalorder %s21, 1
    %p60 = por %p58, %p59
    %p61 = scmp.ne.s32.totalorder %s52, %s53
    %p62 = scmp.eq.s32.totalorder %s21, 0
    %p63 = por %p61, %p62
    %p64 = scmp.ne.s32.totalorder %s52, %s53
    %p65 = scmp.eq.s32.totalorder %s22, 1
    %p66 = por %p64, %p65
    %p68 = scmp.ne.s32.totalorder %s53, %s67
    %p69 = scmp.eq.s32.totalorder %s22, 0
    %p70 = por %p68, %p69
    %s72 = sadd.s32 %s71, 1
    %p75 = scmp.eq.s32.totalorder %s16, 1
    %p76 = scmp.ne.s32.totalorder %s71, %s73
    %p77 = scmp.eq.s32.totalorder %s16, 0
    %p78 = por %p76, %p77
    %p79 = scmp.ne.s32.totalorder %s71, %s73
    %p80 = scmp.eq.s32.totalorder %s21, 1
    %p81 = por %p79, %p80
    %p82 = scmp.ne.s32.totalorder %s73, %s74
    %p83 = scmp.eq.s32.totalorder %s21, 0
    %p84 = por %p82, %p83
    %p85 = scmp.ne.s32.totalorder %s73, %s74
    %p86 = scmp.eq.s32.totalorder %s22, 1
    %p87 = por %p85, %p86
    %p89 = scmp.ne.s32.totalorder %s74, %s88
    %p90 = scmp.eq.s32.totalorder %s22, 0
    %p91 = por %p89, %p90
    %s93 = sadd.s32 %s92, 1
    %p96 = scmp.eq.s32.totalorder %s16, 1
    %p97 = scmp.ne.s32.totalorder %s92, %s94
    %p98 = scmp.eq.s32.totalorder %s16, 0
    %p99 = por %p97, %p98
    %p100 = scmp.ne.s32.totalorder %s92, %s94
    %p101 = scmp.eq.s32.totalorder %s21, 1
    %p102 = por %p100, %p101
    %p103 = scmp.ne.s32.totalorder %s94, %s95
    %p104 = scmp.eq.s32.totalorder %s21, 0
    %p105 = por %p103, %p104
    %p106 = scmp.ne.s32.totalorder %s94, %s95
    %p107 = scmp.eq.s32.totalorder %s22, 1
    %p108 = por %p106, %p107
    %p110 = scmp.ne.s32.totalorder %s95, %s109
    %p111 = scmp.eq.s32.totalorder %s22, 0
    %p112 = por %p110, %p111
    %s114 = sadd.s32 %s113, 1
    %p117 = scmp.eq.s32.totalorder %s16, 1
    %p118 = scmp.ne.s32.totalorder %s113, %s115
    %p119 = scmp.eq.s32.totalorder %s16, 0
    %p120 = por %p118, %p119
    %p121 = scmp.ne.s32.totalorder %s113, %s115
    %p122 = scmp.eq.s32.totalorder %s21, 1
    %p123 = por %p121, %p122
    %p124 = scmp.ne.s32.totalorder %s115, %s116
    %p125 = scmp.eq.s32.totalorder %s21, 0
    %p126 = por %p124, %p125
    %p127 = scmp.ne.s32.totalorder %s115, %s116
    %p128 = scmp.eq.s32.totalorder %s22, 1
    %p129 = por %p127, %p128
    %p131 = scmp.ne.s32.totalorder %s116, %s130
    %p132 = scmp.eq.s32.totalorder %s22, 0
    %p133 = por %p131, %p132
    %s135 = sadd.s32 %s134, 1
    %p138 = scmp.eq.s32.totalorder %s16, 1
    %p139 = scmp.ne.s32.totalorder %s134, %s136
    %p140 = scmp.eq.s32.totalorder %s16, 0
    %p141 = por %p139, %p140
    %p142 = scmp.ne.s32.totalorder %s134, %s136
    %p143 = scmp.eq.s32.totalorder %s21, 1
    %p144 = por %p142, %p143
    %p145 = scmp.ne.s32.totalorder %s136, %s137
    %p146 = scmp.eq.s32.totalorder %s21, 0
    %p147 = por %p145, %p146
    %p148 = scmp.ne.s32.totalorder %s136, %s137
    %p149 = scmp.eq.s32.totalorder %s22, 1
    %p150 = por %p148, %p149
    %p152 = scmp.ne.s32.totalorder %s137, %s151
    %p153 = scmp.eq.s32.totalorder %s22, 0
    %p154 = por %p152, %p153
    %s156 = sadd.s32 %s155, 1
    %p159 = scmp.eq.s32.totalorder %s16, 1
    %p160 = scmp.ne.s32.totalorder %s155, %s157
    %p161 = scmp.eq.s32.totalorder %s16, 0
    %p162 = por %p160, %p161
    %p163 = scmp.ne.s32.totalorder %s155, %s157
    %p164 = scmp.eq.s32.totalorder %s21, 1
    %p165 = por %p163, %p164
    %p166 = scmp.ne.s32.totalorder %s157, %s158
    %p167 = scmp.eq.s32.totalorder %s21, 0
    %p168 = por %p166, %p167
    %p169 = scmp.ne.s32.totalorder %s157, %s158
    %p170 = scmp.eq.s32.totalorder %s22, 1
    %p171 = por %p169, %p170
    %p173 = scmp.ne.s32.totalorder %s158, %s172
    %p174 = scmp.eq.s32.totalorder %s22, 0
    %p175 = por %p173, %p174
    %s177 = sadd.s32 %s176, 1
    %p180 = scmp.eq.s32.totalorder %s16, 1
    %p181 = scmp.ne.s32.totalorder %s176, %s178
    %p182 = scmp.eq.s32.totalorder %s16, 0
    %p183 = por %p181, %p182
    %p184 = scmp.ne.s32.totalorder %s176, %s178
    %p185 = scmp.eq.s32.totalorder %s21, 1
    %p186 = por %p184, %p185
    %p187 = scmp.ne.s32.totalorder %s178, %s179
    %p188 = scmp.eq.s32.totalorder %s21, 0
    %p189 = por %p187, %p188
    %p190 = scmp.ne.s32.totalorder %s178, %s179
    %p191 = scmp.eq.s32.totalorder %s22, 1
    %p192 = por %p190, %p191
    %p194 = scmp.ne.s32.totalorder %s179, %s193
    %p195 = scmp.eq.s32.totalorder %s22, 0
    %p196 = por %p194, %p195
    %s198 = sadd.s32 %s197, 1
    %p201 = scmp.eq.s32.totalorder %s16, 1
    %p202 = scmp.ne.s32.totalorder %s197, %s199
    %p203 = scmp.eq.s32.totalorder %s16, 0
    %p204 = por %p202, %p203
    %p205 = scmp.ne.s32.totalorder %s197, %s199
    %p206 = scmp.eq.s32.totalorder %s21, 1
    %p207 = por %p205, %p206
    %p208 = scmp.ne.s32.totalorder %s199, %s200
    %p209 = scmp.eq.s32.totalorder %s21, 0
    %p210 = por %p208, %p209
    %p211 = scmp.ne.s32.totalorder %s199, %s200
    %p212 = scmp.eq.s32.totalorder %s22, 1
    %p213 = por %p211, %p212
    %p215 = scmp.ne.s32.totalorder %s200, %s214
    %p216 = scmp.eq.s32.totalorder %s22, 0
    %p217 = por %p215, %p216
    %s219 = sadd.s32 %s218, 1
    %p222 = scmp.eq.s32.totalorder %s16, 1
    %p223 = scmp.ne.s32.totalorder %s218, %s220
    %p224 = scmp.eq.s32.totalorder %s16, 0
    %p225 = por %p223, %p224
    %p226 = scmp.ne.s32.totalorder %s218, %s220
    %p227 = scmp.eq.s32.totalorder %s21, 1
    %p228 = por %p226, %p227
    %p229 = scmp.ne.s32.totalorder %s220, %s221
    %p230 = scmp.eq.s32.totalorder %s21, 0
    %p231 = por %p229, %p230
    %p232 = scmp.ne.s32.totalorder %s220, %s221
    %p233 = scmp.eq.s32.totalorder %s22, 1
    %p234 = por %p232, %p233
    %p236 = scmp.ne.s32.totalorder %s221, %s235
    %p237 = scmp.eq.s32.totalorder %s22, 0
    %p238 = por %p236, %p237
    %s239 = ssub.s32 %s16, %s23
    %p240 = scmp.eq.s32.totalorder %s239, 0
    %s242 = sadd.s32 %s241, 1
    %s243 = scalar_select %p240, %s241, %s242
    %p246 = pneg %p240
    %p247 = scmp.eq.s32.totalorder %s16, 1
    %p248 = por %p246, %p247
    %p249 = scmp.ne.s32.totalorder %s241, %s244
    %p250 = scmp.eq.s32.totalorder %s16, 0
    %p251 = por %p249, %p250
    %p252 = scmp.ne.s32.totalorder %s241, %s244
    %p253 = scmp.eq.s32.totalorder %s21, 1
    %p254 = por %p252, %p253
    %p255 = scmp.ne.s32.totalorder %s244, %s245
    %p256 = scmp.eq.s32.totalorder %s21, 0
    %p257 = por %p255, %p256
    %p258 = scmp.ne.s32.totalorder %s244, %s245
    %p259 = scmp.eq.s32.totalorder %s22, 1
    %p260 = por %p258, %p259
    %p262 = scmp.ne.s32.totalorder %s245, %s261
    %p263 = scmp.eq.s32.totalorder %s22, 0
    %p264 = por %p262, %p263
    %p265 = scmp.le.s32.totalorder 1, %s16
    %p266 = scmp.lt.s32.totalorder %s16, 3
    %p267 = pnand %p265, %p266
    %p268 = pneg %p267
    // Predicated region
    $region9: #{_lambda_.1} parent=5 // pred_check
      _
    $region10: #{_lambda_.1} parent=5 // pred_check_branch
      %270 = sbr.rel (%p267) target = $region12
    $region11: #{_lambda_.1} parent=5 // pred_region
      %s271 = ssub.s32 %s16, 1
      // Predicated region
      $region13: #{_lambda_.1} parent=11 // pred_check
        %p272 = pneg %p63
      $region14: #{_lambda_.1} parent=11 // pred_check_branch
        %274 = sbr.rel (%p272) target = $region16
      $region15: #{_lambda_.1} parent=11 // pred_region
        _
      $region16: #{_lambda_.1} parent=11 // pred_fallthru
        _
      // Predicated region
      $region17: #{_lambda_.1} parent=11 // pred_check
        %p275 = pneg %p84
      $region18: #{_lambda_.1} parent=11 // pred_check_branch
        %277 = sbr.rel (%p275) target = $region20
      $region19: #{_lambda_.1} parent=11 // pred_region
        _
      $region20: #{_lambda_.1} parent=11 // pred_fallthru
        _
      // Predicated region
      $region21: #{_lambda_.1} parent=11 // pred_check
        %p278 = pneg %p105
      $region22: #{_lambda_.1} parent=11 // pred_check_branch
        %280 = sbr.rel (%p278) target = $region24
      $region23: #{_lambda_.1} parent=11 // pred_region
        _
      $region24: #{_lambda_.1} parent=11 // pred_fallthru
        _
      // Predicated region
      $region25: #{_lambda_.1} parent=11 // pred_check
        %p281 = pneg %p126
      $region26: #{_lambda_.1} parent=11 // pred_check_branch
        %283 = sbr.rel (%p281) target = $region28
      $region27: #{_lambda_.1} parent=11 // pred_region
        _
      $region28: #{_lambda_.1} parent=11 // pred_fallthru
        _
      // Predicated region
      $region29: #{_lambda_.1} parent=11 // pred_check
        %p284 = pneg %p147
      $region30: #{_lambda_.1} parent=11 // pred_check_branch
        %286 = sbr.rel (%p284) target = $region32
      $region31: #{_lambda_.1} parent=11 // pred_region
        _
      $region32: #{_lambda_.1} parent=11 // pred_fallthru
        _
      // Predicated region
      $region33: #{_lambda_.1} parent=11 // pred_check
        %p287 = pneg %p168
      $region34: #{_lambda_.1} parent=11 // pred_check_branch
        %289 = sbr.rel (%p287) target = $region36
      $region35: #{_lambda_.1} parent=11 // pred_region
        _
      $region36: #{_lambda_.1} parent=11 // pred_fallthru
        _
      // Predicated region
      $region37: #{_lambda_.1} parent=11 // pred_check
        %p290 = pneg %p189
      $region38: #{_lambda_.1} parent=11 // pred_check_branch
        %292 = sbr.rel (%p290) target = $region40
      $region39: #{_lambda_.1} parent=11 // pred_region
        _
      $region40: #{_lambda_.1} parent=11 // pred_fallthru
        _
      // Predicated region
      $region41: #{_lambda_.1} parent=11 // pred_check
        %p293 = pneg %p210
      $region42: #{_lambda_.1} parent=11 // pred_check_branch
        %295 = sbr.rel (%p293) target = $region44
      $region43: #{_lambda_.1} parent=11 // pred_region
        _
      $region44: #{_lambda_.1} parent=11 // pred_fallthru
        _
      // Predicated region
      $region45: #{_lambda_.1} parent=11 // pred_check
        %p296 = pneg %p231
      $region46: #{_lambda_.1} parent=11 // pred_check_branch
        %298 = sbr.rel (%p296) target = $region48
      $region47: #{_lambda_.1} parent=11 // pred_region
        _
      $region48: #{_lambda_.1} parent=11 // pred_fallthru
        _
    $region12: #{_lambda_.1} parent=5 // pred_fallthru
      _
    %p299 = scmp.lt.s32.totalorder %s16, 2
    // Predicated region
    $region49: #{_lambda_.1} parent=5 // pred_check
      %p300 = pneg %p299
    $region50: #{_lambda_.1} parent=5 // pred_check_branch
      %302 = sbr.rel (%p300) target = $region52
    $region51: #{_lambda_.1} parent=5 // pred_region
      // Predicated region
      $region53: #{_lambda_.1} parent=51 // pred_check
        %p303 = pneg %p36
      $region54: #{_lambda_.1} parent=51 // pred_check_branch
        %305 = sbr.rel (%p303) target = $region56
      $region55: #{_lambda_.1} parent=51 // pred_region
        %p306 = scmp.lt.s32.totalorder %s16, 1
        %s307 = scalar_select %p306, %s16, 1
        %s308 = smul.addr %s307, 12
        %s309 = smul.addr %s308, 4
        %s310 = scalar_lea.vmem %s0, %s309
      $region56: #{_lambda_.1} parent=51 // pred_fallthru
        _
    $region52: #{_lambda_.1} parent=5 // pred_fallthru
      _
    %p311 = scmp.le.s32.totalorder 1, %s16
    %p312 = scmp.lt.s32.totalorder %s16, 3
    %p313 = pnand %p311, %p312
    %p314 = pneg %p313
    // Predicated region
    $region57: #{_lambda_.1} parent=5 // pred_check
      _
    $region58: #{_lambda_.1} parent=5 // pred_check_branch
      %316 = sbr.rel (%p313) target = $region60
    $region59: #{_lambda_.1} parent=5 // pred_region
      %s317 = ssub.s32 %s16, 1
      %p318 = scmp.lt.s32.totalorder %s21, 1
      %s319 = scalar_select %p318, %s21, 1
      %s320 = smul.addr %s319, 12
      %s321 = smul.addr %s320, 4
      %s322 = scalar_lea.vmem %s0, %s321
      %p323 = pneg %p42
      %p324 = pneg %p39
      %p325 = pneg %p63
      %p326 = pneg %p60
      %p327 = pneg %p84
      %p328 = pneg %p81
      %p329 = pneg %p105
      %p330 = pneg %p102
      %p331 = pneg %p126
      %p332 = pneg %p123
      %p333 = pneg %p147
      %p334 = pneg %p144
      %p335 = pneg %p168
      %p336 = pneg %p165
      %p337 = pneg %p189
      %p338 = pneg %p186
      %p339 = pneg %p210
      %p340 = pneg %p207
      %p341 = pneg %p231
      %p342 = pneg %p228
      %p343 = pneg %p257
      %p344 = pneg %p254
      %p345 = scmp.lt.s32.totalorder %s21, 1
      %s346 = scalar_select %p345, %s21, 1
      %s347 = smul.addr %s346, 27
      %s348 = smul.addr %s347, 4
      %s349 = scalar_lea.vmem %s10, %s348
      %p350 = scmp.lt.s32.totalorder %s21, 1
      %s351 = scalar_select %p350, %s21, 1
      %s352 = smul.addr %s351, 12
      %s353 = smul.addr %s352, 4
      %s354 = scalar_lea.vmem %s0, %s353
      %p355 = scmp.lt.s32.totalorder %s21, 1
      %s356 = scalar_select %p355, %s21, 1
      %s357 = smul.addr %s356, 27
      %s358 = smul.addr %s357, 4
      %s359 = scalar_lea.vmem %s10, %s358
      %361 = vst [vmem:[#allocation2] sm:$0xff] 0
      %362 = vst [vmem:[#allocation2 + $0x8] sm:$0xff] 0
      %vm363 = vcmask 850944
      %364 = vst.msk [vmem:[#allocation2 + $0x10] sm:$0xff] %vm363, 0
      %365 = vst [vmem:[#allocation3] sm:$0xff] 0
      %vm366 = vcmask 846848
      %367 = vst.msk [vmem:[#allocation3 + $0x8] sm:$0xf] %vm366, 0
      %368 = vst [vmem:[#allocation3 + $0xc] sm:$0xff] 0
      %369 = vst.msk [vmem:[#allocation3 + $0x14] sm:$0xf] %vm366, 0
      %370 = vst [vmem:[#allocation3 + $0x18] sm:$0xff] 0
      %371 = vst.msk [vmem:[#allocation3 + $0x20] sm:$0xf] %vm366, 0
      %372 = vst [vmem:[#allocation3 + $0x24] sm:$0x11] 0
      %vm373 = vcmask 843776
      %374 = vst.msk [vmem:[#allocation3 + $0x2c] sm:$0x1] %vm373, 0
      %375 = vst [vmem:[#allocation4] sm:$0xff] 0
      %376 = vst [vmem:[#allocation4 + $0x8] sm:$0xff] 0
      %377 = vst.msk [vmem:[#allocation4 + $0x10] sm:$0xff] %vm363, 0
      %v378 = vld [vmem:[%s1] sm:$0x7]
      %v379 = vld [vmem:[%s354] sm:$0xff]
      %v380 = vld [vmem:[%s354 + $0x8] sm:$0xf]
      %v381 = vld [vmem:[%s354 + $0xc] sm:$0xff]
      %v382 = vld [vmem:[%s354 + $0x14] sm:$0xf]
      %v383 = vld [vmem:[%s354 + $0x18] sm:$0xff]
      %v384 = vld [vmem:[%s354 + $0x20] sm:$0xf]
      %v385 = vld [vmem:[%s354 + $0x24] sm:$0xff]
      %v386 = vld [vmem:[%s354 + $0x2c] sm:$0xf]
      %v395 = vunpack.c.l.b16 %v379
      %v396 = vunpack.c.h.b16 %v379
      %v397 = vunpack.c.l.b16 %v380
      %v398 = vunpack.c.l.b16 %v381
      %v399 = vunpack.c.h.b16 %v381
      %v400 = vunpack.c.l.b16 %v382
      %v401 = vunpack.c.l.b16 %v383
      %v402 = vunpack.c.h.b16 %v383
      %v403 = vunpack.c.l.b16 %v384
      %v404 = vunpack.c.l.b16 %v385
      %v405 = vunpack.c.h.b16 %v385
      %v406 = vunpack.c.l.b16 %v386
      %v407 = vpack.c.b16 %v398, %v395
      %v408 = vpack.c.b16 %v399, %v396
      %v409 = vpack.c.b16 %v400, %v397
      %v410 = vpack.c.b16 %v404, %v401
      %v411 = vpack.c.b16 %v405, %v402
      %v412 = vpack.c.b16 %v406, %v403
      %413 = vrot.lane.b32.xlu0 %v407, 111
      %v414 = vpop.permute.xlu0 %413
      %415 = vrot.lane.b32.xlu0 %v408, 111
      %v416 = vpop.permute.xlu0 %415
      %417 = vrot.lane.b32.xlu0 %v409, 111
      %v418 = vpop.permute.xlu0 %417
      %419 = vrot.lane.b32.xlu0 %v410, 111
      %v420 = vpop.permute.xlu0 %419
      %421 = vrot.lane.b32.xlu0 %v411, 111
      %v422 = vpop.permute.xlu0 %421
      %423 = vrot.lane.b32.xlu0 %v412, 111
      %v424 = vpop.permute.xlu0 %423
      %vm425 = vcmask 908288
      %v426 = vsel %vm425, %v414, %v416
      %v427 = vsel %vm425, %v416, %v418
      %v428 = vsel %vm425, %v420, %v422
      %v429 = vsel %vm425, %v422, %v424
      %436 = vst [vmem:[#allocation5] sm:$0xff] %v426
      %437 = vst [vmem:[#allocation5 + $0x8] sm:$0xff] %v427
      %vm438 = vcmask 261120
      %439 = vst.msk [vmem:[#allocation5 + $0x10] sm:$0xff] %vm438, %v418
      %440 = vst [vmem:[#allocation5 + $0x18] sm:$0xff] %v428
      %441 = vst [vmem:[#allocation5 + $0x20] sm:$0xff] %v429
      %442 = vst.msk [vmem:[#allocation5 + $0x28] sm:$0xff] %vm438, %v424
      %443 = vrot.lane.b32.xlu0 %v407, 110
      %v444 = vpop.permute.xlu0 %443
      %445 = vrot.lane.b32.xlu0 %v408, 110
      %v446 = vpop.permute.xlu0 %445
      %447 = vrot.lane.b32.xlu0 %v409, 110
      %v448 = vpop.permute.xlu0 %447
      %449 = vrot.lane.b32.xlu0 %v410, 110
      %v450 = vpop.permute.xlu0 %449
      %451 = vrot.lane.b32.xlu0 %v411, 110
      %v452 = vpop.permute.xlu0 %451
      %453 = vrot.lane.b32.xlu0 %v412, 110
      %v454 = vpop.permute.xlu0 %453
      %vm455 = vcmask 900096
      %v456 = vsel %vm455, %v444, %v446
      %v457 = vsel %vm455, %v446, %v448
      %v458 = vsel %vm455, %v450, %v452
      %v459 = vsel %vm455, %v452, %v454
      %466 = vst [vmem:[#allocation5 + $0x30] sm:$0xff] %v456
      %467 = vst [vmem:[#allocation5 + $0x38] sm:$0xff] %v457
      %468 = vst.msk [vmem:[#allocation5 + $0x40] sm:$0xff] %vm438, %v448
      %469 = vst [vmem:[#allocation5 + $0x48] sm:$0xff] %v458
      %470 = vst [vmem:[#allocation5 + $0x50] sm:$0xff] %v459
      %471 = vst.msk [vmem:[#allocation5 + $0x58] sm:$0xff] %vm438, %v454
      %472 = vrot.lane.b32.xlu0 %v407, 109
      %v473 = vpop.permute.xlu0 %472
      %474 = vrot.lane.b32.xlu0 %v408, 109
      %v475 = vpop.permute.xlu0 %474
      %476 = vrot.lane.b32.xlu0 %v409, 109
      %v477 = vpop.permute.xlu0 %476
      %478 = vrot.lane.b32.xlu0 %v410, 109
      %v479 = vpop.permute.xlu0 %478
      %480 = vrot.lane.b32.xlu0 %v411, 109
      %v481 = vpop.permute.xlu0 %480
      %482 = vrot.lane.b32.xlu0 %v412, 109
      %v483 = vpop.permute.xlu0 %482
      %vm484 = vcmask 891904
      %v485 = vsel %vm484, %v473, %v475
      %v486 = vsel %vm484, %v475, %v477
      %v487 = vsel %vm484, %v479, %v481
      %v488 = vsel %vm484, %v481, %v483
      %495 = vst [vmem:[#allocation5 + $0x60] sm:$0xff] %v485
      %496 = vst [vmem:[#allocation5 + $0x68] sm:$0xff] %v486
      %497 = vst.msk [vmem:[#allocation5 + $0x70] sm:$0xff] %vm438, %v477
      %498 = vst [vmem:[#allocation5 + $0x78] sm:$0xff] %v487
      %499 = vst [vmem:[#allocation5 + $0x80] sm:$0xff] %v488
      %500 = vst.msk [vmem:[#allocation5 + $0x88] sm:$0xff] %vm438, %v483
      %501 = vrot.lane.b32.xlu0 %v407, 93
      %v502 = vpop.permute.xlu0 %501
      %503 = vrot.lane.b32.xlu0 %v408, 93
      %v504 = vpop.permute.xlu0 %503
      %505 = vrot.lane.b32.xlu0 %v409, 93
      %v506 = vpop.permute.xlu0 %505
      %507 = vrot.lane.b32.xlu0 %v410, 93
      %v508 = vpop.permute.xlu0 %507
      %509 = vrot.lane.b32.xlu0 %v411, 93
      %v510 = vpop.permute.xlu0 %509
      %511 = vrot.lane.b32.xlu0 %v412, 93
      %v512 = vpop.permute.xlu0 %511
      %vm513 = vcmask 760832
      %v514 = vsel %vm513, %v502, %v504
      %v515 = vsel %vm513, %v504, %v506
      %v516 = vsel %vm513, %v508, %v510
      %v517 = vsel %vm513, %v510, %v512
      %524 = vst [vmem:[#allocation5 + $0x90] sm:$0xff] %v514
      %525 = vst [vmem:[#allocation5 + $0x98] sm:$0xff] %v515
      %526 = vst.msk [vmem:[#allocation5 + $0xa0] sm:$0xff] %vm438, %v506
      %527 = vst [vmem:[#allocation5 + $0xa8] sm:$0xff] %v516
      %528 = vst [vmem:[#allocation5 + $0xb0] sm:$0xff] %v517
      %529 = vst.msk [vmem:[#allocation5 + $0xb8] sm:$0xff] %vm438, %v512
      %530 = vrot.lane.b32.xlu0 %v407, 92
      %v531 = vpop.permute.xlu0 %530
      %532 = vrot.lane.b32.xlu0 %v408, 92
      %v533 = vpop.permute.xlu0 %532
      %534 = vrot.lane.b32.xlu0 %v409, 92
      %v535 = vpop.permute.xlu0 %534
      %536 = vrot.lane.b32.xlu0 %v410, 92
      %v537 = vpop.permute.xlu0 %536
      %538 = vrot.lane.b32.xlu0 %v411, 92
      %v539 = vpop.permute.xlu0 %538
      %540 = vrot.lane.b32.xlu0 %v412, 92
      %v541 = vpop.permute.xlu0 %540
      %vm542 = vcmask 752640
      %v543 = vsel %vm542, %v531, %v533
      %v544 = vsel %vm542, %v533, %v535
      %v545 = vsel %vm542, %v537, %v539
      %v546 = vsel %vm542, %v539, %v541
      %553 = vst [vmem:[#allocation5 + $0xc0] sm:$0xff] %v543
      %554 = vst [vmem:[#allocation5 + $0xc8] sm:$0xff] %v544
      %555 = vst.msk [vmem:[#allocation5 + $0xd0] sm:$0xff] %vm438, %v535
      %556 = vst [vmem:[#allocation5 + $0xd8] sm:$0xff] %v545
      %557 = vst [vmem:[#allocation5 + $0xe0] sm:$0xff] %v546
      %558 = vst.msk [vmem:[#allocation5 + $0xe8] sm:$0xff] %vm438, %v541
      %559 = vrot.lane.b32.xlu0 %v407, 91
      %v560 = vpop.permute.xlu0 %559
      %561 = vrot.lane.b32.xlu0 %v408, 91
      %v562 = vpop.permute.xlu0 %561
      %563 = vrot.lane.b32.xlu0 %v409, 91
      %v564 = vpop.permute.xlu0 %563
      %565 = vrot.lane.b32.xlu0 %v410, 91
      %v566 = vpop.permute.xlu0 %565
      %567 = vrot.lane.b32.xlu0 %v411, 91
      %v568 = vpop.permute.xlu0 %567
      %569 = vrot.lane.b32.xlu0 %v412, 91
      %v570 = vpop.permute.xlu0 %569
      %vm571 = vcmask 744448
      %v572 = vsel %vm571, %v560, %v562
      %v573 = vsel %vm571, %v562, %v564
      %v574 = vsel %vm571, %v566, %v568
      %v575 = vsel %vm571, %v568, %v570
      %582 = vst [vmem:[#allocation5 + $0xf0] sm:$0xff] %v572
      %583 = vst [vmem:[#allocation5 + $0xf8] sm:$0xff] %v573
      %584 = vst.msk [vmem:[#allocation5 + $0x100] sm:$0xff] %vm438, %v564
      %585 = vst [vmem:[#allocation5 + $0x108] sm:$0xff] %v574
      %586 = vst [vmem:[#allocation5 + $0x110] sm:$0xff] %v575
      %587 = vst.msk [vmem:[#allocation5 + $0x118] sm:$0xff] %vm438, %v570
      %588 = vrot.lane.b32.xlu0 %v407, 75
      %v589 = vpop.permute.xlu0 %588
      %590 = vrot.lane.b32.xlu0 %v408, 75
      %v591 = vpop.permute.xlu0 %590
      %592 = vrot.lane.b32.xlu0 %v409, 75
      %v593 = vpop.permute.xlu0 %592
      %594 = vrot.lane.b32.xlu0 %v410, 75
      %v595 = vpop.permute.xlu0 %594
      %596 = vrot.lane.b32.xlu0 %v411, 75
      %v597 = vpop.permute.xlu0 %596
      %598 = vrot.lane.b32.xlu0 %v412, 75
      %v599 = vpop.permute.xlu0 %598
      %vm600 = vcmask 613376
      %v601 = vsel %vm600, %v589, %v591
      %v602 = vsel %vm600, %v591, %v593
      %v603 = vsel %vm600, %v595, %v597
      %v604 = vsel %vm600, %v597, %v599
      %611 = vst [vmem:[#allocation5 + $0x120] sm:$0xff] %v601
      %612 = vst [vmem:[#allocation5 + $0x128] sm:$0xff] %v602
      %613 = vst.msk [vmem:[#allocation5 + $0x130] sm:$0xff] %vm438, %v593
      %614 = vst [vmem:[#allocation5 + $0x138] sm:$0xff] %v603
      %615 = vst [vmem:[#allocation5 + $0x140] sm:$0xff] %v604
      %616 = vst.msk [vmem:[#allocation5 + $0x148] sm:$0xff] %vm438, %v599
      %617 = vrot.lane.b32.xlu0 %v407, 74
      %v618 = vpop.permute.xlu0 %617
      %619 = vrot.lane.b32.xlu0 %v408, 74
      %v620 = vpop.permute.xlu0 %619
      %621 = vrot.lane.b32.xlu0 %v409, 74
      %v622 = vpop.permute.xlu0 %621
      %623 = vrot.lane.b32.xlu0 %v410, 74
      %v624 = vpop.permute.xlu0 %623
      %625 = vrot.lane.b32.xlu0 %v411, 74
      %v626 = vpop.permute.xlu0 %625
      %627 = vrot.lane.b32.xlu0 %v412, 74
      %v628 = vpop.permute.xlu0 %627
      %vm629 = vcmask 605184
      %v630 = vsel %vm629, %v618, %v620
      %v631 = vsel %vm629, %v620, %v622
      %v632 = vsel %vm629, %v624, %v626
      %v633 = vsel %vm629, %v626, %v628
      %640 = vst [vmem:[#allocation5 + $0x150] sm:$0xff] %v630
      %641 = vst [vmem:[#allocation5 + $0x158] sm:$0xff] %v631
      %642 = vst.msk [vmem:[#allocation5 + $0x160] sm:$0xff] %vm438, %v622
      %643 = vst [vmem:[#allocation5 + $0x168] sm:$0xff] %v632
      %644 = vst [vmem:[#allocation5 + $0x170] sm:$0xff] %v633
      %645 = vst.msk [vmem:[#allocation5 + $0x178] sm:$0xff] %vm438, %v628
      %646 = vrot.lane.b32.xlu0 %v407, 73
      %v647 = vpop.permute.xlu0 %646
      %648 = vrot.lane.b32.xlu0 %v408, 73
      %v649 = vpop.permute.xlu0 %648
      %650 = vrot.lane.b32.xlu0 %v409, 73
      %v651 = vpop.permute.xlu0 %650
      %652 = vrot.lane.b32.xlu0 %v410, 73
      %v653 = vpop.permute.xlu0 %652
      %654 = vrot.lane.b32.xlu0 %v411, 73
      %v655 = vpop.permute.xlu0 %654
      %656 = vrot.lane.b32.xlu0 %v412, 73
      %v657 = vpop.permute.xlu0 %656
      %vm658 = vcmask 596992
      %v659 = vsel %vm658, %v647, %v649
      %v660 = vsel %vm658, %v649, %v651
      %v661 = vsel %vm658, %v653, %v655
      %v662 = vsel %vm658, %v655, %v657
      %669 = vst [vmem:[#allocation5 + $0x180] sm:$0xff] %v659
      %670 = vst [vmem:[#allocation5 + $0x188] sm:$0xff] %v660
      %671 = vst.msk [vmem:[#allocation5 + $0x190] sm:$0xff] %vm438, %v651
      %672 = vst [vmem:[#allocation5 + $0x198] sm:$0xff] %v661
      %673 = vst [vmem:[#allocation5 + $0x1a0] sm:$0xff] %v662
      %674 = vst.msk [vmem:[#allocation5 + $0x1a8] sm:$0xff] %vm438, %v657
      %v675 = vld [vmem:[%s2] sm:$0xff]
      %v676 = vld [vmem:[%s2 + $0x8] sm:$0xf]
      %v677 = vld [vmem:[%s2 + $0xc] sm:$0xff]
      %v678 = vld [vmem:[%s2 + $0x14] sm:$0xf]
      %v679 = vld [vmem:[#allocation5] sm:$0xff]
      %v680 = vld [vmem:[#allocation5 + $0x8] sm:$0xff]
      %v681 = vld [vmem:[#allocation5 + $0x10] sm:$0xff]
      %v682 = vld [vmem:[#allocation5 + $0x18] sm:$0xff]
      %v683 = vld [vmem:[#allocation5 + $0x20] sm:$0xff]
      %v684 = vld [vmem:[#allocation5 + $0x28] sm:$0xff]
      %v685 = vld [vmem:[#allocation5 + $0x30] sm:$0xff]
      %v686 = vld [vmem:[#allocation5 + $0x38] sm:$0xff]
      %v687 = vld [vmem:[#allocation5 + $0x40] sm:$0xff]
      %v688 = vld [vmem:[#allocation5 + $0x48] sm:$0xff]
      %v689 = vld [vmem:[#allocation5 + $0x50] sm:$0xff]
      %v690 = vld [vmem:[#allocation5 + $0x58] sm:$0xff]
      %v691 = vld [vmem:[#allocation5 + $0x60] sm:$0xff]
      %v692 = vld [vmem:[#allocation5 + $0x68] sm:$0xff]
      %v693 = vld [vmem:[#allocation5 + $0x70] sm:$0xff]
      %v694 = vld [vmem:[#allocation5 + $0x78] sm:$0xff]
      %v695 = vld [vmem:[#allocation5 + $0x80] sm:$0xff]
      %v696 = vld [vmem:[#allocation5 + $0x88] sm:$0xff]
      %v697 = vld [vmem:[#allocation5 + $0x90] sm:$0xff]
      %v698 = vld [vmem:[#allocation5 + $0x98] sm:$0xff]
      %v699 = vld [vmem:[#allocation5 + $0xa0] sm:$0xff]
      %v700 = vld [vmem:[#allocation5 + $0xa8] sm:$0xff]
      %v701 = vld [vmem:[#allocation5 + $0xb0] sm:$0xff]
      %v702 = vld [vmem:[#allocation5 + $0xb8] sm:$0xff]
      %v703 = vld [vmem:[#allocation5 + $0xc0] sm:$0xff]
      %v704 = vld [vmem:[#allocation5 + $0xc8] sm:$0xff]
      %v705 = vld [vmem:[#allocation5 + $0xd0] sm:$0xff]
      %v706 = vld [vmem:[#allocation5 + $0xd8] sm:$0xff]
      %v707 = vld [vmem:[#allocation5 + $0xe0] sm:$0xff]
      %v708 = vld [vmem:[#allocation5 + $0xe8] sm:$0xff]
      %v709 = vld [vmem:[#allocation5 + $0xf0] sm:$0xff]
      %v710 = vld [vmem:[#allocation5 + $0xf8] sm:$0xff]
      %v711 = vld [vmem:[#allocation5 + $0x100] sm:$0xff]
      %v712 = vld [vmem:[#allocation5 + $0x108] sm:$0xff]
      %v713 = vld [vmem:[#allocation5 + $0x110] sm:$0xff]
      %v714 = vld [vmem:[#allocation5 + $0x118] sm:$0xff]
      %v715 = vld [vmem:[#allocation5 + $0x120] sm:$0xff]
      %v716 = vld [vmem:[#allocation5 + $0x128] sm:$0xff]
      %v717 = vld [vmem:[#allocation5 + $0x130] sm:$0xff]
      %v718 = vld [vmem:[#allocation5 + $0x138] sm:$0xff]
      %v719 = vld [vmem:[#allocation5 + $0x140] sm:$0xff]
      %v720 = vld [vmem:[#allocation5 + $0x148] sm:$0xff]
      %v721 = vld [vmem:[#allocation5 + $0x150] sm:$0xff]
      %v722 = vld [vmem:[#allocation5 + $0x158] sm:$0xff]
      %v723 = vld [vmem:[#allocation5 + $0x160] sm:$0xff]
      %v724 = vld [vmem:[#allocation5 + $0x168] sm:$0xff]
      %v725 = vld [vmem:[#allocation5 + $0x170] sm:$0xff]
      %v726 = vld [vmem:[#allocation5 + $0x178] sm:$0xff]
      %v727 = vld [vmem:[#allocation5 + $0x180] sm:$0xff]
      %v728 = vld [vmem:[#allocation5 + $0x188] sm:$0xff]
      %v729 = vld [vmem:[#allocation5 + $0x190] sm:$0xff]
      %v730 = vld [vmem:[#allocation5 + $0x198] sm:$0xff]
      %v731 = vld [vmem:[#allocation5 + $0x1a0] sm:$0xff]
      %v732 = vld [vmem:[#allocation5 + $0x1a8] sm:$0xff]
      %v733 = vld [vmem:[%s6] sm:$0xff]
      %v734 = vld [vmem:[%s6 + $0x8] sm:$0xff]
      %736 = vset.pattern.permute.xlu0 0
      %737 = vperm.xlu0 %736, %v733
      %v738 = vpop.permute.xlu0 %737
      %741 = vset.pattern.permute.xlu0 0
      %742 = vperm.xlu0 %741, %v734
      %v743 = vpop.permute.xlu0 %742
      %v749 = vunpack.c.l.b16 %v675
      %v750 = vunpack.c.h.b16 %v675
      %v751 = vunpack.c.l.b16 %v676
      %v752 = vunpack.c.l.b16 %v677
      %v753 = vunpack.c.h.b16 %v677
      %v754 = vunpack.c.l.b16 %v678
      %v755 = vpack.c.b16 %v752, %v749
      %v756 = vpack.c.b16 %v753, %v750
      %v757 = vpack.c.b16 %v754, %v751
      %v761 = vsel %vm438, %v757, 0
      %763 = vmatprep.subr.bf16.mxu0 %v680
      %764 = vmatpush1.bf16.msra.mxu0 %v679
      %765 = vmatprep.subr.bf16.mxu0 %v683
      %766 = vmatpush1.bf16.msra.mxu0 %v682
      %767 = vmatprep.subr.bf16.mxu0 %v686
      %768 = vmatpush1.bf16.msra.mxu0 %v685
      %769 = vmatprep.subr.bf16.mxu0 %v689
      %770 = vmatpush1.bf16.msra.mxu0 %v688
      %771 = vmatprep.subr.bf16.mxu0 %v692
      %772 = vmatpush1.bf16.msra.mxu0 %v691
      %773 = vmatprep.subr.bf16.mxu0 %v695
      %774 = vmatpush1.bf16.msra.mxu0 %v694
      %775 = vmatprep.subr.bf16.mxu0 %v698
      %776 = vmatpush1.bf16.msra.mxu0 %v697
      %777 = vmatprep.subr.bf16.mxu0 %v701
      %778 = vmatpush1.bf16.msra.mxu0 %v700
      %779 = vmatprep.subr.bf16.mxu0 %v704
      %780 = vmatpush1.bf16.msra.mxu0 %v703
      %781 = vmatprep.subr.bf16.mxu0 %v707
      %782 = vmatpush1.bf16.msra.mxu0 %v706
      %783 = vmatprep.subr.bf16.mxu0 %v710
      %784 = vmatpush1.bf16.msra.mxu0 %v709
      %785 = vmatprep.subr.bf16.mxu0 %v713
      %786 = vmatpush1.bf16.msra.mxu0 %v712
      %787 = vmatprep.subr.bf16.mxu0 %v716
      %788 = vmatpush1.bf16.msra.mxu0 %v715
      %789 = vmatprep.subr.bf16.mxu0 %v719
      %790 = vmatpush1.bf16.msra.mxu0 %v718
      %791 = vmatprep.subr.bf16.mxu0 %v722
      %792 = vmatpush1.bf16.msra.mxu0 %v721
      %793 = vmatprep.subr.bf16.mxu0 %v725
      %794 = vmatpush1.bf16.msra.mxu0 %v724
      %795 = vmatprep.mubr.bf16.mxu0 %v756
      %796 = vmatmul.mubr.bf16.gmra.mrb[0].mxu0 %v755
      %v797 = vpop.f32.mrb[0].mxu0
      %v798 = vadd.f32 %v738, %v797
      %v799 = vpop.f32.mrb[0].mxu0
      %v800 = vadd.f32 %v738, %v799
      %v801 = vpop.f32.mrb[0].mxu0
      %v802 = vadd.f32 %v743, %v801
      %v803 = vpop.f32.mrb[0].mxu0
      %v804 = vadd.f32 %v743, %v803
      %805 = vdwg.mxu0
      %806 = vmatprep.subr.bf16.mxu0 %v728
      %807 = vmatpush1.bf16.msra.mxu0 %v727
      %808 = vmatprep.subr.bf16.mxu0 %v731
      %809 = vmatpush1.bf16.msra.mxu0 %v730
      %810 = vmatprep.subr.bf16.mxu0 0
      %811 = vmatpush1.bf16.msra.mxu0 0
      %812 = vmatprep.subr.bf16.mxu0 0
      %813 = vmatpush1.bf16.msra.mxu0 0
      %814 = vmatprep.subr.bf16.mxu0 0
      %815 = vmatpush1.bf16.msra.mxu0 0
      %816 = vmatprep.subr.bf16.mxu0 0
      %817 = vmatpush1.bf16.msra.mxu0 0
      %818 = vmatprep.subr.bf16.mxu0 0
      %819 = vmatpush1.bf16.msra.mxu0 0
      %820 = vmatprep.subr.bf16.mxu0 0
      %821 = vmatpush1.bf16.msra.mxu0 0
      %822 = vmatprep.subr.bf16.mxu0 0
      %823 = vmatpush1.bf16.msra.mxu0 0
      %824 = vmatprep.subr.bf16.mxu0 0
      %825 = vmatpush1.bf16.msra.mxu0 0
      %826 = vmatprep.subr.bf16.mxu0 0
      %827 = vmatpush1.bf16.msra.mxu0 0
      %828 = vmatprep.subr.bf16.mxu0 0
      %829 = vmatpush1.bf16.msra.mxu0 0
      %830 = vmatprep.subr.bf16.mxu0 0
      %831 = vmatpush1.bf16.msra.mxu0 0
      %832 = vmatprep.subr.bf16.mxu0 0
      %833 = vmatpush1.bf16.msra.mxu0 0
      %834 = vmatprep.subr.bf16.mxu0 0
      %835 = vmatpush1.bf16.msra.mxu0 0
      %836 = vmatprep.subr.bf16.mxu0 0
      %837 = vmatpush1.bf16.msra.mxu0 0
      %838 = vmatprep.mubr.bf16.mxu0 0
      %839 = vmatmul.mubr.bf16.gmra.mrb[0].mxu0 %v761
      %v840 = vpop.f32.mrb[0].mxu0
      %v841 = vadd.f32 %v798, %v840
      %v842 = vpop.f32.mrb[0].mxu0
      %v843 = vadd.f32 %v800, %v842
      %v844 = vpop.f32.mrb[0].mxu0
      %v845 = vadd.f32 %v802, %v844
      %v846 = vpop.f32.mrb[0].mxu0
      %v847 = vadd.f32 %v804, %v846
      %848 = vdwg.mxu0
      %849 = vmatprep.subr.bf16.mxu0 0
      %850 = vmatpush1.bf16.msra.mxu0 %v681
      %851 = vmatprep.subr.bf16.mxu0 0
      %852 = vmatpush1.bf16.msra.mxu0 %v684
      %853 = vmatprep.subr.bf16.mxu0 0
      %854 = vmatpush1.bf16.msra.mxu0 %v687
      %855 = vmatprep.subr.bf16.mxu0 0
      %856 = vmatpush1.bf16.msra.mxu0 %v690
      %857 = vmatprep.subr.bf16.mxu0 0
      %858 = vmatpush1.bf16.msra.mxu0 %v693
      %859 = vmatprep.subr.bf16.mxu0 0
      %860 = vmatpush1.bf16.msra.mxu0 %v696
      %861 = vmatprep.subr.bf16.mxu0 0
      %862 = vmatpush1.bf16.msra.mxu0 %v699
      %863 = vmatprep.subr.bf16.mxu0 0
      %864 = vmatpush1.bf16.msra.mxu0 %v702
      %865 = vmatprep.subr.bf16.mxu0 0
      %866 = vmatpush1.bf16.msra.mxu0 %v705
      %867 = vmatprep.subr.bf16.mxu0 0
      %868 = vmatpush1.bf16.msra.mxu0 %v708
      %869 = vmatprep.subr.bf16.mxu0 0
      %870 = vmatpush1.bf16.msra.mxu0 %v711
      %871 = vmatprep.subr.bf16.mxu0 0
      %872 = vmatpush1.bf16.msra.mxu0 %v714
      %873 = vmatprep.subr.bf16.mxu0 0
      %874 = vmatpush1.bf16.msra.mxu0 %v717
      %875 = vmatprep.subr.bf16.mxu0 0
      %876 = vmatpush1.bf16.msra.mxu0 %v720
      %877 = vmatprep.subr.bf16.mxu0 0
      %878 = vmatpush1.bf16.msra.mxu0 %v723
      %879 = vmatprep.subr.bf16.mxu0 0
      %880 = vmatpush1.bf16.msra.mxu0 %v726
      %881 = vmatprep.mubr.bf16.mxu0 %v756
      %882 = vmatmul.mubr.bf16.gmra.mrb[0].mxu0 %v755
      %v883 = vpop.f32.mrb[0].mxu0
      %v884 = vadd.f32 %v738, %v883
      %v885 = vpop.f32.mrb[0].mxu0
      %v886 = vpop.f32.mrb[0].mxu0
      %v887 = vadd.f32 %v743, %v886
      %v888 = vpop.f32.mrb[0].mxu0
      %889 = vdwg.mxu0
      %890 = vmatprep.subr.bf16.mxu0 0
      %891 = vmatpush1.bf16.msra.mxu0 %v729
      %892 = vmatprep.subr.bf16.mxu0 0
      %893 = vmatpush1.bf16.msra.mxu0 %v732
      %894 = vmatprep.subr.bf16.mxu0 0
      %895 = vmatpush1.bf16.msra.mxu0 0
      %896 = vmatprep.subr.bf16.mxu0 0
      %897 = vmatpush1.bf16.msra.mxu0 0
      %898 = vmatprep.subr.bf16.mxu0 0
      %899 = vmatpush1.bf16.msra.mxu0 0
      %900 = vmatprep.subr.bf16.mxu0 0
      %901 = vmatpush1.bf16.msra.mxu0 0
      %902 = vmatprep.subr.bf16.mxu0 0
      %903 = vmatpush1.bf16.msra.mxu0 0
      %904 = vmatprep.subr.bf16.mxu0 0
      %905 = vmatpush1.bf16.msra.mxu0 0
      %906 = vmatprep.subr.bf16.mxu0 0
      %907 = vmatpush1.bf16.msra.mxu0 0
      %908 = vmatprep.subr.bf16.mxu0 0
      %909 = vmatpush1.bf16.msra.mxu0 0
      %910 = vmatprep.subr.bf16.mxu0 0
      %911 = vmatpush1.bf16.msra.mxu0 0
      %912 = vmatprep.subr.bf16.mxu0 0
      %913 = vmatpush1.bf16.msra.mxu0 0
      %914 = vmatprep.subr.bf16.mxu0 0
      %915 = vmatpush1.bf16.msra.mxu0 0
      %916 = vmatprep.subr.bf16.mxu0 0
      %917 = vmatpush1.bf16.msra.mxu0 0
      %918 = vmatprep.subr.bf16.mxu0 0
      %919 = vmatpush1.bf16.msra.mxu0 0
      %920 = vmatprep.subr.bf16.mxu0 0
      %921 = vmatpush1.bf16.msra.mxu0 0
      %922 = vmatprep.mubr.bf16.mxu0 0
      %923 = vmatmul.mubr.bf16.gmra.mrb[0].mxu0 %v761
      %v924 = vpop.f32.mrb[0].mxu0
      %v925 = vadd.f32 %v884, %v924
      %v926 = vpop.f32.mrb[0].mxu0
      %v927 = vpop.f32.mrb[0].mxu0
      %v928 = vadd.f32 %v887, %v927
      %v929 = vpop.f32.mrb[0].mxu0
      %930 = vdwg.mxu0
      %vm931 = vcmp.ge.f32.partialorder %v841, 0.0
      %vm932 = vcmp.ge.f32.partialorder %v843, 0.0
      %vm933 = vcmp.ge.f32.partialorder %v925, 0.0
      %vm934 = vcmp.ge.f32.partialorder %v845, 0.0
      %vm935 = vcmp.ge.f32.partialorder %v847, 0.0
      %vm936 = vcmp.ge.f32.partialorder %v928, 0.0
      %v937 = vmul.f32 %v841, 0.01
      %v938 = vmul.f32 %v843, 0.01
      %v939 = vmul.f32 %v925, 0.01
      %v940 = vmul.f32 %v845, 0.01
      %v941 = vmul.f32 %v847, 0.01
      %v942 = vmul.f32 %v928, 0.01
      %v943 = vsel %vm931, %v841, %v937
      %v944 = vsel %vm932, %v843, %v938
      %v945 = vsel %vm933, %v925, %v939
      %v946 = vsel %vm934, %v845, %v940
      %v947 = vsel %vm935, %v847, %v941
      %v948 = vsel %vm936, %v928, %v942
      %v950 = vlaneseq
      %v951 = vshrl.u32 %v950, 7
      %v952 = vsub.s32 0, %v951
      %v953 = vrot.slane %v378, %v952
      %v954 = vlaneseq
      %v955 = vshrl.u32 %v954, 7
      %v956 = vsub.s32 1, %v955
      %v957 = vrot.slane %v378, %v956
      %v958 = vlaneseq
      %v959 = vshrl.u32 %v958, 7
      %v960 = vsub.s32 2, %v959
      %v961 = vrot.slane %v378, %v960
      %v965 = vmul.f32 %v943, %v953
      %v966 = vmul.f32 %v944, %v957
      %v967 = vmul.f32 %v945, %v961
      %v968 = vmul.f32 %v946, %v953
      %v969 = vmul.f32 %v947, %v957
      %v970 = vmul.f32 %v948, %v961
      %v971 = vpack.c.bf16 %v968, %v965
      %v972 = vpack.c.bf16 %v969, %v966
      %v973 = vpack.c.bf16 %v970, %v967
      %977 = vrot.lane.b32.xlu0 %v971, 36
      %v978 = vpop.permute.xlu0 %977
      %979 = vrot.lane.b32.xlu0 %v972, 36
      %v980 = vpop.permute.xlu0 %979
      %981 = vrot.lane.b32.xlu0 %v973, 36
      %v982 = vpop.permute.xlu0 %981
      %vm983 = vcmask 293888
      %v984 = vsel %vm983, %v978, %v980
      %v985 = vsel %vm983, %v980, %v982
      %vm989 = vcmask 1047840
      %990 = vst.msk [vmem:[#allocation2] sm:$0xff] %vm989, %v978
      %991 = vst [vmem:[#allocation2 + $0x8] sm:$0xff] %v984
      %vm992 = vcmask 556032
      %993 = vst.msk [vmem:[#allocation2 + $0x10] sm:$0xff] %vm992, %v985
      %v994 = vunpack.c.l.b16 %v971
      %v995 = vunpack.c.l.b16 %v972
      %v996 = vunpack.c.l.b16 %v973
      %v997 = vunpack.c.h.b16 %v971
      %v998 = vunpack.c.h.b16 %v972
      %v999 = vunpack.c.h.b16 %v973
      %v1000 = vpack.c.b16 %v995, %v994
      %v1001 = vpack.c.b16 %v996, %v996
      %v1002 = vpack.c.b16 %v998, %v997
      %v1003 = vpack.c.b16 %v999, %v999
      %1008 = vst [vmem:[%s359] sm:$0xff] %v1000
      %vm1009 = vcmask 257024
      %1010 = vst.msk [vmem:[%s359 + $0x8] sm:$0xf] %vm1009, %v1001
      %1011 = vst [vmem:[%s359 + $0xc] sm:$0xff] %v1002
      %1012 = vst.msk [vmem:[%s359 + $0x14] sm:$0xf] %vm1009, %v1003
      %v1013 = vld [vmem:[#allocation2] sm:$0xff]
      %v1014 = vld [vmem:[#allocation2 + $0x8] sm:$0xff]
      %v1015 = vld [vmem:[#allocation2 + $0x10] sm:$0xff]
      %1019 = vrot.lane.b32.xlu0 %v1013, 111
      %v1020 = vpop.permute.xlu0 %1019
      %1021 = vrot.lane.b32.xlu0 %v1014, 111
      %v1022 = vpop.permute.xlu0 %1021
      %1023 = vrot.lane.b32.xlu0 %v1015, 111
      %v1024 = vpop.permute.xlu0 %1023
      %v1025 = vsel %vm425, %v1020, %v1022
      %v1026 = vsel %vm425, %v1022, %v1024
      %1030 = vst [vmem:[#allocation5] sm:$0xff] %v1025
      %1031 = vst [vmem:[#allocation5 + $0x8] sm:$0xff] %v1026
      %1032 = vst.msk [vmem:[#allocation5 + $0x10] sm:$0xff] %vm438, %v1024
      %1033 = vrot.lane.b32.xlu0 %v1013, 110
      %v1034 = vpop.permute.xlu0 %1033
      %1035 = vrot.lane.b32.xlu0 %v1014, 110
      %v1036 = vpop.permute.xlu0 %1035
      %1037 = vrot.lane.b32.xlu0 %v1015, 110
      %v1038 = vpop.permute.xlu0 %1037
      %v1039 = vsel %vm455, %v1034, %v1036
      %v1040 = vsel %vm455, %v1036, %v1038
      %1044 = vst [vmem:[#allocation5 + $0x18] sm:$0xff] %v1039
      %1045 = vst [vmem:[#allocation5 + $0x20] sm:$0xff] %v1040
      %1046 = vst.msk [vmem:[#allocation5 + $0x28] sm:$0xff] %vm438, %v1038
      %1047 = vrot.lane.b32.xlu0 %v1013, 109
      %v1048 = vpop.permute.xlu0 %1047
      %1049 = vrot.lane.b32.xlu0 %v1014, 109
      %v1050 = vpop.permute.xlu0 %1049
      %1051 = vrot.lane.b32.xlu0 %v1015, 109
      %v1052 = vpop.permute.xlu0 %1051
      %v1053 = vsel %vm484, %v1048, %v1050
      %v1054 = vsel %vm484, %v1050, %v1052
      %1058 = vst [vmem:[#allocation5 + $0x30] sm:$0xff] %v1053
      %1059 = vst [vmem:[#allocation5 + $0x38] sm:$0xff] %v1054
      %1060 = vst.msk [vmem:[#allocation5 + $0x40] sm:$0xff] %vm438, %v1052
      %1061 = vrot.lane.b32.xlu0 %v1013, 93
      %v1062 = vpop.permute.xlu0 %1061
      %1063 = vrot.lane.b32.xlu0 %v1014, 93
      %v1064 = vpop.permute.xlu0 %1063
      %1065 = vrot.lane.b32.xlu0 %v1015, 93
      %v1066 = vpop.permute.xlu0 %1065
      %v1067 = vsel %vm513, %v1062, %v1064
      %v1068 = vsel %vm513, %v1064, %v1066
      %1072 = vst [vmem:[#allocation5 + $0x48] sm:$0xff] %v1067
      %1073 = vst [vmem:[#allocation5 + $0x50] sm:$0xff] %v1068
      %1074 = vst.msk [vmem:[#allocation5 + $0x58] sm:$0xff] %vm438, %v1066
      %1075 = vrot.lane.b32.xlu0 %v1013, 92
      %v1076 = vpop.permute.xlu0 %1075
      %1077 = vrot.lane.b32.xlu0 %v1014, 92
      %v1078 = vpop.permute.xlu0 %1077
      %1079 = vrot.lane.b32.xlu0 %v1015, 92
      %v1080 = vpop.permute.xlu0 %1079
      %v1081 = vsel %vm542, %v1076, %v1078
      %v1082 = vsel %vm542, %v1078, %v1080
      %1086 = vst [vmem:[#allocation5 + $0x60] sm:$0xff] %v1081
      %1087 = vst [vmem:[#allocation5 + $0x68] sm:$0xff] %v1082
      %1088 = vst.msk [vmem:[#allocation5 + $0x70] sm:$0xff] %vm438, %v1080
      %1089 = vrot.lane.b32.xlu0 %v1013, 91
      %v1090 = vpop.permute.xlu0 %1089
      %1091 = vrot.lane.b32.xlu0 %v1014, 91
      %v1092 = vpop.permute.xlu0 %1091
      %1093 = vrot.lane.b32.xlu0 %v1015, 91
      %v1094 = vpop.permute.xlu0 %1093
      %v1095 = vsel %vm571, %v1090, %v1092
      %v1096 = vsel %vm571, %v1092, %v1094
      %1100 = vst [vmem:[#allocation5 + $0x78] sm:$0xff] %v1095
      %1101 = vst [vmem:[#allocation5 + $0x80] sm:$0xff] %v1096
      %1102 = vst.msk [vmem:[#allocation5 + $0x88] sm:$0xff] %vm438, %v1094
      %1103 = vrot.lane.b32.xlu0 %v1013, 75
      %v1104 = vpop.permute.xlu0 %1103
      %1105 = vrot.lane.b32.xlu0 %v1014, 75
      %v1106 = vpop.permute.xlu0 %1105
      %1107 = vrot.lane.b32.xlu0 %v1015, 75
      %v1108 = vpop.permute.xlu0 %1107
      %v1109 = vsel %vm600, %v1104, %v1106
      %v1110 = vsel %vm600, %v1106, %v1108
      %1114 = vst [vmem:[#allocation5 + $0x90] sm:$0xff] %v1109
      %1115 = vst [vmem:[#allocation5 + $0x98] sm:$0xff] %v1110
      %1116 = vst.msk [vmem:[#allocation5 + $0xa0] sm:$0xff] %vm438, %v1108
      %1117 = vrot.lane.b32.xlu0 %v1013, 74
      %v1118 = vpop.permute.xlu0 %1117
      %1119 = vrot.lane.b32.xlu0 %v1014, 74
      %v1120 = vpop.permute.xlu0 %1119
      %1121 = vrot.lane.b32.xlu0 %v1015, 74
      %v1122 = vpop.permute.xlu0 %1121
      %v1123 = vsel %vm629, %v1118, %v1120
      %v1124 = vsel %vm629, %v1120, %v1122
      %1128 = vst [vmem:[#allocation5 + $0xa8] sm:$0xff] %v1123
      %1129 = vst [vmem:[#allocation5 + $0xb0] sm:$0xff] %v1124
      %1130 = vst.msk [vmem:[#allocation5 + $0xb8] sm:$0xff] %vm438, %v1122
      %1131 = vrot.lane.b32.xlu0 %v1013, 73
      %v1132 = vpop.permute.xlu0 %1131
      %1133 = vrot.lane.b32.xlu0 %v1014, 73
      %v1134 = vpop.permute.xlu0 %1133
      %1135 = vrot.lane.b32.xlu0 %v1015, 73
      %v1136 = vpop.permute.xlu0 %1135
      %v1137 = vsel %vm658, %v1132, %v1134
      %v1138 = vsel %vm658, %v1134, %v1136
      %1142 = vst [vmem:[#allocation5 + $0xc0] sm:$0xff] %v1137
      %1143 = vst [vmem:[#allocation5 + $0xc8] sm:$0xff] %v1138
      %1144 = vst.msk [vmem:[#allocation5 + $0xd0] sm:$0xff] %vm438, %v1136
      %v1145 = vld [vmem:[%s3] sm:$0xff]
      %v1146 = vld [vmem:[%s3 + $0x10] sm:$0xff]
      %v1147 = vld [vmem:[%s3 + $0x20] sm:$0xff]
      %v1148 = vld [vmem:[%s3 + $0x30] sm:$0x11]
      %v1149 = vld [vmem:[#allocation5] sm:$0xff]
      %v1150 = vld [vmem:[#allocation5 + $0x8] sm:$0xff]
      %v1151 = vld [vmem:[#allocation5 + $0x10] sm:$0xff]
      %v1152 = vld [vmem:[#allocation5 + $0x18] sm:$0xff]
      %v1153 = vld [vmem:[#allocation5 + $0x20] sm:$0xff]
      %v1154 = vld [vmem:[#allocation5 + $0x28] sm:$0xff]
      %v1155 = vld [vmem:[#allocation5 + $0x30] sm:$0xff]
      %v1156 = vld [vmem:[#allocation5 + $0x38] sm:$0xff]
      %v1157 = vld [vmem:[#allocation5 + $0x40] sm:$0xff]
      %v1158 = vld [vmem:[#allocation5 + $0x48] sm:$0xff]
      %v1159 = vld [vmem:[#allocation5 + $0x50] sm:$0xff]
      %v1160 = vld [vmem:[#allocation5 + $0x58] sm:$0xff]
      %v1161 = vld [vmem:[#allocation5 + $0x60] sm:$0xff]
      %v1162 = vld [vmem:[#allocation5 + $0x68] sm:$0xff]
      %v1163 = vld [vmem:[#allocation5 + $0x70] sm:$0xff]
      %v1164 = vld [vmem:[#allocation5 + $0x78] sm:$0xff]
      %v1165 = vld [vmem:[#allocation5 + $0x80] sm:$0xff]
      %v1166 = vld [vmem:[#allocation5 + $0x88] sm:$0xff]
      %v1167 = vld [vmem:[#allocation5 + $0x90] sm:$0xff]
      %v1168 = vld [vmem:[#allocation5 + $0x98] sm:$0xff]
      %v1169 = vld [vmem:[#allocation5 + $0xa0] sm:$0xff]
      %v1170 = vld [vmem:[#allocation5 + $0xa8] sm:$0xff]
      %v1171 = vld [vmem:[#allocation5 + $0xb0] sm:$0xff]
      %v1172 = vld [vmem:[#allocation5 + $0xb8] sm:$0xff]
      %v1173 = vld [vmem:[#allocation5 + $0xc0] sm:$0xff]
      %v1174 = vld [vmem:[#allocation5 + $0xc8] sm:$0xff]
      %v1175 = vld [vmem:[#allocation5 + $0xd0] sm:$0xff]
      %v1176 = vld [vmem:[%s354] sm:$0xff]
      %v1177 = vld [vmem:[%s354 + $0x8] sm:$0xf]
      %v1178 = vld [vmem:[%s354 + $0xc] sm:$0xff]
      %v1179 = vld [vmem:[%s354 + $0x14] sm:$0xf]
      %v1180 = vld [vmem:[%s354 + $0x18] sm:$0xff]
      %v1181 = vld [vmem:[%s354 + $0x20] sm:$0xf]
      %v1182 = vld [vmem:[%s354 + $0x24] sm:$0xff]
      %v1183 = vld [vmem:[%s354 + $0x2c] sm:$0xf]
      %v1192 = vunpack.c.l.b16 %v1176
      %v1193 = vunpack.c.h.b16 %v1176
      %v1194 = vunpack.c.l.b16 %v1177
      %v1195 = vunpack.c.l.b16 %v1178
      %v1196 = vunpack.c.h.b16 %v1178
      %v1197 = vunpack.c.l.b16 %v1179
      %v1198 = vunpack.c.l.b16 %v1180
      %v1199 = vunpack.c.h.b16 %v1180
      %v1200 = vunpack.c.l.b16 %v1181
      %v1201 = vunpack.c.l.b16 %v1182
      %v1202 = vunpack.c.h.b16 %v1182
      %v1203 = vunpack.c.l.b16 %v1183
      %v1204 = vpack.c.b16 %v1195, %v1192
      %v1205 = vpack.c.b16 %v1196, %v1193
      %v1206 = vpack.c.b16 %v1197, %v1194
      %v1207 = vpack.c.b16 %v1201, %v1198
      %v1208 = vpack.c.b16 %v1202, %v1199
      %v1209 = vpack.c.b16 %v1203, %v1200
      %1210 = vrot.lane.b32.xlu0 %v1204, 111
      %v1211 = vpop.permute.xlu0 %1210
      %1212 = vrot.lane.b32.xlu0 %v1205, 111
      %v1213 = vpop.permute.xlu0 %1212
      %1214 = vrot.lane.b32.xlu0 %v1206, 111
      %v1215 = vpop.permute.xlu0 %1214
      %1216 = vrot.lane.b32.xlu0 %v1207, 111
      %v1217 = vpop.permute.xlu0 %1216
      %1218 = vrot.lane.b32.xlu0 %v1208, 111
      %v1219 = vpop.permute.xlu0 %1218
      %1220 = vrot.lane.b32.xlu0 %v1209, 111
      %v1221 = vpop.permute.xlu0 %1220
      %v1222 = vsel %vm425, %v1211, %v1213
      %v1223 = vsel %vm425, %v1213, %v1215
      %v1224 = vsel %vm425, %v1217, %v1219
      %v1225 = vsel %vm425, %v1219, %v1221
      %1232 = vst [vmem:[#allocation5] sm:$0xff] %v1222
      %1233 = vst [vmem:[#allocation5 + $0x8] sm:$0xff] %v1223
      %1234 = vst.msk [vmem:[#allocation5 + $0x10] sm:$0xff] %vm438, %v1215
      %1235 = vst [vmem:[#allocation5 + $0x18] sm:$0xff] %v1224
      %1236 = vst [vmem:[#allocation5 + $0x20] sm:$0xff] %v1225
      %1237 = vst.msk [vmem:[#allocation5 + $0x28] sm:$0xff] %vm438, %v1221
      %1238 = vrot.lane.b32.xlu0 %v1204, 110
      %v1239 = vpop.permute.xlu0 %1238
      %1240 = vrot.lane.b32.xlu0 %v1205, 110
      %v1241 = vpop.permute.xlu0 %1240
      %1242 = vrot.lane.b32.xlu0 %v1206, 110
      %v1243 = vpop.permute.xlu0 %1242
      %1244 = vrot.lane.b32.xlu0 %v1207, 110
      %v1245 = vpop.permute.xlu0 %1244
      %1246 = vrot.lane.b32.xlu0 %v1208, 110
      %v1247 = vpop.permute.xlu0 %1246
      %1248 = vrot.lane.b32.xlu0 %v1209, 110
      %v1249 = vpop.permute.xlu0 %1248
      %v1250 = vsel %vm455, %v1239, %v1241
      %v1251 = vsel %vm455, %v1241, %v1243
      %v1252 = vsel %vm455, %v1245, %v1247
      %v1253 = vsel %vm455, %v1247, %v1249
      %1260 = vst [vmem:[#allocation5 + $0x30] sm:$0xff] %v1250
      %1261 = vst [vmem:[#allocation5 + $0x38] sm:$0xff] %v1251
      %1262 = vst.msk [vmem:[#allocation5 + $0x40] sm:$0xff] %vm438, %v1243
      %1263 = vst [vmem:[#allocation5 + $0x48] sm:$0xff] %v1252
      %1264 = vst [vmem:[#allocation5 + $0x50] sm:$0xff] %v1253
      %1265 = vst.msk [vmem:[#allocation5 + $0x58] sm:$0xff] %vm438, %v1249
      %1266 = vrot.lane.b32.xlu0 %v1204, 109
      %v1267 = vpop.permute.xlu0 %1266
      %1268 = vrot.lane.b32.xlu0 %v1205, 109
      %v1269 = vpop.permute.xlu0 %1268
      %1270 = vrot.lane.b32.xlu0 %v1206, 109
      %v1271 = vpop.permute.xlu0 %1270
      %1272 = vrot.lane.b32.xlu0 %v1207, 109
      %v1273 = vpop.permute.xlu0 %1272
      %1274 = vrot.lane.b32.xlu0 %v1208, 109
      %v1275 = vpop.permute.xlu0 %1274
      %1276 = vrot.lane.b32.xlu0 %v1209, 109
      %v1277 = vpop.permute.xlu0 %1276
      %v1278 = vsel %vm484, %v1267, %v1269
      %v1279 = vsel %vm484, %v1269, %v1271
      %v1280 = vsel %vm484, %v1273, %v1275
      %v1281 = vsel %vm484, %v1275, %v1277
      %1288 = vst [vmem:[#allocation5 + $0x60] sm:$0xff] %v1278
      %1289 = vst [vmem:[#allocation5 + $0x68] sm:$0xff] %v1279
      %1290 = vst.msk [vmem:[#allocation5 + $0x70] sm:$0xff] %vm438, %v1271
      %1291 = vst [vmem:[#allocation5 + $0x78] sm:$0xff] %v1280
      %1292 = vst [vmem:[#allocation5 + $0x80] sm:$0xff] %v1281
      %1293 = vst.msk [vmem:[#allocation5 + $0x88] sm:$0xff] %vm438, %v1277
      %1294 = vrot.lane.b32.xlu0 %v1204, 93
      %v1295 = vpop.permute.xlu0 %1294
      %1296 = vrot.lane.b32.xlu0 %v1205, 93
      %v1297 = vpop.permute.xlu0 %1296
      %1298 = vrot.lane.b32.xlu0 %v1206, 93
      %v1299 = vpop.permute.xlu0 %1298
      %1300 = vrot.lane.b32.xlu0 %v1207, 93
      %v1301 = vpop.permute.xlu0 %1300
      %1302 = vrot.lane.b32.xlu0 %v1208, 93
      %v1303 = vpop.permute.xlu0 %1302
      %1304 = vrot.lane.b32.xlu0 %v1209, 93
      %v1305 = vpop.permute.xlu0 %1304
      %v1306 = vsel %vm513, %v1295, %v1297
      %v1307 = vsel %vm513, %v1297, %v1299
      %v1308 = vsel %vm513, %v1301, %v1303
      %v1309 = vsel %vm513, %v1303, %v1305
      %1316 = vst [vmem:[#allocation5 + $0x90] sm:$0xff] %v1306
      %1317 = vst [vmem:[#allocation5 + $0x98] sm:$0xff] %v1307
      %1318 = vst.msk [vmem:[#allocation5 + $0xa0] sm:$0xff] %vm438, %v1299
      %1319 = vst [vmem:[#allocation5 + $0xa8] sm:$0xff] %v1308
      %1320 = vst [vmem:[#allocation5 + $0xb0] sm:$0xff] %v1309
      %1321 = vst.msk [vmem:[#allocation5 + $0xb8] sm:$0xff] %vm438, %v1305
      %1322 = vrot.lane.b32.xlu0 %v1204, 92
      %v1323 = vpop.permute.xlu0 %1322
      %1324 = vrot.lane.b32.xlu0 %v1205, 92
      %v1325 = vpop.permute.xlu0 %1324
      %1326 = vrot.lane.b32.xlu0 %v1206, 92
      %v1327 = vpop.permute.xlu0 %1326
      %1328 = vrot.lane.b32.xlu0 %v1207, 92
      %v1329 = vpop.permute.xlu0 %1328
      %1330 = vrot.lane.b32.xlu0 %v1208, 92
      %v1331 = vpop.permute.xlu0 %1330
      %1332 = vrot.lane.b32.xlu0 %v1209, 92
      %v1333 = vpop.permute.xlu0 %1332
      %v1334 = vsel %vm542, %v1323, %v1325
      %v1335 = vsel %vm542, %v1325, %v1327
      %v1336 = vsel %vm542, %v1329, %v1331
      %v1337 = vsel %vm542, %v1331, %v1333
      %1344 = vst [vmem:[#allocation5 + $0xc0] sm:$0xff] %v1334
      %1345 = vst [vmem:[#allocation5 + $0xc8] sm:$0xff] %v1335
      %1346 = vst.msk [vmem:[#allocation5 + $0xd0] sm:$0xff] %vm438, %v1327
      %1347 = vst [vmem:[#allocation5 + $0xd8] sm:$0xff] %v1336
      %1348 = vst [vmem:[#allocation5 + $0xe0] sm:$0xff] %v1337
      %1349 = vst.msk [vmem:[#allocation5 + $0xe8] sm:$0xff] %vm438, %v1333
      %1350 = vrot.lane.b32.xlu0 %v1204, 91
      %v1351 = vpop.permute.xlu0 %1350
      %1352 = vrot.lane.b32.xlu0 %v1205, 91
      %v1353 = vpop.permute.xlu0 %1352
      %1354 = vrot.lane.b32.xlu0 %v1206, 91
      %v1355 = vpop.permute.xlu0 %1354
      %1356 = vrot.lane.b32.xlu0 %v1207, 91
      %v1357 = vpop.permute.xlu0 %1356
      %1358 = vrot.lane.b32.xlu0 %v1208, 91
      %v1359 = vpop.permute.xlu0 %1358
      %1360 = vrot.lane.b32.xlu0 %v1209, 91
      %v1361 = vpop.permute.xlu0 %1360
      %v1362 = vsel %vm571, %v1351, %v1353
      %v1363 = vsel %vm571, %v1353, %v1355
      %v1364 = vsel %vm571, %v1357, %v1359
      %v1365 = vsel %vm571, %v1359, %v1361
      %1372 = vst [vmem:[#allocation5 + $0xf0] sm:$0xff] %v1362
      %1373 = vst [vmem:[#allocation5 + $0xf8] sm:$0xff] %v1363
      %1374 = vst.msk [vmem:[#allocation5 + $0x100] sm:$0xff] %vm438, %v1355
      %1375 = vst [vmem:[#allocation5 + $0x108] sm:$0xff] %v1364
      %1376 = vst [vmem:[#allocation5 + $0x110] sm:$0xff] %v1365
      %1377 = vst.msk [vmem:[#allocation5 + $0x118] sm:$0xff] %vm438, %v1361
      %1378 = vrot.lane.b32.xlu0 %v1204, 75
      %v1379 = vpop.permute.xlu0 %1378
      %1380 = vrot.lane.b32.xlu0 %v1205, 75
      %v1381 = vpop.permute.xlu0 %1380
      %1382 = vrot.lane.b32.xlu0 %v1206, 75
      %v1383 = vpop.permute.xlu0 %1382
      %1384 = vrot.lane.b32.xlu0 %v1207, 75
      %v1385 = vpop.permute.xlu0 %1384
      %1386 = vrot.lane.b32.xlu0 %v1208, 75
      %v1387 = vpop.permute.xlu0 %1386
      %1388 = vrot.lane.b32.xlu0 %v1209, 75
      %v1389 = vpop.permute.xlu0 %1388
      %v1390 = vsel %vm600, %v1379, %v1381
      %v1391 = vsel %vm600, %v1381, %v1383
      %v1392 = vsel %vm600, %v1385, %v1387
      %v1393 = vsel %vm600, %v1387, %v1389
      %1400 = vst [vmem:[#allocation5 + $0x120] sm:$0xff] %v1390
      %1401 = vst [vmem:[#allocation5 + $0x128] sm:$0xff] %v1391
      %1402 = vst.msk [vmem:[#allocation5 + $0x130] sm:$0xff] %vm438, %v1383
      %1403 = vst [vmem:[#allocation5 + $0x138] sm:$0xff] %v1392
      %1404 = vst [vmem:[#allocation5 + $0x140] sm:$0xff] %v1393
      %1405 = vst.msk [vmem:[#allocation5 + $0x148] sm:$0xff] %vm438, %v1389
      %1406 = vrot.lane.b32.xlu0 %v1204, 74
      %v1407 = vpop.permute.xlu0 %1406
      %1408 = vrot.lane.b32.xlu0 %v1205, 74
      %v1409 = vpop.permute.xlu0 %1408
      %1410 = vrot.lane.b32.xlu0 %v1206, 74
      %v1411 = vpop.permute.xlu0 %1410
      %1412 = vrot.lane.b32.xlu0 %v1207, 74
      %v1413 = vpop.permute.xlu0 %1412
      %1414 = vrot.lane.b32.xlu0 %v1208, 74
      %v1415 = vpop.permute.xlu0 %1414
      %1416 = vrot.lane.b32.xlu0 %v1209, 74
      %v1417 = vpop.permute.xlu0 %1416
      %v1418 = vsel %vm629, %v1407, %v1409
      %v1419 = vsel %vm629, %v1409, %v1411
      %v1420 = vsel %vm629, %v1413, %v1415
      %v1421 = vsel %vm629, %v1415, %v1417
      %1428 = vst [vmem:[#allocation5 + $0x150] sm:$0xff] %v1418
      %1429 = vst [vmem:[#allocation5 + $0x158] sm:$0xff] %v1419
      %1430 = vst.msk [vmem:[#allocation5 + $0x160] sm:$0xff] %vm438, %v1411
      %1431 = vst [vmem:[#allocation5 + $0x168] sm:$0xff] %v1420
      %1432 = vst [vmem:[#allocation5 + $0x170] sm:$0xff] %v1421
      %1433 = vst.msk [vmem:[#allocation5 + $0x178] sm:$0xff] %vm438, %v1417
      %1434 = vrot.lane.b32.xlu0 %v1204, 73
      %v1435 = vpop.permute.xlu0 %1434
      %1436 = vrot.lane.b32.xlu0 %v1205, 73
      %v1437 = vpop.permute.xlu0 %1436
      %1438 = vrot.lane.b32.xlu0 %v1206, 73
      %v1439 = vpop.permute.xlu0 %1438
      %1440 = vrot.lane.b32.xlu0 %v1207, 73
      %v1441 = vpop.permute.xlu0 %1440
      %1442 = vrot.lane.b32.xlu0 %v1208, 73
      %v1443 = vpop.permute.xlu0 %1442
      %1444 = vrot.lane.b32.xlu0 %v1209, 73
      %v1445 = vpop.permute.xlu0 %1444
      %v1446 = vsel %vm658, %v1435, %v1437
      %v1447 = vsel %vm658, %v1437, %v1439
      %v1448 = vsel %vm658, %v1441, %v1443
      %v1449 = vsel %vm658, %v1443, %v1445
      %1456 = vst [vmem:[#allocation5 + $0x180] sm:$0xff] %v1446
      %1457 = vst [vmem:[#allocation5 + $0x188] sm:$0xff] %v1447
      %1458 = vst.msk [vmem:[#allocation5 + $0x190] sm:$0xff] %vm438, %v1439
      %1459 = vst [vmem:[#allocation5 + $0x198] sm:$0xff] %v1448
      %1460 = vst [vmem:[#allocation5 + $0x1a0] sm:$0xff] %v1449
      %1461 = vst.msk [vmem:[#allocation5 + $0x1a8] sm:$0xff] %vm438, %v1445
      %v1462 = vld [vmem:[%s3 + $0x4] sm:$0xff]
      %v1463 = vld [vmem:[%s3 + $0xc] sm:$0xf]
      %v1464 = vld [vmem:[%s3 + $0x14] sm:$0xff]
      %v1465 = vld [vmem:[%s3 + $0x1c] sm:$0xf]
      %v1466 = vld [vmem:[%s3 + $0x24] sm:$0xff]
      %v1467 = vld [vmem:[%s3 + $0x2c] sm:$0xf]
      %v1468 = vld [vmem:[%s3 + $0x34] sm:$0x11]
      %v1469 = vld [vmem:[%s3 + $0x3c] sm:$0x1]
      %v1470 = vld [vmem:[#allocation5] sm:$0xff]
      %v1471 = vld [vmem:[#allocation5 + $0x8] sm:$0xff]
      %v1472 = vld [vmem:[#allocation5 + $0x10] sm:$0xff]
      %v1473 = vld [vmem:[#allocation5 + $0x18] sm:$0xff]
      %v1474 = vld [vmem:[#allocation5 + $0x20] sm:$0xff]
      %v1475 = vld [vmem:[#allocation5 + $0x28] sm:$0xff]
      %v1476 = vld [vmem:[#allocation5 + $0x30] sm:$0xff]
      %v1477 = vld [vmem:[#allocation5 + $0x38] sm:$0xff]
      %v1478 = vld [vmem:[#allocation5 + $0x40] sm:$0xff]
      %v1479 = vld [vmem:[#allocation5 + $0x48] sm:$0xff]
      %v1480 = vld [vmem:[#allocation5 + $0x50] sm:$0xff]
      %v1481 = vld [vmem:[#allocation5 + $0x58] sm:$0xff]
      %v1482 = vld [vmem:[#allocation5 + $0x60] sm:$0xff]
      %v1483 = vld [vmem:[#allocation5 + $0x68] sm:$0xff]
      %v1484 = vld [vmem:[#allocation5 + $0x70] sm:$0xff]
      %v1485 = vld [vmem:[#allocation5 + $0x78] sm:$0xff]
      %v1486 = vld [vmem:[#allocation5 + $0x80] sm:$0xff]
      %v1487 = vld [vmem:[#allocation5 + $0x88] sm:$0xff]
      %v1488 = vld [vmem:[#allocation5 + $0x90] sm:$0xff]
      %v1489 = vld [vmem:[#allocation5 + $0x98] sm:$0xff]
      %v1490 = vld [vmem:[#allocation5 + $0xa0] sm:$0xff]
      %v1491 = vld [vmem:[#allocation5 + $0xa8] sm:$0xff]
      %v1492 = vld [vmem:[#allocation5 + $0xb0] sm:$0xff]
      %v1493 = vld [vmem:[#allocation5 + $0xb8] sm:$0xff]
      %v1494 = vld [vmem:[#allocation5 + $0xc0] sm:$0xff]
      %v1495 = vld [vmem:[#allocation5 + $0xc8] sm:$0xff]
      %v1496 = vld [vmem:[#allocation5 + $0xd0] sm:$0xff]
      %v1497 = vld [vmem:[#allocation5 + $0xd8] sm:$0xff]
      %v1498 = vld [vmem:[#allocation5 + $0xe0] sm:$0xff]
      %v1499 = vld [vmem:[#allocation5 + $0xe8] sm:$0xff]
      %v1500 = vld [vmem:[#allocation5 + $0xf0] sm:$0xff]
      %v1501 = vld [vmem:[#allocation5 + $0xf8] sm:$0xff]
      %v1502 = vld [vmem:[#allocation5 + $0x100] sm:$0xff]
      %v1503 = vld [vmem:[#allocation5 + $0x108] sm:$0xff]
      %v1504 = vld [vmem:[#allocation5 + $0x110] sm:$0xff]
      %v1505 = vld [vmem:[#allocation5 + $0x118] sm:$0xff]
      %v1506 = vld [vmem:[#allocation5 + $0x120] sm:$0xff]
      %v1507 = vld [vmem:[#allocation5 + $0x128] sm:$0xff]
      %v1508 = vld [vmem:[#allocation5 + $0x130] sm:$0xff]
      %v1509 = vld [vmem:[#allocation5 + $0x138] sm:$0xff]
      %v1510 = vld [vmem:[#allocation5 + $0x140] sm:$0xff]
      %v1511 = vld [vmem:[#allocation5 + $0x148] sm:$0xff]
      %v1512 = vld [vmem:[#allocation5 + $0x150] sm:$0xff]
      %v1513 = vld [vmem:[#allocation5 + $0x158] sm:$0xff]
      %v1514 = vld [vmem:[#allocation5 + $0x160] sm:$0xff]
      %v1515 = vld [vmem:[#allocation5 + $0x168] sm:$0xff]
      %v1516 = vld [vmem:[#allocation5 + $0x170] sm:$0xff]
      %v1517 = vld [vmem:[#allocation5 + $0x178] sm:$0xff]
      %v1518 = vld [vmem:[#allocation5 + $0x180] sm:$0xff]
      %v1519 = vld [vmem:[#allocation5 + $0x188] sm:$0xff]
      %v1520 = vld [vmem:[#allocation5 + $0x190] sm:$0xff]
      %v1521 = vld [vmem:[#allocation5 + $0x198] sm:$0xff]
      %v1522 = vld [vmem:[#allocation5 + $0x1a0] sm:$0xff]
      %v1523 = vld [vmem:[#allocation5 + $0x1a8] sm:$0xff]
      %v1532 = vunpack.c.l.b16 %v1462
      %v1533 = vunpack.c.h.b16 %v1462
      %v1534 = vunpack.c.l.b16 %v1463
      %v1535 = vunpack.c.l.b16 %v1464
      %v1536 = vunpack.c.h.b16 %v1464
      %v1537 = vunpack.c.l.b16 %v1465
      %v1538 = vunpack.c.l.b16 %v1466
      %v1539 = vunpack.c.h.b16 %v1466
      %v1540 = vunpack.c.l.b16 %v1467
      %v1541 = vunpack.c.l.b16 %v1468
      %v1542 = vunpack.c.h.b16 %v1468
      %v1543 = vunpack.c.l.b16 %v1469
      %v1544 = vpack.c.b16 %v1535, %v1532
      %v1545 = vpack.c.b16 %v1536, %v1533
      %v1546 = vpack.c.b16 %v1537, %v1534
      %v1547 = vpack.c.b16 %v1541, %v1538
      %v1548 = vpack.c.b16 %v1542, %v1539
      %v1549 = vpack.c.b16 %v1543, %v1540
      %1550 = vrot.lane.b32.xlu0 %v1544, 112
      %v1551 = vpop.permute.xlu0 %1550
      %1552 = vrot.lane.b32.xlu0 %v1545, 112
      %v1553 = vpop.permute.xlu0 %1552
      %1554 = vrot.lane.b32.xlu0 %v1546, 112
      %v1555 = vpop.permute.xlu0 %1554
      %1556 = vrot.lane.b32.xlu0 %v1547, 112
      %v1557 = vpop.permute.xlu0 %1556
      %1558 = vrot.lane.b32.xlu0 %v1548, 112
      %v1559 = vpop.permute.xlu0 %1558
      %1560 = vrot.lane.b32.xlu0 %v1549, 112
      %v1561 = vpop.permute.xlu0 %1560
      %vm1562 = vcmask 916480
      %v1563 = vsel %vm1562, %v1551, %v1553
      %v1564 = vsel %vm1562, %v1553, %v1555
      %v1565 = vsel %vm1562, %v1557, %v1559
      %v1566 = vsel %vm1562, %v1559, %v1561
      %v1572 = vsel %vm438, %v1555, 0
      %v1575 = vsel %vm438, %v1561, 0
      %1577 = vmatprep.subr.bf16.mxu0 %v1471
      %1578 = vmatpush1.bf16.msra.mxu0 %v1470
      %1579 = vmatprep.subr.bf16.mxu0 %v1474
      %1580 = vmatpush1.bf16.msra.mxu0 %v1473
      %1581 = vmatprep.subr.bf16.mxu0 %v1477
      %1582 = vmatpush1.bf16.msra.mxu0 %v1476
      %1583 = vmatprep.subr.bf16.mxu0 %v1480
      %1584 = vmatpush1.bf16.msra.mxu0 %v1479
      %1585 = vmatprep.subr.bf16.mxu0 %v1483
      %1586 = vmatpush1.bf16.msra.mxu0 %v1482
      %1587 = vmatprep.subr.bf16.mxu0 %v1486
      %1588 = vmatpush1.bf16.msra.mxu0 %v1485
      %1589 = vmatprep.subr.bf16.mxu0 %v1489
      %1590 = vmatpush1.bf16.msra.mxu0 %v1488
      %1591 = vmatprep.subr.bf16.mxu0 %v1492
      %1592 = vmatpush1.bf16.msra.mxu0 %v1491
      %1593 = vmatprep.subr.bf16.mxu0 %v1495
      %1594 = vmatpush1.bf16.msra.mxu0 %v1494
      %1595 = vmatprep.subr.bf16.mxu0 %v1498
      %1596 = vmatpush1.bf16.msra.mxu0 %v1497
      %1597 = vmatprep.subr.bf16.mxu0 %v1501
      %1598 = vmatpush1.bf16.msra.mxu0 %v1500
      %1599 = vmatprep.subr.bf16.mxu0 %v1504
      %1600 = vmatpush1.bf16.msra.mxu0 %v1503
      %1601 = vmatprep.subr.bf16.mxu0 %v1507
      %1602 = vmatpush1.bf16.msra.mxu0 %v1506
      %1603 = vmatprep.subr.bf16.mxu0 %v1510
      %1604 = vmatpush1.bf16.msra.mxu0 %v1509
      %1605 = vmatprep.subr.bf16.mxu0 %v1513
      %1606 = vmatpush1.bf16.msra.mxu0 %v1512
      %1607 = vmatprep.subr.bf16.mxu0 %v1516
      %1608 = vmatpush1.bf16.msra.mxu0 %v1515
      %1609 = vmatprep.mubr.bf16.mxu0 %v1564
      %1610 = vmatmul.mubr.bf16.gmra.mrb[0].mxu0 %v1563
      %v1611 = vpop.f32.mrb[0].mxu0
      %v1612 = vadd.f32 0.0, %v1611
      %v1613 = vpop.f32.mrb[0].mxu0
      %v1614 = vadd.f32 0.0, %v1613
      %v1615 = vpop.f32.mrb[0].mxu0
      %v1616 = vadd.f32 0.0, %v1615
      %v1617 = vpop.f32.mrb[0].mxu0
      %v1618 = vadd.f32 0.0, %v1617
      %1619 = vmatprep.mubr.bf16.mxu0 %v1566
      %1620 = vmatmul.mubr.bf16.gmra.mrb[0].mxu0 %v1565
      %v1621 = vpop.f32.mrb[0].mxu0
      %v1622 = vadd.f32 0.0, %v1621
      %v1623 = vpop.f32.mrb[0].mxu0
      %v1624 = vadd.f32 0.0, %v1623
      %v1625 = vpop.f32.mrb[0].mxu0
      %v1626 = vadd.f32 0.0, %v1625
      %v1627 = vpop.f32.mrb[0].mxu0
      %v1628 = vadd.f32 0.0, %v1627
      %1629 = vdwg.mxu0
      %1630 = vmatprep.subr.bf16.mxu0 %v1519
      %1631 = vmatpush1.bf16.msra.mxu0 %v1518
      %1632 = vmatprep.subr.bf16.mxu0 %v1522
      %1633 = vmatpush1.bf16.msra.mxu0 %v1521
      %1634 = vmatprep.subr.bf16.mxu0 0
      %1635 = vmatpush1.bf16.msra.mxu0 0
      %1636 = vmatprep.subr.bf16.mxu0 0
      %1637 = vmatpush1.bf16.msra.mxu0 0
      %1638 = vmatprep.subr.bf16.mxu0 0
      %1639 = vmatpush1.bf16.msra.mxu0 0
      %1640 = vmatprep.subr.bf16.mxu0 0
      %1641 = vmatpush1.bf16.msra.mxu0 0
      %1642 = vmatprep.subr.bf16.mxu0 0
      %1643 = vmatpush1.bf16.msra.mxu0 0
      %1644 = vmatprep.subr.bf16.mxu0 0
      %1645 = vmatpush1.bf16.msra.mxu0 0
      %1646 = vmatprep.subr.bf16.mxu0 0
      %1647 = vmatpush1.bf16.msra.mxu0 0
      %1648 = vmatprep.subr.bf16.mxu0 0
      %1649 = vmatpush1.bf16.msra.mxu0 0
      %1650 = vmatprep.subr.bf16.mxu0 0
      %1651 = vmatpush1.bf16.msra.mxu0 0
      %1652 = vmatprep.subr.bf16.mxu0 0
      %1653 = vmatpush1.bf16.msra.mxu0 0
      %1654 = vmatprep.subr.bf16.mxu0 0
      %1655 = vmatpush1.bf16.msra.mxu0 0
      %1656 = vmatprep.subr.bf16.mxu0 0
      %1657 = vmatpush1.bf16.msra.mxu0 0
      %1658 = vmatprep.subr.bf16.mxu0 0
      %1659 = vmatpush1.bf16.msra.mxu0 0
      %1660 = vmatprep.subr.bf16.mxu0 0
      %1661 = vmatpush1.bf16.msra.mxu0 0
      %1662 = vmatprep.mubr.bf16.mxu0 0
      %1663 = vmatmul.mubr.bf16.gmra.mrb[0].mxu0 %v1572
      %v1664 = vpop.f32.mrb[0].mxu0
      %v1665 = vadd.f32 %v1612, %v1664
      %v1666 = vpop.f32.mrb[0].mxu0
      %v1667 = vadd.f32 %v1614, %v1666
      %v1668 = vpop.f32.mrb[0].mxu0
      %v1669 = vadd.f32 %v1616, %v1668
      %v1670 = vpop.f32.mrb[0].mxu0
      %v1671 = vadd.f32 %v1618, %v1670
      %1672 = vmatprep.mubr.bf16.mxu0 0
      %1673 = vmatmul.mubr.bf16.gmra.mrb[0].mxu0 %v1575
      %v1674 = vpop.f32.mrb[0].mxu0
      %v1675 = vadd.f32 %v1622, %v1674
      %v1676 = vpop.f32.mrb[0].mxu0
      %v1677 = vadd.f32 %v1624, %v1676
      %v1678 = vpop.f32.mrb[0].mxu0
      %v1679 = vadd.f32 %v1626, %v1678
      %v1680 = vpop.f32.mrb[0].mxu0
      %v1681 = vadd.f32 %v1628, %v1680
      %1682 = vdwg.mxu0
      %1683 = vmatprep.subr.bf16.mxu0 0
      %1684 = vmatpush1.bf16.msra.mxu0 %v1472
      %1685 = vmatprep.subr.bf16.mxu0 0
      %1686 = vmatpush1.bf16.msra.mxu0 %v1475
      %1687 = vmatprep.subr.bf16.mxu0 0
      %1688 = vmatpush1.bf16.msra.mxu0 %v1478
      %1689 = vmatprep.subr.bf16.mxu0 0
      %1690 = vmatpush1.bf16.msra.mxu0 %v1481
      %1691 = vmatprep.subr.bf16.mxu0 0
      %1692 = vmatpush1.bf16.msra.mxu0 %v1484
      %1693 = vmatprep.subr.bf16.mxu0 0
      %1694 = vmatpush1.bf16.msra.mxu0 %v1487
      %1695 = vmatprep.subr.bf16.mxu0 0
      %1696 = vmatpush1.bf16.msra.mxu0 %v1490
      %1697 = vmatprep.subr.bf16.mxu0 0
      %1698 = vmatpush1.bf16.msra.mxu0 %v1493
      %1699 = vmatprep.subr.bf16.mxu0 0
      %1700 = vmatpush1.bf16.msra.mxu0 %v1496
      %1701 = vmatprep.subr.bf16.mxu0 0
      %1702 = vmatpush1.bf16.msra.mxu0 %v1499
      %1703 = vmatprep.subr.bf16.mxu0 0
      %1704 = vmatpush1.bf16.msra.mxu0 %v1502
      %1705 = vmatprep.subr.bf16.mxu0 0
      %1706 = vmatpush1.bf16.msra.mxu0 %v1505
      %1707 = vmatprep.subr.bf16.mxu0 0
      %1708 = vmatpush1.bf16.msra.mxu0 %v1508
      %1709 = vmatprep.subr.bf16.mxu0 0
      %1710 = vmatpush1.bf16.msra.mxu0 %v1511
      %1711 = vmatprep.subr.bf16.mxu0 0
      %1712 = vmatpush1.bf16.msra.mxu0 %v1514
      %1713 = vmatprep.subr.bf16.mxu0 0
      %1714 = vmatpush1.bf16.msra.mxu0 %v1517
      %1715 = vmatprep.mubr.bf16.mxu0 %v1564
      %1716 = vmatmul.mubr.bf16.gmra.mrb[0].mxu0 %v1563
      %v1717 = vpop.f32.mrb[0].mxu0
      %v1718 = vadd.f32 0.0, %v1717
      %v1719 = vpop.f32.mrb[0].mxu0
      %v1720 = vpop.f32.mrb[0].mxu0
      %v1721 = vadd.f32 0.0, %v1720
      %v1722 = vpop.f32.mrb[0].mxu0
      %1723 = vmatprep.mubr.bf16.mxu0 %v1566
      %1724 = vmatmul.mubr.bf16.gmra.mrb[0].mxu0 %v1565
      %v1725 = vpop.f32.mrb[0].mxu0
      %v1726 = vadd.f32 0.0, %v1725
      %v1727 = vpop.f32.mrb[0].mxu0
      %v1728 = vpop.f32.mrb[0].mxu0
      %v1729 = vadd.f32 0.0, %v1728
      %v1730 = vpop.f32.mrb[0].mxu0
      %1731 = vdwg.mxu0
      %1732 = vmatprep.subr.bf16.mxu0 0
      %1733 = vmatpush1.bf16.msra.mxu0 %v1520
      %1734 = vmatprep.subr.bf16.mxu0 0
      %1735 = vmatpush1.bf16.msra.mxu0 %v1523
      %1736 = vmatprep.subr.bf16.mxu0 0
      %1737 = vmatpush1.bf16.msra.mxu0 0
      %1738 = vmatprep.subr.bf16.mxu0 0
      %1739 = vmatpush1.bf16.msra.mxu0 0
      %1740 = vmatprep.subr.bf16.mxu0 0
      %1741 = vmatpush1.bf16.msra.mxu0 0
      %1742 = vmatprep.subr.bf16.mxu0 0
      %1743 = vmatpush1.bf16.msra.mxu0 0
      %1744 = vmatprep.subr.bf16.mxu0 0
      %1745 = vmatpush1.bf16.msra.mxu0 0
      %1746 = vmatprep.subr.bf16.mxu0 0
      %1747 = vmatpush1.bf16.msra.mxu0 0
      %1748 = vmatprep.subr.bf16.mxu0 0
      %1749 = vmatpush1.bf16.msra.mxu0 0
      %1750 = vmatprep.subr.bf16.mxu0 0
      %1751 = vmatpush1.bf16.msra.mxu0 0
      %1752 = vmatprep.subr.bf16.mxu0 0
      %1753 = vmatpush1.bf16.msra.mxu0 0
      %1754 = vmatprep.subr.bf16.mxu0 0
      %1755 = vmatpush1.bf16.msra.mxu0 0
      %1756 = vmatprep.subr.bf16.mxu0 0
      %1757 = vmatpush1.bf16.msra.mxu0 0
      %1758 = vmatprep.subr.bf16.mxu0 0
      %1759 = vmatpush1.bf16.msra.mxu0 0
      %1760 = vmatprep.subr.bf16.mxu0 0
      %1761 = vmatpush1.bf16.msra.mxu0 0
      %1762 = vmatprep.subr.bf16.mxu0 0
      %1763 = vmatpush1.bf16.msra.mxu0 0
      %1764 = vmatprep.mubr.bf16.mxu0 0
      %1765 = vmatmul.mubr.bf16.gmra.mrb[0].mxu0 %v1572
      %v1766 = vpop.f32.mrb[0].mxu0
      %v1767 = vadd.f32 %v1718, %v1766
      %v1768 = vpop.f32.mrb[0].mxu0
      %v1769 = vpop.f32.mrb[0].mxu0
      %v1770 = vadd.f32 %v1721, %v1769
      %v1771 = vpop.f32.mrb[0].mxu0
      %1772 = vmatprep.mubr.bf16.mxu0 0
      %1773 = vmatmul.mubr.bf16.gmra.mrb[0].mxu0 %v1575
      %v1774 = vpop.f32.mrb[0].mxu0
      %v1775 = vadd.f32 %v1726, %v1774
      %v1776 = vpop.f32.mrb[0].mxu0
      %v1777 = vpop.f32.mrb[0].mxu0
      %v1778 = vadd.f32 %v1729, %v1777
      %v1779 = vpop.f32.mrb[0].mxu0
      %1780 = vdwg.mxu0
      %v1785 = vunpack.c.l.b16 %v1145
      %v1786 = vunpack.c.h.b16 %v1145
      %v1787 = vunpack.c.l.b16 %v1146
      %v1788 = vunpack.c.h.b16 %v1146
      %v1789 = vunpack.c.l.b16 %v1147
      %v1790 = vunpack.c.h.b16 %v1147
      %v1791 = vunpack.c.l.b16 %v1148
      %v1792 = vunpack.c.h.b16 %v1148
      %v1793 = vpack.c.b16 %v1787, %v1785
      %v1794 = vpack.c.b16 %v1788, %v1786
      %v1795 = vpack.c.b16 %v1791, %v1789
      %v1796 = vpack.c.b16 %v1792, %v1790
      %vm1799 = vcmask 130048
      %v1801 = vsel %vm1799, %v1794, 0
      %v1804 = vsel %vm1799, %v1796, 0
      %1806 = vmatprep.subr.bf16.mxu0 %v1150
      %1807 = vmatpush1.bf16.msra.mxu0 %v1149
      %1808 = vmatprep.subr.bf16.mxu0 %v1153
      %1809 = vmatpush1.bf16.msra.mxu0 %v1152
      %1810 = vmatprep.subr.bf16.mxu0 %v1156
      %1811 = vmatpush1.bf16.msra.mxu0 %v1155
      %1812 = vmatprep.subr.bf16.mxu0 %v1159
      %1813 = vmatpush1.bf16.msra.mxu0 %v1158
      %1814 = vmatprep.subr.bf16.mxu0 %v1162
      %1815 = vmatpush1.bf16.msra.mxu0 %v1161
      %1816 = vmatprep.subr.bf16.mxu0 %v1165
      %1817 = vmatpush1.bf16.msra.mxu0 %v1164
      %1818 = vmatprep.subr.bf16.mxu0 %v1168
      %1819 = vmatpush1.bf16.msra.mxu0 %v1167
      %1820 = vmatprep.subr.bf16.mxu0 %v1171
      %1821 = vmatpush1.bf16.msra.mxu0 %v1170
      %1822 = vmatprep.subr.bf16.mxu0 %v1174
      %1823 = vmatpush1.bf16.msra.mxu0 %v1173
      %1824 = vmatprep.subr.bf16.mxu0 0
      %1825 = vmatpush1.bf16.msra.mxu0 0
      %1826 = vmatprep.subr.bf16.mxu0 0
      %1827 = vmatpush1.bf16.msra.mxu0 0
      %1828 = vmatprep.subr.bf16.mxu0 0
      %1829 = vmatpush1.bf16.msra.mxu0 0
      %1830 = vmatprep.subr.bf16.mxu0 0
      %1831 = vmatpush1.bf16.msra.mxu0 0
      %1832 = vmatprep.subr.bf16.mxu0 0
      %1833 = vmatpush1.bf16.msra.mxu0 0
      %1834 = vmatprep.subr.bf16.mxu0 0
      %1835 = vmatpush1.bf16.msra.mxu0 0
      %1836 = vmatprep.subr.bf16.mxu0 0
      %1837 = vmatpush1.bf16.msra.mxu0 0
      %1838 = vmatprep.mubr.bf16.mxu0 %v1801
      %1839 = vmatmul.mubr.bf16.gmra.mrb[0].mxu0 %v1793
      %v1840 = vpop.f32.mrb[0].mxu0
      %v1841 = vadd.f32 %v1665, %v1840
      %v1842 = vpop.f32.mrb[0].mxu0
      %v1843 = vadd.f32 %v1667, %v1842
      %v1844 = vpop.f32.mrb[0].mxu0
      %v1845 = vadd.f32 %v1669, %v1844
      %v1846 = vpop.f32.mrb[0].mxu0
      %v1847 = vadd.f32 %v1671, %v1846
      %1848 = vmatprep.mubr.bf16.mxu0 %v1804
      %1849 = vmatmul.mubr.bf16.gmra.mrb[0].mxu0 %v1795
      %v1850 = vpop.f32.mrb[0].mxu0
      %v1851 = vadd.f32 %v1675, %v1850
      %v1852 = vpop.f32.mrb[0].mxu0
      %v1853 = vadd.f32 %v1677, %v1852
      %v1854 = vpop.f32.mrb[0].mxu0
      %v1855 = vadd.f32 %v1679, %v1854
      %v1856 = vpop.f32.mrb[0].mxu0
      %v1857 = vadd.f32 %v1681, %v1856
      %1858 = vdwg.mxu0
      %1859 = vmatprep.subr.bf16.mxu0 0
      %1860 = vmatpush1.bf16.msra.mxu0 %v1151
      %1861 = vmatprep.subr.bf16.mxu0 0
      %1862 = vmatpush1.bf16.msra.mxu0 %v1154
      %1863 = vmatprep.subr.bf16.mxu0 0
      %1864 = vmatpush1.bf16.msra.mxu0 %v1157
      %1865 = vmatprep.subr.bf16.mxu0 0
      %1866 = vmatpush1.bf16.msra.mxu0 %v1160
      %1867 = vmatprep.subr.bf16.mxu0 0
      %1868 = vmatpush1.bf16.msra.mxu0 %v1163
      %1869 = vmatprep.subr.bf16.mxu0 0
      %1870 = vmatpush1.bf16.msra.mxu0 %v1166
      %1871 = vmatprep.subr.bf16.mxu0 0
      %1872 = vmatpush1.bf16.msra.mxu0 %v1169
      %1873 = vmatprep.subr.bf16.mxu0 0
      %1874 = vmatpush1.bf16.msra.mxu0 %v1172
      %1875 = vmatprep.subr.bf16.mxu0 0
      %1876 = vmatpush1.bf16.msra.mxu0 %v1175
      %1877 = vmatprep.subr.bf16.mxu0 0
      %1878 = vmatpush1.bf16.msra.mxu0 0
      %1879 = vmatprep.subr.bf16.mxu0 0
      %1880 = vmatpush1.bf16.msra.mxu0 0
      %1881 = vmatprep.subr.bf16.mxu0 0
      %1882 = vmatpush1.bf16.msra.mxu0 0
      %1883 = vmatprep.subr.bf16.mxu0 0
      %1884 = vmatpush1.bf16.msra.mxu0 0
      %1885 = vmatprep.subr.bf16.mxu0 0
      %1886 = vmatpush1.bf16.msra.mxu0 0
      %1887 = vmatprep.subr.bf16.mxu0 0
      %1888 = vmatpush1.bf16.msra.mxu0 0
      %1889 = vmatprep.subr.bf16.mxu0 0
      %1890 = vmatpush1.bf16.msra.mxu0 0
      %1891 = vmatprep.mubr.bf16.mxu0 %v1801
      %1892 = vmatmul.mubr.bf16.gmra.mrb[0].mxu0 %v1793
      %v1893 = vpop.f32.mrb[0].mxu0
      %v1894 = vadd.f32 %v1767, %v1893
      %v1895 = vpop.f32.mrb[0].mxu0
      %v1896 = vpop.f32.mrb[0].mxu0
      %v1897 = vadd.f32 %v1770, %v1896
      %v1898 = vpop.f32.mrb[0].mxu0
      %1899 = vmatprep.mubr.bf16.mxu0 %v1804
      %1900 = vmatmul.mubr.bf16.gmra.mrb[0].mxu0 %v1795
      %v1901 = vpop.f32.mrb[0].mxu0
      %v1902 = vadd.f32 %v1775, %v1901
      %v1903 = vpop.f32.mrb[0].mxu0
      %v1904 = vpop.f32.mrb[0].mxu0
      %v1905 = vadd.f32 %v1778, %v1904
      %v1906 = vpop.f32.mrb[0].mxu0
      %1907 = vdwg.mxu0
      %v1908 = vld [vmem:[%s7] sm:$0xff]
      %v1909 = vld [vmem:[%s7 + $0x8] sm:$0xff]
      %v1910 = vld [vmem:[%s7 + $0x10] sm:$0xff]
      %v1911 = vld [vmem:[%s7 + $0x18] sm:$0x3]
      %1913 = vset.pattern.permute.xlu0 0
      %1914 = vperm.xlu0 %1913, %v1908
      %v1915 = vpop.permute.xlu0 %1914
      %1918 = vset.pattern.permute.xlu0 0
      %1919 = vperm.xlu0 %1918, %v1909
      %v1920 = vpop.permute.xlu0 %1919
      %1923 = vset.pattern.permute.xlu0 0
      %1924 = vperm.xlu0 %1923, %v1910
      %v1925 = vpop.permute.xlu0 %1924
      %1928 = vset.pattern.permute.xlu0 0
      %1929 = vperm.xlu0 %1928, %v1911
      %v1930 = vpop.permute.xlu0 %1929
      %v1932 = vadd.f32 %v1841, %v1915
      %v1933 = vadd.f32 %v1843, %v1915
      %v1934 = vadd.f32 %v1894, %v1915
      %v1935 = vadd.f32 %v1845, %v1920
      %v1936 = vadd.f32 %v1847, %v1920
      %v1937 = vadd.f32 %v1897, %v1920
      %v1938 = vadd.f32 %v1851, %v1925
      %v1939 = vadd.f32 %v1853, %v1925
      %v1940 = vadd.f32 %v1902, %v1925
      %v1941 = vadd.f32 %v1855, %v1930
      %v1942 = vadd.f32 %v1857, %v1930
      %v1943 = vadd.f32 %v1905, %v1930
      %vm1944 = vcmp.ge.f32.partialorder %v1932, 0.0
      %vm1945 = vcmp.ge.f32.partialorder %v1933, 0.0
      %vm1946 = vcmp.ge.f32.partialorder %v1934, 0.0
      %vm1947 = vcmp.ge.f32.partialorder %v1935, 0.0
      %vm1948 = vcmp.ge.f32.partialorder %v1936, 0.0
      %vm1949 = vcmp.ge.f32.partialorder %v1937, 0.0
      %vm1950 = vcmp.ge.f32.partialorder %v1938, 0.0
      %vm1951 = vcmp.ge.f32.partialorder %v1939, 0.0
      %vm1952 = vcmp.ge.f32.partialorder %v1940, 0.0
      %vm1953 = vcmp.ge.f32.partialorder %v1941, 0.0
      %vm1954 = vcmp.ge.f32.partialorder %v1942, 0.0
      %vm1955 = vcmp.ge.f32.partialorder %v1943, 0.0
      %v1956 = vmul.f32 %v1932, 0.01
      %v1957 = vmul.f32 %v1933, 0.01
      %v1958 = vmul.f32 %v1934, 0.01
      %v1959 = vmul.f32 %v1935, 0.01
      %v1960 = vmul.f32 %v1936, 0.01
      %v1961 = vmul.f32 %v1937, 0.01
      %v1962 = vmul.f32 %v1938, 0.01
      %v1963 = vmul.f32 %v1939, 0.01
      %v1964 = vmul.f32 %v1940, 0.01
      %v1965 = vmul.f32 %v1941, 0.01
      %v1966 = vmul.f32 %v1942, 0.01
      %v1967 = vmul.f32 %v1943, 0.01
      %v1968 = vsel %vm1944, %v1932, %v1956
      %v1969 = vsel %vm1945, %v1933, %v1957
      %v1970 = vsel %vm1946, %v1934, %v1958
      %v1971 = vsel %vm1947, %v1935, %v1959
      %v1972 = vsel %vm1948, %v1936, %v1960
      %v1973 = vsel %vm1949, %v1937, %v1961
      %v1974 = vsel %vm1950, %v1938, %v1962
      %v1975 = vsel %vm1951, %v1939, %v1963
      %v1976 = vsel %vm1952, %v1940, %v1964
      %v1977 = vsel %vm1953, %v1941, %v1965
      %v1978 = vsel %vm1954, %v1942, %v1966
      %v1979 = vsel %vm1955, %v1943, %v1967
      %v1980 = vmul.f32 %v1968, %v953
      %v1981 = vmul.f32 %v1969, %v957
      %v1982 = vmul.f32 %v1970, %v961
      %v1983 = vmul.f32 %v1971, %v953
      %v1984 = vmul.f32 %v1972, %v957
      %v1985 = vmul.f32 %v1973, %v961
      %v1986 = vmul.f32 %v1974, %v953
      %v1987 = vmul.f32 %v1975, %v957
      %v1988 = vmul.f32 %v1976, %v961
      %v1989 = vmul.f32 %v1977, %v953
      %v1990 = vmul.f32 %v1978, %v957
      %v1991 = vmul.f32 %v1979, %v961
      %v1992 = vpack.c.bf16 %v1983, %v1980
      %v1993 = vpack.c.bf16 %v1984, %v1981
      %v1994 = vpack.c.bf16 %v1985, %v1982
      %v1995 = vpack.c.bf16 %v1989, %v1986
      %v1996 = vpack.c.bf16 %v1990, %v1987
      %v1997 = vpack.c.bf16 %v1991, %v1988
      %v2004 = vunpack.c.l.b16 %v1992
      %v2005 = vunpack.c.l.b16 %v1993
      %v2006 = vunpack.c.l.b16 %v1994
      %v2007 = vunpack.c.h.b16 %v1992
      %v2008 = vunpack.c.h.b16 %v1993
      %v2009 = vunpack.c.h.b16 %v1994
      %v2010 = vunpack.c.l.b16 %v1995
      %v2011 = vunpack.c.l.b16 %v1996
      %v2012 = vunpack.c.l.b16 %v1997
      %v2013 = vunpack.c.h.b16 %v1995
      %v2014 = vunpack.c.h.b16 %v1996
      %v2015 = vunpack.c.h.b16 %v1997
      %v2016 = vpack.c.b16 %v2005, %v2004
      %v2017 = vpack.c.b16 %v2006, %v2006
      %v2018 = vpack.c.b16 %v2008, %v2007
      %v2019 = vpack.c.b16 %v2009, %v2009
      %v2020 = vpack.c.b16 %v2011, %v2010
      %v2021 = vpack.c.b16 %v2012, %v2012
      %v2022 = vpack.c.b16 %v2014, %v2013
      %v2023 = vpack.c.b16 %v2015, %v2015
      %2024 = vrot.lane.b32.xlu0 %v2016, 36
      %v2025 = vpop.permute.xlu0 %2024
      %2026 = vrot.lane.b32.xlu0 %v2017, 36
      %v2027 = vpop.permute.xlu0 %2026
      %2028 = vrot.lane.b32.xlu0 %v2018, 36
      %v2029 = vpop.permute.xlu0 %2028
      %2030 = vrot.lane.b32.xlu0 %v2019, 36
      %v2031 = vpop.permute.xlu0 %2030
      %2032 = vrot.lane.b32.xlu0 %v2020, 36
      %v2033 = vpop.permute.xlu0 %2032
      %2034 = vrot.lane.b32.xlu0 %v2021, 36
      %v2035 = vpop.permute.xlu0 %2034
      %2036 = vrot.lane.b32.xlu0 %v2022, 36
      %v2037 = vpop.permute.xlu0 %2036
      %2038 = vrot.lane.b32.xlu0 %v2023, 36
      %v2039 = vpop.permute.xlu0 %2038
      %v2040 = vrot.slane %v2025, 4
      %v2041 = vrot.slane %v2029, 4
      %v2042 = vrot.slane %v2033, 4
      %v2043 = vrot.slane %v2037, 4
      %v2044 = vsel %vm983, %v2040, %v2025
      %v2045 = vsel %vm983, %v2040, %v2027
      %v2046 = vsel %vm983, %v2041, %v2029
      %v2047 = vsel %vm983, %v2041, %v2031
      %v2048 = vsel %vm983, %v2042, %v2033
      %v2049 = vsel %vm983, %v2042, %v2035
      %v2050 = vsel %vm983, %v2043, %v2037
      %v2051 = vsel %vm983, %v2043, %v2039
      %vm2060 = vcmask 1043744
      %vm2061 = vcmask 1047556
      %vm2062 = vmor %vm2061, %vm2060
      %2063 = vst.msk [vmem:[#allocation3] sm:$0xff] %vm2062, %v2044
      %vm2064 = vcmask 551936
      %2065 = vst.msk [vmem:[#allocation3 + $0x8] sm:$0xf] %vm2064, %v2045
      %2066 = vst.msk [vmem:[#allocation3 + $0xc] sm:$0xff] %vm2062, %v2046
      %2067 = vst.msk [vmem:[#allocation3 + $0x14] sm:$0xf] %vm2064, %v2047
      %2068 = vst.msk [vmem:[#allocation3 + $0x18] sm:$0xff] %vm2062, %v2048
      %2069 = vst.msk [vmem:[#allocation3 + $0x20] sm:$0xf] %vm2064, %v2049
      %vm2070 = vcmask 1040672
      %vm2071 = vcmask 1044484
      %vm2072 = vmor %vm2071, %vm2070
      %2073 = vst.msk [vmem:[#allocation3 + $0x24] sm:$0x11] %vm2072, %v2050
      %vm2074 = vcmask 548864
      %2075 = vst.msk [vmem:[#allocation3 + $0x2c] sm:$0x1] %vm2074, %v2051
      %v2076 = vld [vmem:[#allocation3] sm:$0xff]
      %v2077 = vld [vmem:[#allocation3 + $0x8] sm:$0xf]
      %v2078 = vld [vmem:[#allocation3 + $0xc] sm:$0xff]
      %v2079 = vld [vmem:[#allocation3 + $0x14] sm:$0xf]
      %v2080 = vld [vmem:[#allocation3 + $0x18] sm:$0xff]
      %v2081 = vld [vmem:[#allocation3 + $0x20] sm:$0xf]
      %v2082 = vld [vmem:[#allocation3 + $0x24] sm:$0x11]
      %v2083 = vld [vmem:[#allocation3 + $0x2c] sm:$0x1]
      %v2092 = vunpack.c.l.b16 %v2076
      %v2093 = vunpack.c.h.b16 %v2076
      %v2094 = vunpack.c.l.b16 %v2077
      %v2095 = vunpack.c.l.b16 %v2078
      %v2096 = vunpack.c.h.b16 %v2078
      %v2097 = vunpack.c.l.b16 %v2079
      %v2098 = vunpack.c.l.b16 %v2080
      %v2099 = vunpack.c.h.b16 %v2080
      %v2100 = vunpack.c.l.b16 %v2081
      %v2101 = vunpack.c.l.b16 %v2082
      %v2102 = vunpack.c.h.b16 %v2082
      %v2103 = vunpack.c.l.b16 %v2083
      %v2104 = vpack.c.b16 %v2095, %v2092
      %v2105 = vpack.c.b16 %v2096, %v2093
      %v2106 = vpack.c.b16 %v2097, %v2094
      %v2107 = vpack.c.b16 %v2101, %v2098
      %v2108 = vpack.c.b16 %v2102, %v2099
      %v2109 = vpack.c.b16 %v2103, %v2100
      %2110 = vrot.lane.b32.xlu0 %v2104, 111
      %v2111 = vpop.permute.xlu0 %2110
      %2112 = vrot.lane.b32.xlu0 %v2105, 111
      %v2113 = vpop.permute.xlu0 %2112
      %2114 = vrot.lane.b32.xlu0 %v2106, 111
      %v2115 = vpop.permute.xlu0 %2114
      %2116 = vrot.lane.b32.xlu0 %v2107, 111
      %v2117 = vpop.permute.xlu0 %2116
      %2118 = vrot.lane.b32.xlu0 %v2108, 111
      %v2119 = vpop.permute.xlu0 %2118
      %2120 = vrot.lane.b32.xlu0 %v2109, 111
      %v2121 = vpop.permute.xlu0 %2120
      %v2122 = vsel %vm425, %v2111, %v2113
      %v2123 = vsel %vm425, %v2113, %v2115
      %v2124 = vsel %vm425, %v2117, %v2119
      %v2125 = vsel %vm425, %v2119, %v2121
      %2132 = vst [vmem:[#allocation5] sm:$0xff] %v2122
      %2133 = vst [vmem:[#allocation5 + $0x8] sm:$0xff] %v2123
      %2134 = vst.msk [vmem:[#allocation5 + $0x10] sm:$0xff] %vm438, %v2115
      %2135 = vst [vmem:[#allocation5 + $0x18] sm:$0x1f] %v2124
      %2136 = vst [vmem:[#allocation5 + $0x20] sm:$0x1f] %v2125
      %vm2137 = vcmask 258048
      %2138 = vst.msk [vmem:[#allocation5 + $0x28] sm:$0x1f] %vm2137, %v2121
      %vm2139 = vcmask 1044480
      %v2140 = vrot.slane %v2104, 3
      %v2141 = vrot.slane %v2105, 3
      %v2142 = vrot.slane %v2106, 3
      %v2143 = vrot.slane %v2107, 3
      %v2144 = vsel %vm2139, %v2140, %v2143
      %v2145 = vrot.slane %v2108, 3
      %v2146 = vsel %vm2139, %v2141, %v2145
      %v2147 = vrot.slane %v2109, 3
      %v2148 = vsel %vm2139, %v2142, %v2147
      %2149 = vrot.lane.b32.xlu0 %v2140, 110
      %v2150 = vpop.permute.xlu0 %2149
      %2151 = vrot.lane.b32.xlu0 %v2141, 110
      %v2152 = vpop.permute.xlu0 %2151
      %2153 = vrot.lane.b32.xlu0 %v2142, 110
      %v2154 = vpop.permute.xlu0 %2153
      %2155 = vrot.lane.b32.xlu0 %v2144, 110
      %v2156 = vpop.permute.xlu0 %2155
      %2157 = vrot.lane.b32.xlu0 %v2146, 110
      %v2158 = vpop.permute.xlu0 %2157
      %2159 = vrot.lane.b32.xlu0 %v2148, 110
      %v2160 = vpop.permute.xlu0 %2159
      %2161 = vrot.lane.b32.xlu0 %v2143, 110
      %v2162 = vpop.permute.xlu0 %2161
      %2163 = vrot.lane.b32.xlu0 %v2145, 110
      %v2164 = vpop.permute.xlu0 %2163
      %2165 = vrot.lane.b32.xlu0 %v2147, 110
      %v2166 = vpop.permute.xlu0 %2165
      %v2167 = vsel %vm455, %v2150, %v2152
      %v2168 = vsel %vm455, %v2152, %v2154
      %v2169 = vsel %vm455, %v2156, %v2158
      %v2170 = vsel %vm455, %v2158, %v2160
      %v2171 = vsel %vm455, %v2162, %v2164
      %v2172 = vsel %vm455, %v2164, %v2166
      %2182 = vst [vmem:[#allocation5 + $0x18] sm:$0xe0] %v2167
      %2183 = vst [vmem:[#allocation5 + $0x20] sm:$0xe0] %v2168
      %vm2184 = vcmask 261125
      %2185 = vst.msk [vmem:[#allocation5 + $0x28] sm:$0xe0] %vm2184, %v2154
      %2186 = vst [vmem:[#allocation5 + $0x30] sm:$0xff] %v2169
      %2187 = vst [vmem:[#allocation5 + $0x38] sm:$0xff] %v2170
      %2188 = vst.msk [vmem:[#allocation5 + $0x40] sm:$0xff] %vm438, %v2160
      %2189 = vst [vmem:[#allocation5 + $0x48] sm:$0x3] %v2171
      %2190 = vst [vmem:[#allocation5 + $0x50] sm:$0x3] %v2172
      %vm2191 = vcmask 254976
      %2192 = vst.msk [vmem:[#allocation5 + $0x58] sm:$0x3] %vm2191, %v2166
      %vm2193 = vcmask 1041408
      %v2194 = vrot.slane %v2104, 6
      %v2195 = vrot.slane %v2105, 6
      %v2196 = vrot.slane %v2106, 6
      %v2197 = vrot.slane %v2107, 6
      %v2198 = vsel %vm2193, %v2194, %v2197
      %v2199 = vrot.slane %v2108, 6
      %v2200 = vsel %vm2193, %v2195, %v2199
      %v2201 = vrot.slane %v2109, 6
      %v2202 = vsel %vm2193, %v2196, %v2201
      %2203 = vrot.lane.b32.xlu0 %v2194, 109
      %v2204 = vpop.permute.xlu0 %2203
      %2205 = vrot.lane.b32.xlu0 %v2195, 109
      %v2206 = vpop.permute.xlu0 %2205
      %2207 = vrot.lane.b32.xlu0 %v2196, 109
      %v2208 = vpop.permute.xlu0 %2207
      %2209 = vrot.lane.b32.xlu0 %v2198, 109
      %v2210 = vpop.permute.xlu0 %2209
      %2211 = vrot.lane.b32.xlu0 %v2200, 109
      %v2212 = vpop.permute.xlu0 %2211
      %2213 = vrot.lane.b32.xlu0 %v2202, 109
      %v2214 = vpop.permute.xlu0 %2213
      %v2215 = vsel %vm484, %v2204, %v2206
      %v2216 = vsel %vm484, %v2206, %v2208
      %v2217 = vsel %vm484, %v2210, %v2212
      %v2218 = vsel %vm484, %v2212, %v2214
      %2225 = vst [vmem:[#allocation5 + $0x48] sm:$0xfc] %v2215
      %2226 = vst [vmem:[#allocation5 + $0x50] sm:$0xfc] %v2216
      %vm2227 = vcmask 261122
      %2228 = vst.msk [vmem:[#allocation5 + $0x58] sm:$0xfc] %vm2227, %v2208
      %2229 = vst [vmem:[#allocation5 + $0x60] sm:$0x7f] %v2217
      %2230 = vst [vmem:[#allocation5 + $0x68] sm:$0x7f] %v2218
      %vm2231 = vcmask 260096
      %2232 = vst.msk [vmem:[#allocation5 + $0x70] sm:$0x7f] %vm2231, %v2214
      %vm2233 = vcmask 1046528
      %v2234 = vrot.slane %v2104, 1
      %v2235 = vrot.slane %v2105, 1
      %v2236 = vrot.slane %v2106, 1
      %v2237 = vrot.slane %v2107, 1
      %v2238 = vsel %vm2233, %v2234, %v2237
      %v2239 = vrot.slane %v2108, 1
      %v2240 = vsel %vm2233, %v2235, %v2239
      %v2241 = vrot.slane %v2109, 1
      %v2242 = vsel %vm2233, %v2236, %v2241
      %2243 = vrot.lane.b32.xlu0 %v2234, 93
      %v2244 = vpop.permute.xlu0 %2243
      %2245 = vrot.lane.b32.xlu0 %v2235, 93
      %v2246 = vpop.permute.xlu0 %2245
      %2247 = vrot.lane.b32.xlu0 %v2236, 93
      %v2248 = vpop.permute.xlu0 %2247
      %2249 = vrot.lane.b32.xlu0 %v2238, 93
      %v2250 = vpop.permute.xlu0 %2249
      %2251 = vrot.lane.b32.xlu0 %v2240, 93
      %v2252 = vpop.permute.xlu0 %2251
      %2253 = vrot.lane.b32.xlu0 %v2242, 93
      %v2254 = vpop.permute.xlu0 %2253
      %2255 = vrot.lane.b32.xlu0 %v2237, 93
      %v2256 = vpop.permute.xlu0 %2255
      %2257 = vrot.lane.b32.xlu0 %v2239, 93
      %v2258 = vpop.permute.xlu0 %2257
      %2259 = vrot.lane.b32.xlu0 %v2241, 93
      %v2260 = vpop.permute.xlu0 %2259
      %v2261 = vsel %vm513, %v2244, %v2246
      %v2262 = vsel %vm513, %v2246, %v2248
      %v2263 = vsel %vm513, %v2250, %v2252
      %v2264 = vsel %vm513, %v2252, %v2254
      %v2265 = vsel %vm513, %v2256, %v2258
      %v2266 = vsel %vm513, %v2258, %v2260
      %2276 = vst [vmem:[#allocation5 + $0x60] sm:$0x80] %v2261
      %2277 = vst [vmem:[#allocation5 + $0x68] sm:$0x80] %v2262
      %vm2278 = vcmask 261127
      %2279 = vst.msk [vmem:[#allocation5 + $0x70] sm:$0x80] %vm2278, %v2248
      %2280 = vst [vmem:[#allocation5 + $0x78] sm:$0xff] %v2263
      %2281 = vst [vmem:[#allocation5 + $0x80] sm:$0xff] %v2264
      %2282 = vst.msk [vmem:[#allocation5 + $0x88] sm:$0xff] %vm438, %v2254
      %2283 = vst [vmem:[#allocation5 + $0x90] sm:$0xf] %v2265
      %2284 = vst [vmem:[#allocation5 + $0x98] sm:$0xf] %v2266
      %2285 = vst.msk [vmem:[#allocation5 + $0xa0] sm:$0xf] %vm1009, %v2260
      %v2286 = vpack.c.b16 %v2092, %v2092
      %v2287 = vpack.c.b16 %v2093, %v2093
      %v2288 = vpack.c.b16 %v2094, %v2094
      %v2289 = vpack.c.b16 %v2098, %v2095
      %v2290 = vpack.c.b16 %v2099, %v2096
      %v2291 = vpack.c.b16 %v2100, %v2097
      %v2292 = vpack.c.b16 %v2101, %v2101
      %v2293 = vpack.c.b16 %v2102, %v2102
      %v2294 = vpack.c.b16 %v2103, %v2103
      %2295 = vrot.lane.b32.xlu0 %v2286, 92
      %v2296 = vpop.permute.xlu0 %2295
      %2297 = vrot.lane.b32.xlu0 %v2287, 92
      %v2298 = vpop.permute.xlu0 %2297
      %2299 = vrot.lane.b32.xlu0 %v2288, 92
      %v2300 = vpop.permute.xlu0 %2299
      %2301 = vrot.lane.b32.xlu0 %v2289, 92
      %v2302 = vpop.permute.xlu0 %2301
      %2303 = vrot.lane.b32.xlu0 %v2290, 92
      %v2304 = vpop.permute.xlu0 %2303
      %2305 = vrot.lane.b32.xlu0 %v2291, 92
      %v2306 = vpop.permute.xlu0 %2305
      %2307 = vrot.lane.b32.xlu0 %v2292, 92
      %v2308 = vpop.permute.xlu0 %2307
      %2309 = vrot.lane.b32.xlu0 %v2293, 92
      %v2310 = vpop.permute.xlu0 %2309
      %2311 = vrot.lane.b32.xlu0 %v2294, 92
      %v2312 = vpop.permute.xlu0 %2311
      %v2313 = vsel %vm542, %v2296, %v2298
      %v2314 = vsel %vm542, %v2298, %v2300
      %v2315 = vsel %vm542, %v2302, %v2304
      %v2316 = vsel %vm542, %v2304, %v2306
      %v2317 = vsel %vm542, %v2308, %v2310
      %v2318 = vsel %vm542, %v2310, %v2312
      %2328 = vst [vmem:[#allocation5 + $0x90] sm:$0xf0] %v2313
      %2329 = vst [vmem:[#allocation5 + $0x98] sm:$0xf0] %v2314
      %vm2330 = vcmask 261124
      %2331 = vst.msk [vmem:[#allocation5 + $0xa0] sm:$0xf0] %vm2330, %v2300
      %2332 = vst [vmem:[#allocation5 + $0xa8] sm:$0xff] %v2315
      %2333 = vst [vmem:[#allocation5 + $0xb0] sm:$0xff] %v2316
      %2334 = vst.msk [vmem:[#allocation5 + $0xb8] sm:$0xff] %vm438, %v2306
      %2335 = vst [vmem:[#allocation5 + $0xc0] sm:$0x1] %v2317
      %2336 = vst [vmem:[#allocation5 + $0xc8] sm:$0x1] %v2318
      %vm2337 = vcmask 253952
      %2338 = vst.msk [vmem:[#allocation5 + $0xd0] sm:$0x1] %vm2337, %v2312
      %vm2339 = vcmask 1040384
      %v2340 = vrot.slane %v2104, 7
      %v2341 = vrot.slane %v2105, 7
      %v2342 = vrot.slane %v2106, 7
      %v2343 = vrot.slane %v2107, 7
      %v2344 = vsel %vm2339, %v2340, %v2343
      %v2345 = vrot.slane %v2108, 7
      %v2346 = vsel %vm2339, %v2341, %v2345
      %v2347 = vrot.slane %v2109, 7
      %v2348 = vsel %vm2339, %v2342, %v2347
      %2349 = vrot.lane.b32.xlu0 %v2340, 91
      %v2350 = vpop.permute.xlu0 %2349
      %2351 = vrot.lane.b32.xlu0 %v2341, 91
      %v2352 = vpop.permute.xlu0 %2351
      %2353 = vrot.lane.b32.xlu0 %v2342, 91
      %v2354 = vpop.permute.xlu0 %2353
      %2355 = vrot.lane.b32.xlu0 %v2344, 91
      %v2356 = vpop.permute.xlu0 %2355
      %2357 = vrot.lane.b32.xlu0 %v2346, 91
      %v2358 = vpop.permute.xlu0 %2357
      %2359 = vrot.lane.b32.xlu0 %v2348, 91
      %v2360 = vpop.permute.xlu0 %2359
      %v2361 = vsel %vm571, %v2350, %v2352
      %v2362 = vsel %vm571, %v2352, %v2354
      %v2363 = vsel %vm571, %v2356, %v2358
      %v2364 = vsel %vm571, %v2358, %v2360
      %2371 = vst [vmem:[#allocation5 + $0xc0] sm:$0xfe] %v2361
      %2372 = vst [vmem:[#allocation5 + $0xc8] sm:$0xfe] %v2362
      %vm2373 = vcmask 261121
      %2374 = vst.msk [vmem:[#allocation5 + $0xd0] sm:$0xfe] %vm2373, %v2354
      %2375 = vst [vmem:[#allocation5 + $0xd8] sm:$0x3f] %v2363
      %2376 = vst [vmem:[#allocation5 + $0xe0] sm:$0x3f] %v2364
      %vm2377 = vcmask 259072
      %2378 = vst.msk [vmem:[#allocation5 + $0xe8] sm:$0x3f] %vm2377, %v2360
      %vm2379 = vcmask 1045504
      %v2380 = vrot.slane %v2104, 2
      %v2381 = vrot.slane %v2105, 2
      %v2382 = vrot.slane %v2106, 2
      %v2383 = vrot.slane %v2107, 2
      %v2384 = vsel %vm2379, %v2380, %v2383
      %v2385 = vrot.slane %v2108, 2
      %v2386 = vsel %vm2379, %v2381, %v2385
      %v2387 = vrot.slane %v2109, 2
      %v2388 = vsel %vm2379, %v2382, %v2387
      %2389 = vrot.lane.b32.xlu0 %v2380, 75
      %v2390 = vpop.permute.xlu0 %2389
      %2391 = vrot.lane.b32.xlu0 %v2381, 75
      %v2392 = vpop.permute.xlu0 %2391
      %2393 = vrot.lane.b32.xlu0 %v2382, 75
      %v2394 = vpop.permute.xlu0 %2393
      %2395 = vrot.lane.b32.xlu0 %v2384, 75
      %v2396 = vpop.permute.xlu0 %2395
      %2397 = vrot.lane.b32.xlu0 %v2386, 75
      %v2398 = vpop.permute.xlu0 %2397
      %2399 = vrot.lane.b32.xlu0 %v2388, 75
      %v2400 = vpop.permute.xlu0 %2399
      %2401 = vrot.lane.b32.xlu0 %v2383, 75
      %v2402 = vpop.permute.xlu0 %2401
      %2403 = vrot.lane.b32.xlu0 %v2385, 75
      %v2404 = vpop.permute.xlu0 %2403
      %2405 = vrot.lane.b32.xlu0 %v2387, 75
      %v2406 = vpop.permute.xlu0 %2405
      %v2407 = vsel %vm600, %v2390, %v2392
      %v2408 = vsel %vm600, %v2392, %v2394
      %v2409 = vsel %vm600, %v2396, %v2398
      %v2410 = vsel %vm600, %v2398, %v2400
      %v2411 = vsel %vm600, %v2402, %v2404
      %v2412 = vsel %vm600, %v2404, %v2406
      %2422 = vst [vmem:[#allocation5 + $0xd8] sm:$0xc0] %v2407
      %2423 = vst [vmem:[#allocation5 + $0xe0] sm:$0xc0] %v2408
      %vm2424 = vcmask 261126
      %2425 = vst.msk [vmem:[#allocation5 + $0xe8] sm:$0xc0] %vm2424, %v2394
      %2426 = vst [vmem:[#allocation5 + $0xf0] sm:$0xff] %v2409
      %2427 = vst [vmem:[#allocation5 + $0xf8] sm:$0xff] %v2410
      %2428 = vst.msk [vmem:[#allocation5 + $0x100] sm:$0xff] %vm438, %v2400
      %2429 = vst [vmem:[#allocation5 + $0x108] sm:$0x7] %v2411
      %2430 = vst [vmem:[#allocation5 + $0x110] sm:$0x7] %v2412
      %vm2431 = vcmask 256000
      %2432 = vst.msk [vmem:[#allocation5 + $0x118] sm:$0x7] %vm2431, %v2406
      %vm2433 = vcmask 1042432
      %v2434 = vrot.slane %v2104, 5
      %v2435 = vrot.slane %v2105, 5
      %v2436 = vrot.slane %v2106, 5
      %v2437 = vrot.slane %v2107, 5
      %v2438 = vsel %vm2433, %v2434, %v2437
      %v2439 = vrot.slane %v2108, 5
      %v2440 = vsel %vm2433, %v2435, %v2439
      %v2441 = vrot.slane %v2109, 5
      %v2442 = vsel %vm2433, %v2436, %v2441
      %2443 = vrot.lane.b32.xlu0 %v2434, 74
      %v2444 = vpop.permute.xlu0 %2443
      %2445 = vrot.lane.b32.xlu0 %v2435, 74
      %v2446 = vpop.permute.xlu0 %2445
      %2447 = vrot.lane.b32.xlu0 %v2436, 74
      %v2448 = vpop.permute.xlu0 %2447
      %2449 = vrot.lane.b32.xlu0 %v2438, 74
      %v2450 = vpop.permute.xlu0 %2449
      %2451 = vrot.lane.b32.xlu0 %v2440, 74
      %v2452 = vpop.permute.xlu0 %2451
      %2453 = vrot.lane.b32.xlu0 %v2442, 74
      %v2454 = vpop.permute.xlu0 %2453
      %v2455 = vsel %vm629, %v2444, %v2446
      %v2456 = vsel %vm629, %v2446, %v2448
      %v2457 = vsel %vm629, %v2450, %v2452
      %v2458 = vsel %vm629, %v2452, %v2454
      %2465 = vst [vmem:[#allocation5 + $0x108] sm:$0xf8] %v2455
      %2466 = vst [vmem:[#allocation5 + $0x110] sm:$0xf8] %v2456
      %vm2467 = vcmask 261123
      %2468 = vst.msk [vmem:[#allocation5 + $0x118] sm:$0xf8] %vm2467, %v2448
      %2469 = vst [vmem:[#allocation5 + $0x120] sm:$0xff] %v2457
      %2470 = vst [vmem:[#allocation5 + $0x128] sm:$0xff] %v2458
      %2471 = vst.msk [vmem:[#allocation5 + $0x130] sm:$0xff] %vm438, %v2454
      %2472 = vrot.lane.b32.xlu0 %v2104, 73
      %v2473 = vpop.permute.xlu0 %2472
      %2474 = vrot.lane.b32.xlu0 %v2105, 73
      %v2475 = vpop.permute.xlu0 %2474
      %2476 = vrot.lane.b32.xlu0 %v2106, 73
      %v2477 = vpop.permute.xlu0 %2476
      %2478 = vrot.lane.b32.xlu0 %v2107, 73
      %v2479 = vpop.permute.xlu0 %2478
      %2480 = vrot.lane.b32.xlu0 %v2108, 73
      %v2481 = vpop.permute.xlu0 %2480
      %2482 = vrot.lane.b32.xlu0 %v2109, 73
      %v2483 = vpop.permute.xlu0 %2482
      %v2484 = vsel %vm658, %v2473, %v2475
      %v2485 = vsel %vm658, %v2475, %v2477
      %v2486 = vsel %vm658, %v2479, %v2481
      %v2487 = vsel %vm658, %v2481, %v2483
      %2494 = vst [vmem:[#allocation5 + $0x138] sm:$0xff] %v2484
      %2495 = vst [vmem:[#allocation5 + $0x140] sm:$0xff] %v2485
      %2496 = vst.msk [vmem:[#allocation5 + $0x148] sm:$0xff] %vm438, %v2477
      %2497 = vst [vmem:[#allocation5 + $0x150] sm:$0x1f] %v2486
      %2498 = vst [vmem:[#allocation5 + $0x158] sm:$0x1f] %v2487
      %2499 = vst.msk [vmem:[#allocation5 + $0x160] sm:$0x1f] %vm2137, %v2483
      %v2500 = vld [vmem:[%s4] sm:$0xff]
      %v2501 = vld [vmem:[%s4 + $0x8] sm:$0xff]
      %v2502 = vld [vmem:[#allocation5] sm:$0xff]
      %v2503 = vld [vmem:[#allocation5 + $0x8] sm:$0xff]
      %v2504 = vld [vmem:[#allocation5 + $0x10] sm:$0xff]
      %v2505 = vld [vmem:[#allocation5 + $0x18] sm:$0xff]
      %v2506 = vld [vmem:[#allocation5 + $0x20] sm:$0xff]
      %v2507 = vld [vmem:[#allocation5 + $0x28] sm:$0xff]
      %v2508 = vld [vmem:[#allocation5 + $0x30] sm:$0xff]
      %v2509 = vld [vmem:[#allocation5 + $0x38] sm:$0xff]
      %v2510 = vld [vmem:[#allocation5 + $0x40] sm:$0xff]
      %v2511 = vld [vmem:[#allocation5 + $0x48] sm:$0xff]
      %v2512 = vld [vmem:[#allocation5 + $0x50] sm:$0xff]
      %v2513 = vld [vmem:[#allocation5 + $0x58] sm:$0xff]
      %v2514 = vld [vmem:[#allocation5 + $0x60] sm:$0xff]
      %v2515 = vld [vmem:[#allocation5 + $0x68] sm:$0xff]
      %v2516 = vld [vmem:[#allocation5 + $0x70] sm:$0xff]
      %v2517 = vld [vmem:[#allocation5 + $0x78] sm:$0xff]
      %v2518 = vld [vmem:[#allocation5 + $0x80] sm:$0xff]
      %v2519 = vld [vmem:[#allocation5 + $0x88] sm:$0xff]
      %v2520 = vld [vmem:[#allocation5 + $0x90] sm:$0xff]
      %v2521 = vld [vmem:[#allocation5 + $0x98] sm:$0xff]
      %v2522 = vld [vmem:[#allocation5 + $0xa0] sm:$0xff]
      %v2523 = vld [vmem:[#allocation5 + $0xa8] sm:$0xff]
      %v2524 = vld [vmem:[#allocation5 + $0xb0] sm:$0xff]
      %v2525 = vld [vmem:[#allocation5 + $0xb8] sm:$0xff]
      %v2526 = vld [vmem:[#allocation5 + $0xc0] sm:$0xff]
      %v2527 = vld [vmem:[#allocation5 + $0xc8] sm:$0xff]
      %v2528 = vld [vmem:[#allocation5 + $0xd0] sm:$0xff]
      %v2529 = vld [vmem:[#allocation5 + $0xd8] sm:$0xff]
      %v2530 = vld [vmem:[#allocation5 + $0xe0] sm:$0xff]
      %v2531 = vld [vmem:[#allocation5 + $0xe8] sm:$0xff]
      %v2532 = vld [vmem:[#allocation5 + $0xf0] sm:$0xff]
      %v2533 = vld [vmem:[#allocation5 + $0xf8] sm:$0xff]
      %v2534 = vld [vmem:[#allocation5 + $0x100] sm:$0xff]
      %v2535 = vld [vmem:[#allocation5 + $0x108] sm:$0xff]
      %v2536 = vld [vmem:[#allocation5 + $0x110] sm:$0xff]
      %v2537 = vld [vmem:[#allocation5 + $0x118] sm:$0xff]
      %v2538 = vld [vmem:[#allocation5 + $0x120] sm:$0xff]
      %v2539 = vld [vmem:[#allocation5 + $0x128] sm:$0xff]
      %v2540 = vld [vmem:[#allocation5 + $0x130] sm:$0xff]
      %v2541 = vld [vmem:[#allocation5 + $0x138] sm:$0xff]
      %v2542 = vld [vmem:[#allocation5 + $0x140] sm:$0xff]
      %v2543 = vld [vmem:[#allocation5 + $0x148] sm:$0xff]
      %v2544 = vld [vmem:[#allocation5 + $0x150] sm:$0x1f]
      %v2545 = vld [vmem:[#allocation5 + $0x158] sm:$0x1f]
      %v2546 = vld [vmem:[#allocation5 + $0x160] sm:$0x1f]
      %v2547 = vld [vmem:[%s8] sm:$0xff]
      %v2548 = vld [vmem:[%s8 + $0x8] sm:$0xff]
      %2550 = vset.pattern.permute.xlu0 0
      %2551 = vperm.xlu0 %2550, %v2547
      %v2552 = vpop.permute.xlu0 %2551
      %2555 = vset.pattern.permute.xlu0 0
      %2556 = vperm.xlu0 %2555, %v2548
      %v2557 = vpop.permute.xlu0 %2556
      %v2561 = vunpack.c.l.b16 %v2500
      %v2562 = vunpack.c.h.b16 %v2500
      %v2563 = vunpack.c.l.b16 %v2501
      %v2564 = vunpack.c.h.b16 %v2501
      %v2565 = vpack.c.b16 %v2563, %v2561
      %v2566 = vpack.c.b16 %v2564, %v2562
      %vm2568 = vcmask 867328
      %v2570 = vsel %vm2568, %v2566, 0
      %vm2572 = vcmask 1044480
      %v2574 = vsel %vm2572, %v2544, 0
      %v2577 = vsel %vm2572, %v2545, 0
      %v2580 = vsel %vm2572, %v2546, 0
      %2582 = vmatprep.subr.bf16.mxu0 %v2503
      %2583 = vmatpush1.bf16.msra.mxu0 %v2502
      %2584 = vmatprep.subr.bf16.mxu0 %v2506
      %2585 = vmatpush1.bf16.msra.mxu0 %v2505
      %2586 = vmatprep.subr.bf16.mxu0 %v2509
      %2587 = vmatpush1.bf16.msra.mxu0 %v2508
      %2588 = vmatprep.subr.bf16.mxu0 %v2512
      %2589 = vmatpush1.bf16.msra.mxu0 %v2511
      %2590 = vmatprep.subr.bf16.mxu0 %v2515
      %2591 = vmatpush1.bf16.msra.mxu0 %v2514
      %2592 = vmatprep.subr.bf16.mxu0 %v2518
      %2593 = vmatpush1.bf16.msra.mxu0 %v2517
      %2594 = vmatprep.subr.bf16.mxu0 %v2521
      %2595 = vmatpush1.bf16.msra.mxu0 %v2520
      %2596 = vmatprep.subr.bf16.mxu0 %v2524
      %2597 = vmatpush1.bf16.msra.mxu0 %v2523
      %2598 = vmatprep.subr.bf16.mxu0 %v2527
      %2599 = vmatpush1.bf16.msra.mxu0 %v2526
      %2600 = vmatprep.subr.bf16.mxu0 %v2530
      %2601 = vmatpush1.bf16.msra.mxu0 %v2529
      %2602 = vmatprep.subr.bf16.mxu0 %v2533
      %2603 = vmatpush1.bf16.msra.mxu0 %v2532
      %2604 = vmatprep.subr.bf16.mxu0 %v2536
      %2605 = vmatpush1.bf16.msra.mxu0 %v2535
      %2606 = vmatprep.subr.bf16.mxu0 %v2539
      %2607 = vmatpush1.bf16.msra.mxu0 %v2538
      %2608 = vmatprep.subr.bf16.mxu0 %v2542
      %2609 = vmatpush1.bf16.msra.mxu0 %v2541
      %2610 = vmatprep.subr.bf16.mxu0 %v2577
      %2611 = vmatpush1.bf16.msra.mxu0 %v2574
      %2612 = vmatprep.subr.bf16.mxu0 0
      %2613 = vmatpush1.bf16.msra.mxu0 0
      %2614 = vmatprep.mubr.bf16.mxu0 %v2570
      %2615 = vmatmul.mubr.bf16.gmra.mrb[0].mxu0 %v2565
      %v2616 = vpop.f32.mrb[0].mxu0
      %v2617 = vadd.f32 %v2552, %v2616
      %v2618 = vpop.f32.mrb[0].mxu0
      %v2619 = vadd.f32 %v2552, %v2618
      %v2620 = vpop.f32.mrb[0].mxu0
      %v2621 = vadd.f32 %v2557, %v2620
      %v2622 = vpop.f32.mrb[0].mxu0
      %v2623 = vadd.f32 %v2557, %v2622
      %2624 = vdwg.mxu0
      %2625 = vmatprep.subr.bf16.mxu0 0
      %2626 = vmatpush1.bf16.msra.mxu0 %v2504
      %2627 = vmatprep.subr.bf16.mxu0 0
      %2628 = vmatpush1.bf16.msra.mxu0 %v2507
      %2629 = vmatprep.subr.bf16.mxu0 0
      %2630 = vmatpush1.bf16.msra.mxu0 %v2510
      %2631 = vmatprep.subr.bf16.mxu0 0
      %2632 = vmatpush1.bf16.msra.mxu0 %v2513
      %2633 = vmatprep.subr.bf16.mxu0 0
      %2634 = vmatpush1.bf16.msra.mxu0 %v2516
      %2635 = vmatprep.subr.bf16.mxu0 0
      %2636 = vmatpush1.bf16.msra.mxu0 %v2519
      %2637 = vmatprep.subr.bf16.mxu0 0
      %2638 = vmatpush1.bf16.msra.mxu0 %v2522
      %2639 = vmatprep.subr.bf16.mxu0 0
      %2640 = vmatpush1.bf16.msra.mxu0 %v2525
      %2641 = vmatprep.subr.bf16.mxu0 0
      %2642 = vmatpush1.bf16.msra.mxu0 %v2528
      %2643 = vmatprep.subr.bf16.mxu0 0
      %2644 = vmatpush1.bf16.msra.mxu0 %v2531
      %2645 = vmatprep.subr.bf16.mxu0 0
      %2646 = vmatpush1.bf16.msra.mxu0 %v2534
      %2647 = vmatprep.subr.bf16.mxu0 0
      %2648 = vmatpush1.bf16.msra.mxu0 %v2537
      %2649 = vmatprep.subr.bf16.mxu0 0
      %2650 = vmatpush1.bf16.msra.mxu0 %v2540
      %2651 = vmatprep.subr.bf16.mxu0 0
      %2652 = vmatpush1.bf16.msra.mxu0 %v2543
      %2653 = vmatprep.subr.bf16.mxu0 0
      %2654 = vmatpush1.bf16.msra.mxu0 %v2580
      %2655 = vmatprep.subr.bf16.mxu0 0
      %2656 = vmatpush1.bf16.msra.mxu0 0
      %2657 = vmatprep.mubr.bf16.mxu0 %v2570
      %2658 = vmatmul.mubr.bf16.gmra.mrb[0].mxu0 %v2565
      %v2659 = vpop.f32.mrb[0].mxu0
      %v2660 = vadd.f32 %v2552, %v2659
      %v2661 = vpop.f32.mrb[0].mxu0
      %v2662 = vpop.f32.mrb[0].mxu0
      %v2663 = vadd.f32 %v2557, %v2662
      %v2664 = vpop.f32.mrb[0].mxu0
      %2665 = vdwg.mxu0
      %vm2666 = vcmp.ge.f32.partialorder %v2617, 0.0
      %vm2667 = vcmp.ge.f32.partialorder %v2619, 0.0
      %vm2668 = vcmp.ge.f32.partialorder %v2660, 0.0
      %vm2669 = vcmp.ge.f32.partialorder %v2621, 0.0
      %vm2670 = vcmp.ge.f32.partialorder %v2623, 0.0
      %vm2671 = vcmp.ge.f32.partialorder %v2663, 0.0
      %v2672 = vmul.f32 %v2617, 0.01
      %v2673 = vmul.f32 %v2619, 0.01
      %v2674 = vmul.f32 %v2660, 0.01
      %v2675 = vmul.f32 %v2621, 0.01
      %v2676 = vmul.f32 %v2623, 0.01
      %v2677 = vmul.f32 %v2663, 0.01
      %v2678 = vsel %vm2666, %v2617, %v2672
      %v2679 = vsel %vm2667, %v2619, %v2673
      %v2680 = vsel %vm2668, %v2660, %v2674
      %v2681 = vsel %vm2669, %v2621, %v2675
      %v2682 = vsel %vm2670, %v2623, %v2676
      %v2683 = vsel %vm2671, %v2663, %v2677
      %v2684 = vmul.f32 %v2678, %v953
      %v2685 = vmul.f32 %v2679, %v957
      %v2686 = vmul.f32 %v2680, %v961
      %v2687 = vmul.f32 %v2681, %v953
      %v2688 = vmul.f32 %v2682, %v957
      %v2689 = vmul.f32 %v2683, %v961
      %v2690 = vpack.c.bf16 %v2687, %v2684
      %v2691 = vpack.c.bf16 %v2688, %v2685
      %v2692 = vpack.c.bf16 %v2689, %v2686
      %2696 = vrot.lane.b32.xlu0 %v2690, 36
      %v2697 = vpop.permute.xlu0 %2696
      %2698 = vrot.lane.b32.xlu0 %v2691, 36
      %v2699 = vpop.permute.xlu0 %2698
      %2700 = vrot.lane.b32.xlu0 %v2692, 36
      %v2701 = vpop.permute.xlu0 %2700
      %v2702 = vsel %vm983, %v2697, %v2699
      %v2703 = vsel %vm983, %v2699, %v2701
      %2707 = vst.msk [vmem:[#allocation4] sm:$0xff] %vm989, %v2697
      %2708 = vst [vmem:[#allocation4 + $0x8] sm:$0xff] %v2702
      %2709 = vst.msk [vmem:[#allocation4 + $0x10] sm:$0xff] %vm992, %v2703
      %v2710 = vunpack.c.l.b16 %v2690
      %v2711 = vunpack.c.l.b16 %v2691
      %v2712 = vunpack.c.l.b16 %v2692
      %v2713 = vunpack.c.h.b16 %v2690
      %v2714 = vunpack.c.h.b16 %v2691
      %v2715 = vunpack.c.h.b16 %v2692
      %v2716 = vpack.c.b16 %v2711, %v2710
      %v2717 = vpack.c.b16 %v2712, %v2712
      %v2718 = vpack.c.b16 %v2714, %v2713
      %v2719 = vpack.c.b16 %v2715, %v2715
      %2724 = vst [vmem:[%s359 + $0x18] sm:$0xff] %v2716
      %2725 = vst.msk [vmem:[%s359 + $0x20] sm:$0xf] %vm1009, %v2717
      %2726 = vst [vmem:[%s359 + $0x24] sm:$0xff] %v2718
      %2727 = vst.msk [vmem:[%s359 + $0x2c] sm:$0xf] %vm1009, %v2719
      %v2728 = vld [vmem:[#allocation4] sm:$0xff]
      %v2729 = vld [vmem:[#allocation4 + $0x8] sm:$0xff]
      %v2730 = vld [vmem:[#allocation4 + $0x10] sm:$0xff]
      %2734 = vrot.lane.b32.xlu0 %v2728, 111
      %v2735 = vpop.permute.xlu0 %2734
      %2736 = vrot.lane.b32.xlu0 %v2729, 111
      %v2737 = vpop.permute.xlu0 %2736
      %2738 = vrot.lane.b32.xlu0 %v2730, 111
      %v2739 = vpop.permute.xlu0 %2738
      %v2740 = vsel %vm425, %v2735, %v2737
      %v2741 = vsel %vm425, %v2737, %v2739
      %2745 = vst [vmem:[#allocation5] sm:$0xff] %v2740
      %2746 = vst [vmem:[#allocation5 + $0x8] sm:$0xff] %v2741
      %2747 = vst.msk [vmem:[#allocation5 + $0x10] sm:$0xff] %vm438, %v2739
      %2748 = vrot.lane.b32.xlu0 %v2728, 110
      %v2749 = vpop.permute.xlu0 %2748
      %2750 = vrot.lane.b32.xlu0 %v2729, 110
      %v2751 = vpop.permute.xlu0 %2750
      %2752 = vrot.lane.b32.xlu0 %v2730, 110
      %v2753 = vpop.permute.xlu0 %2752
      %v2754 = vsel %vm455, %v2749, %v2751
      %v2755 = vsel %vm455, %v2751, %v2753
      %2759 = vst [vmem:[#allocation5 + $0x18] sm:$0xff] %v2754
      %2760 = vst [vmem:[#allocation5 + $0x20] sm:$0xff] %v2755
      %2761 = vst.msk [vmem:[#allocation5 + $0x28] sm:$0xff] %vm438, %v2753
      %2762 = vrot.lane.b32.xlu0 %v2728, 109
      %v2763 = vpop.permute.xlu0 %2762
      %2764 = vrot.lane.b32.xlu0 %v2729, 109
      %v2765 = vpop.permute.xlu0 %2764
      %2766 = vrot.lane.b32.xlu0 %v2730, 109
      %v2767 = vpop.permute.xlu0 %2766
      %v2768 = vsel %vm484, %v2763, %v2765
      %v2769 = vsel %vm484, %v2765, %v2767
      %2773 = vst [vmem:[#allocation5 + $0x30] sm:$0xff] %v2768
      %2774 = vst [vmem:[#allocation5 + $0x38] sm:$0xff] %v2769
      %2775 = vst.msk [vmem:[#allocation5 + $0x40] sm:$0xff] %vm438, %v2767
      %2776 = vrot.lane.b32.xlu0 %v2728, 93
      %v2777 = vpop.permute.xlu0 %2776
      %2778 = vrot.lane.b32.xlu0 %v2729, 93
      %v2779 = vpop.permute.xlu0 %2778
      %2780 = vrot.lane.b32.xlu0 %v2730, 93
      %v2781 = vpop.permute.xlu0 %2780
      %v2782 = vsel %vm513, %v2777, %v2779
      %v2783 = vsel %vm513, %v2779, %v2781
      %2787 = vst [vmem:[#allocation5 + $0x48] sm:$0xff] %v2782
      %2788 = vst [vmem:[#allocation5 + $0x50] sm:$0xff] %v2783
      %2789 = vst.msk [vmem:[#allocation5 + $0x58] sm:$0xff] %vm438, %v2781
      %2790 = vrot.lane.b32.xlu0 %v2728, 92
      %v2791 = vpop.permute.xlu0 %2790
      %2792 = vrot.lane.b32.xlu0 %v2729, 92
      %v2793 = vpop.permute.xlu0 %2792
      %2794 = vrot.lane.b32.xlu0 %v2730, 92
      %v2795 = vpop.permute.xlu0 %2794
      %v2796 = vsel %vm542, %v2791, %v2793
      %v2797 = vsel %vm542, %v2793, %v2795
      %2801 = vst [vmem:[#allocation5 + $0x60] sm:$0xff] %v2796
      %2802 = vst [vmem:[#allocation5 + $0x68] sm:$0xff] %v2797
      %2803 = vst.msk [vmem:[#allocation5 + $0x70] sm:$0xff] %vm438, %v2795
      %2804 = vrot.lane.b32.xlu0 %v2728, 91
      %v2805 = vpop.permute.xlu0 %2804
      %2806 = vrot.lane.b32.xlu0 %v2729, 91
      %v2807 = vpop.permute.xlu0 %2806
      %2808 = vrot.lane.b32.xlu0 %v2730, 91
      %v2809 = vpop.permute.xlu0 %2808
      %v2810 = vsel %vm571, %v2805, %v2807
      %v2811 = vsel %vm571, %v2807, %v2809
      %2815 = vst [vmem:[#allocation5 + $0x78] sm:$0xff] %v2810
      %2816 = vst [vmem:[#allocation5 + $0x80] sm:$0xff] %v2811
      %2817 = vst.msk [vmem:[#allocation5 + $0x88] sm:$0xff] %vm438, %v2809
      %2818 = vrot.lane.b32.xlu0 %v2728, 75
      %v2819 = vpop.permute.xlu0 %2818
      %2820 = vrot.lane.b32.xlu0 %v2729, 75
      %v2821 = vpop.permute.xlu0 %2820
      %2822 = vrot.lane.b32.xlu0 %v2730, 75
      %v2823 = vpop.permute.xlu0 %2822
      %v2824 = vsel %vm600, %v2819, %v2821
      %v2825 = vsel %vm600, %v2821, %v2823
      %2829 = vst [vmem:[#allocation5 + $0x90] sm:$0xff] %v2824
      %2830 = vst [vmem:[#allocation5 + $0x98] sm:$0xff] %v2825
      %2831 = vst.msk [vmem:[#allocation5 + $0xa0] sm:$0xff] %vm438, %v2823
      %2832 = vrot.lane.b32.xlu0 %v2728, 74
      %v2833 = vpop.permute.xlu0 %2832
      %2834 = vrot.lane.b32.xlu0 %v2729, 74
      %v2835 = vpop.permute.xlu0 %2834
      %2836 = vrot.lane.b32.xlu0 %v2730, 74
      %v2837 = vpop.permute.xlu0 %2836
      %v2838 = vsel %vm629, %v2833, %v2835
      %v2839 = vsel %vm629, %v2835, %v2837
      %2843 = vst [vmem:[#allocation5 + $0xa8] sm:$0xff] %v2838
      %2844 = vst [vmem:[#allocation5 + $0xb0] sm:$0xff] %v2839
      %2845 = vst.msk [vmem:[#allocation5 + $0xb8] sm:$0xff] %vm438, %v2837
      %2846 = vrot.lane.b32.xlu0 %v2728, 73
      %v2847 = vpop.permute.xlu0 %2846
      %2848 = vrot.lane.b32.xlu0 %v2729, 73
      %v2849 = vpop.permute.xlu0 %2848
      %2850 = vrot.lane.b32.xlu0 %v2730, 73
      %v2851 = vpop.permute.xlu0 %2850
      %v2852 = vsel %vm658, %v2847, %v2849
      %v2853 = vsel %vm658, %v2849, %v2851
      %2857 = vst [vmem:[#allocation5 + $0xc0] sm:$0xff] %v2852
      %2858 = vst [vmem:[#allocation5 + $0xc8] sm:$0xff] %v2853
      %2859 = vst.msk [vmem:[#allocation5 + $0xd0] sm:$0xff] %vm438, %v2851
      %v2860 = vld [vmem:[%s5] sm:$0xff]
      %v2861 = vld [vmem:[%s5 + $0x18] sm:$0xff]
      %v2862 = vld [vmem:[%s5 + $0x30] sm:$0xff]
      %v2863 = vld [vmem:[%s5 + $0x48] sm:$0xff]
      %v2864 = vld [vmem:[%s5 + $0x60] sm:$0xff]
      %v2865 = vld [vmem:[#allocation5] sm:$0xff]
      %v2866 = vld [vmem:[#allocation5 + $0x8] sm:$0xff]
      %v2867 = vld [vmem:[#allocation5 + $0x10] sm:$0xff]
      %v2868 = vld [vmem:[#allocation5 + $0x18] sm:$0xff]
      %v2869 = vld [vmem:[#allocation5 + $0x20] sm:$0xff]
      %v2870 = vld [vmem:[#allocation5 + $0x28] sm:$0xff]
      %v2871 = vld [vmem:[#allocation5 + $0x30] sm:$0xff]
      %v2872 = vld [vmem:[#allocation5 + $0x38] sm:$0xff]
      %v2873 = vld [vmem:[#allocation5 + $0x40] sm:$0xff]
      %v2874 = vld [vmem:[#allocation5 + $0x48] sm:$0xff]
      %v2875 = vld [vmem:[#allocation5 + $0x50] sm:$0xff]
      %v2876 = vld [vmem:[#allocation5 + $0x58] sm:$0xff]
      %v2877 = vld [vmem:[#allocation5 + $0x60] sm:$0xff]
      %v2878 = vld [vmem:[#allocation5 + $0x68] sm:$0xff]
      %v2879 = vld [vmem:[#allocation5 + $0x70] sm:$0xff]
      %v2880 = vld [vmem:[#allocation5 + $0x78] sm:$0xff]
      %v2881 = vld [vmem:[#allocation5 + $0x80] sm:$0xff]
      %v2882 = vld [vmem:[#allocation5 + $0x88] sm:$0xff]
      %v2883 = vld [vmem:[#allocation5 + $0x90] sm:$0xff]
      %v2884 = vld [vmem:[#allocation5 + $0x98] sm:$0xff]
      %v2885 = vld [vmem:[#allocation5 + $0xa0] sm:$0xff]
      %v2886 = vld [vmem:[#allocation5 + $0xa8] sm:$0xff]
      %v2887 = vld [vmem:[#allocation5 + $0xb0] sm:$0xff]
      %v2888 = vld [vmem:[#allocation5 + $0xb8] sm:$0xff]
      %v2889 = vld [vmem:[#allocation5 + $0xc0] sm:$0xff]
      %v2890 = vld [vmem:[#allocation5 + $0xc8] sm:$0xff]
      %v2891 = vld [vmem:[#allocation5 + $0xd0] sm:$0xff]
      %v2892 = vld [vmem:[#allocation3] sm:$0xff]
      %v2893 = vld [vmem:[#allocation3 + $0x8] sm:$0xf]
      %v2894 = vld [vmem:[#allocation3 + $0xc] sm:$0xff]
      %v2895 = vld [vmem:[#allocation3 + $0x14] sm:$0xf]
      %v2896 = vld [vmem:[#allocation3 + $0x18] sm:$0xff]
      %v2897 = vld [vmem:[#allocation3 + $0x20] sm:$0xf]
      %v2898 = vld [vmem:[#allocation3 + $0x24] sm:$0x11]
      %v2899 = vld [vmem:[#allocation3 + $0x2c] sm:$0x1]
      %v2908 = vunpack.c.l.b16 %v2892
      %v2909 = vunpack.c.h.b16 %v2892
      %v2910 = vunpack.c.l.b16 %v2893
      %v2911 = vunpack.c.l.b16 %v2894
      %v2912 = vunpack.c.h.b16 %v2894
      %v2913 = vunpack.c.l.b16 %v2895
      %v2914 = vunpack.c.l.b16 %v2896
      %v2915 = vunpack.c.h.b16 %v2896
      %v2916 = vunpack.c.l.b16 %v2897
      %v2917 = vunpack.c.l.b16 %v2898
      %v2918 = vunpack.c.h.b16 %v2898
      %v2919 = vunpack.c.l.b16 %v2899
      %v2920 = vpack.c.b16 %v2911, %v2908
      %v2921 = vpack.c.b16 %v2912, %v2909
      %v2922 = vpack.c.b16 %v2913, %v2910
      %v2923 = vpack.c.b16 %v2917, %v2914
      %v2924 = vpack.c.b16 %v2918, %v2915
      %v2925 = vpack.c.b16 %v2919, %v2916
      %2926 = vrot.lane.b32.xlu0 %v2920, 111
      %v2927 = vpop.permute.xlu0 %2926
      %2928 = vrot.lane.b32.xlu0 %v2921, 111
      %v2929 = vpop.permute.xlu0 %2928
      %2930 = vrot.lane.b32.xlu0 %v2922, 111
      %v2931 = vpop.permute.xlu0 %2930
      %2932 = vrot.lane.b32.xlu0 %v2923, 111
      %v2933 = vpop.permute.xlu0 %2932
      %2934 = vrot.lane.b32.xlu0 %v2924, 111
      %v2935 = vpop.permute.xlu0 %2934
      %2936 = vrot.lane.b32.xlu0 %v2925, 111
      %v2937 = vpop.permute.xlu0 %2936
      %v2938 = vsel %vm425, %v2927, %v2929
      %v2939 = vsel %vm425, %v2929, %v2931
      %v2940 = vsel %vm425, %v2933, %v2935
      %v2941 = vsel %vm425, %v2935, %v2937
      %2948 = vst [vmem:[#allocation5] sm:$0xff] %v2938
      %2949 = vst [vmem:[#allocation5 + $0x8] sm:$0xff] %v2939
      %2950 = vst.msk [vmem:[#allocation5 + $0x10] sm:$0xff] %vm438, %v2931
      %2951 = vst [vmem:[#allocation5 + $0x18] sm:$0x1f] %v2940
      %2952 = vst [vmem:[#allocation5 + $0x20] sm:$0x1f] %v2941
      %2953 = vst.msk [vmem:[#allocation5 + $0x28] sm:$0x1f] %vm2137, %v2937
      %v2954 = vrot.slane %v2920, 3
      %v2955 = vrot.slane %v2921, 3
      %v2956 = vrot.slane %v2922, 3
      %v2957 = vrot.slane %v2923, 3
      %v2958 = vsel %vm2139, %v2954, %v2957
      %v2959 = vrot.slane %v2924, 3
      %v2960 = vsel %vm2139, %v2955, %v2959
      %v2961 = vrot.slane %v2925, 3
      %v2962 = vsel %vm2139, %v2956, %v2961
      %2963 = vrot.lane.b32.xlu0 %v2954, 110
      %v2964 = vpop.permute.xlu0 %2963
      %2965 = vrot.lane.b32.xlu0 %v2955, 110
      %v2966 = vpop.permute.xlu0 %2965
      %2967 = vrot.lane.b32.xlu0 %v2956, 110
      %v2968 = vpop.permute.xlu0 %2967
      %2969 = vrot.lane.b32.xlu0 %v2958, 110
      %v2970 = vpop.permute.xlu0 %2969
      %2971 = vrot.lane.b32.xlu0 %v2960, 110
      %v2972 = vpop.permute.xlu0 %2971
      %2973 = vrot.lane.b32.xlu0 %v2962, 110
      %v2974 = vpop.permute.xlu0 %2973
      %2975 = vrot.lane.b32.xlu0 %v2957, 110
      %v2976 = vpop.permute.xlu0 %2975
      %2977 = vrot.lane.b32.xlu0 %v2959, 110
      %v2978 = vpop.permute.xlu0 %2977
      %2979 = vrot.lane.b32.xlu0 %v2961, 110
      %v2980 = vpop.permute.xlu0 %2979
      %v2981 = vsel %vm455, %v2964, %v2966
      %v2982 = vsel %vm455, %v2966, %v2968
      %v2983 = vsel %vm455, %v2970, %v2972
      %v2984 = vsel %vm455, %v2972, %v2974
      %v2985 = vsel %vm455, %v2976, %v2978
      %v2986 = vsel %vm455, %v2978, %v2980
      %2996 = vst [vmem:[#allocation5 + $0x18] sm:$0xe0] %v2981
      %2997 = vst [vmem:[#allocation5 + $0x20] sm:$0xe0] %v2982
      %2998 = vst.msk [vmem:[#allocation5 + $0x28] sm:$0xe0] %vm2184, %v2968
      %2999 = vst [vmem:[#allocation5 + $0x30] sm:$0xff] %v2983
      %3000 = vst [vmem:[#allocation5 + $0x38] sm:$0xff] %v2984
      %3001 = vst.msk [vmem:[#allocation5 + $0x40] sm:$0xff] %vm438, %v2974
      %3002 = vst [vmem:[#allocation5 + $0x48] sm:$0x3] %v2985
      %3003 = vst [vmem:[#allocation5 + $0x50] sm:$0x3] %v2986
      %3004 = vst.msk [vmem:[#allocation5 + $0x58] sm:$0x3] %vm2191, %v2980
      %v3005 = vrot.slane %v2920, 6
      %v3006 = vrot.slane %v2921, 6
      %v3007 = vrot.slane %v2922, 6
      %v3008 = vrot.slane %v2923, 6
      %v3009 = vsel %vm2193, %v3005, %v3008
      %v3010 = vrot.slane %v2924, 6
      %v3011 = vsel %vm2193, %v3006, %v3010
      %v3012 = vrot.slane %v2925, 6
      %v3013 = vsel %vm2193, %v3007, %v3012
      %3014 = vrot.lane.b32.xlu0 %v3005, 109
      %v3015 = vpop.permute.xlu0 %3014
      %3016 = vrot.lane.b32.xlu0 %v3006, 109
      %v3017 = vpop.permute.xlu0 %3016
      %3018 = vrot.lane.b32.xlu0 %v3007, 109
      %v3019 = vpop.permute.xlu0 %3018
      %3020 = vrot.lane.b32.xlu0 %v3009, 109
      %v3021 = vpop.permute.xlu0 %3020
      %3022 = vrot.lane.b32.xlu0 %v3011, 109
      %v3023 = vpop.permute.xlu0 %3022
      %3024 = vrot.lane.b32.xlu0 %v3013, 109
      %v3025 = vpop.permute.xlu0 %3024
      %v3026 = vsel %vm484, %v3015, %v3017
      %v3027 = vsel %vm484, %v3017, %v3019
      %v3028 = vsel %vm484, %v3021, %v3023
      %v3029 = vsel %vm484, %v3023, %v3025
      %3036 = vst [vmem:[#allocation5 + $0x48] sm:$0xfc] %v3026
      %3037 = vst [vmem:[#allocation5 + $0x50] sm:$0xfc] %v3027
      %3038 = vst.msk [vmem:[#allocation5 + $0x58] sm:$0xfc] %vm2227, %v3019
      %3039 = vst [vmem:[#allocation5 + $0x60] sm:$0x7f] %v3028
      %3040 = vst [vmem:[#allocation5 + $0x68] sm:$0x7f] %v3029
      %3041 = vst.msk [vmem:[#allocation5 + $0x70] sm:$0x7f] %vm2231, %v3025
      %v3042 = vrot.slane %v2920, 1
      %v3043 = vrot.slane %v2921, 1
      %v3044 = vrot.slane %v2922, 1
      %v3045 = vrot.slane %v2923, 1
      %v3046 = vsel %vm2233, %v3042, %v3045
      %v3047 = vrot.slane %v2924, 1
      %v3048 = vsel %vm2233, %v3043, %v3047
      %v3049 = vrot.slane %v2925, 1
      %v3050 = vsel %vm2233, %v3044, %v3049
      %3051 = vrot.lane.b32.xlu0 %v3042, 93
      %v3052 = vpop.permute.xlu0 %3051
      %3053 = vrot.lane.b32.xlu0 %v3043, 93
      %v3054 = vpop.permute.xlu0 %3053
      %3055 = vrot.lane.b32.xlu0 %v3044, 93
      %v3056 = vpop.permute.xlu0 %3055
      %3057 = vrot.lane.b32.xlu0 %v3046, 93
      %v3058 = vpop.permute.xlu0 %3057
      %3059 = vrot.lane.b32.xlu0 %v3048, 93
      %v3060 = vpop.permute.xlu0 %3059
      %3061 = vrot.lane.b32.xlu0 %v3050, 93
      %v3062 = vpop.permute.xlu0 %3061
      %3063 = vrot.lane.b32.xlu0 %v3045, 93
      %v3064 = vpop.permute.xlu0 %3063
      %3065 = vrot.lane.b32.xlu0 %v3047, 93
      %v3066 = vpop.permute.xlu0 %3065
      %3067 = vrot.lane.b32.xlu0 %v3049, 93
      %v3068 = vpop.permute.xlu0 %3067
      %v3069 = vsel %vm513, %v3052, %v3054
      %v3070 = vsel %vm513, %v3054, %v3056
      %v3071 = vsel %vm513, %v3058, %v3060
      %v3072 = vsel %vm513, %v3060, %v3062
      %v3073 = vsel %vm513, %v3064, %v3066
      %v3074 = vsel %vm513, %v3066, %v3068
      %3084 = vst [vmem:[#allocation5 + $0x60] sm:$0x80] %v3069
      %3085 = vst [vmem:[#allocation5 + $0x68] sm:$0x80] %v3070
      %3086 = vst.msk [vmem:[#allocation5 + $0x70] sm:$0x80] %vm2278, %v3056
      %3087 = vst [vmem:[#allocation5 + $0x78] sm:$0xff] %v3071
      %3088 = vst [vmem:[#allocation5 + $0x80] sm:$0xff] %v3072
      %3089 = vst.msk [vmem:[#allocation5 + $0x88] sm:$0xff] %vm438, %v3062
      %3090 = vst [vmem:[#allocation5 + $0x90] sm:$0xf] %v3073
      %3091 = vst [vmem:[#allocation5 + $0x98] sm:$0xf] %v3074
      %3092 = vst.msk [vmem:[#allocation5 + $0xa0] sm:$0xf] %vm1009, %v3068
      %v3093 = vpack.c.b16 %v2908, %v2908
      %v3094 = vpack.c.b16 %v2909, %v2909
      %v3095 = vpack.c.b16 %v2910, %v2910
      %v3096 = vpack.c.b16 %v2914, %v2911
      %v3097 = vpack.c.b16 %v2915, %v2912
      %v3098 = vpack.c.b16 %v2916, %v2913
      %v3099 = vpack.c.b16 %v2917, %v2917
      %v3100 = vpack.c.b16 %v2918, %v2918
      %v3101 = vpack.c.b16 %v2919, %v2919
      %3102 = vrot.lane.b32.xlu0 %v3093, 92
      %v3103 = vpop.permute.xlu0 %3102
      %3104 = vrot.lane.b32.xlu0 %v3094, 92
      %v3105 = vpop.permute.xlu0 %3104
      %3106 = vrot.lane.b32.xlu0 %v3095, 92
      %v3107 = vpop.permute.xlu0 %3106
      %3108 = vrot.lane.b32.xlu0 %v3096, 92
      %v3109 = vpop.permute.xlu0 %3108
      %3110 = vrot.lane.b32.xlu0 %v3097, 92
      %v3111 = vpop.permute.xlu0 %3110
      %3112 = vrot.lane.b32.xlu0 %v3098, 92
      %v3113 = vpop.permute.xlu0 %3112
      %3114 = vrot.lane.b32.xlu0 %v3099, 92
      %v3115 = vpop.permute.xlu0 %3114
      %3116 = vrot.lane.b32.xlu0 %v3100, 92
      %v3117 = vpop.permute.xlu0 %3116
      %3118 = vrot.lane.b32.xlu0 %v3101, 92
      %v3119 = vpop.permute.xlu0 %3118
      %v3120 = vsel %vm542, %v3103, %v3105
      %v3121 = vsel %vm542, %v3105, %v3107
      %v3122 = vsel %vm542, %v3109, %v3111
      %v3123 = vsel %vm542, %v3111, %v3113
      %v3124 = vsel %vm542, %v3115, %v3117
      %v3125 = vsel %vm542, %v3117, %v3119
      %3135 = vst [vmem:[#allocation5 + $0x90] sm:$0xf0] %v3120
      %3136 = vst [vmem:[#allocation5 + $0x98] sm:$0xf0] %v3121
      %3137 = vst.msk [vmem:[#allocation5 + $0xa0] sm:$0xf0] %vm2330, %v3107
      %3138 = vst [vmem:[#allocation5 + $0xa8] sm:$0xff] %v3122
      %3139 = vst [vmem:[#allocation5 + $0xb0] sm:$0xff] %v3123
      %3140 = vst.msk [vmem:[#allocation5 + $0xb8] sm:$0xff] %vm438, %v3113
      %3141 = vst [vmem:[#allocation5 + $0xc0] sm:$0x1] %v3124
      %3142 = vst [vmem:[#allocation5 + $0xc8] sm:$0x1] %v3125
      %3143 = vst.msk [vmem:[#allocation5 + $0xd0] sm:$0x1] %vm2337, %v3119
      %v3144 = vrot.slane %v2920, 7
      %v3145 = vrot.slane %v2921, 7
      %v3146 = vrot.slane %v2922, 7
      %v3147 = vrot.slane %v2923, 7
      %v3148 = vsel %vm2339, %v3144, %v3147
      %v3149 = vrot.slane %v2924, 7
      %v3150 = vsel %vm2339, %v3145, %v3149
      %v3151 = vrot.slane %v2925, 7
      %v3152 = vsel %vm2339, %v3146, %v3151
      %3153 = vrot.lane.b32.xlu0 %v3144, 91
      %v3154 = vpop.permute.xlu0 %3153
      %3155 = vrot.lane.b32.xlu0 %v3145, 91
      %v3156 = vpop.permute.xlu0 %3155
      %3157 = vrot.lane.b32.xlu0 %v3146, 91
      %v3158 = vpop.permute.xlu0 %3157
      %3159 = vrot.lane.b32.xlu0 %v3148, 91
      %v3160 = vpop.permute.xlu0 %3159
      %3161 = vrot.lane.b32.xlu0 %v3150, 91
      %v3162 = vpop.permute.xlu0 %3161
      %3163 = vrot.lane.b32.xlu0 %v3152, 91
      %v3164 = vpop.permute.xlu0 %3163
      %v3165 = vsel %vm571, %v3154, %v3156
      %v3166 = vsel %vm571, %v3156, %v3158
      %v3167 = vsel %vm571, %v3160, %v3162
      %v3168 = vsel %vm571, %v3162, %v3164
      %3175 = vst [vmem:[#allocation5 + $0xc0] sm:$0xfe] %v3165
      %3176 = vst [vmem:[#allocation5 + $0xc8] sm:$0xfe] %v3166
      %3177 = vst.msk [vmem:[#allocation5 + $0xd0] sm:$0xfe] %vm2373, %v3158
      %3178 = vst [vmem:[#allocation5 + $0xd8] sm:$0x3f] %v3167
      %3179 = vst [vmem:[#allocation5 + $0xe0] sm:$0x3f] %v3168
      %3180 = vst.msk [vmem:[#allocation5 + $0xe8] sm:$0x3f] %vm2377, %v3164
      %v3181 = vrot.slane %v2920, 2
      %v3182 = vrot.slane %v2921, 2
      %v3183 = vrot.slane %v2922, 2
      %v3184 = vrot.slane %v2923, 2
      %v3185 = vsel %vm2379, %v3181, %v3184
      %v3186 = vrot.slane %v2924, 2
      %v3187 = vsel %vm2379, %v3182, %v3186
      %v3188 = vrot.slane %v2925, 2
      %v3189 = vsel %vm2379, %v3183, %v3188
      %3190 = vrot.lane.b32.xlu0 %v3181, 75
      %v3191 = vpop.permute.xlu0 %3190
      %3192 = vrot.lane.b32.xlu0 %v3182, 75
      %v3193 = vpop.permute.xlu0 %3192
      %3194 = vrot.lane.b32.xlu0 %v3183, 75
      %v3195 = vpop.permute.xlu0 %3194
      %3196 = vrot.lane.b32.xlu0 %v3185, 75
      %v3197 = vpop.permute.xlu0 %3196
      %3198 = vrot.lane.b32.xlu0 %v3187, 75
      %v3199 = vpop.permute.xlu0 %3198
      %3200 = vrot.lane.b32.xlu0 %v3189, 75
      %v3201 = vpop.permute.xlu0 %3200
      %3202 = vrot.lane.b32.xlu0 %v3184, 75
      %v3203 = vpop.permute.xlu0 %3202
      %3204 = vrot.lane.b32.xlu0 %v3186, 75
      %v3205 = vpop.permute.xlu0 %3204
      %3206 = vrot.lane.b32.xlu0 %v3188, 75
      %v3207 = vpop.permute.xlu0 %3206
      %v3208 = vsel %vm600, %v3191, %v3193
      %v3209 = vsel %vm600, %v3193, %v3195
      %v3210 = vsel %vm600, %v3197, %v3199
      %v3211 = vsel %vm600, %v3199, %v3201
      %v3212 = vsel %vm600, %v3203, %v3205
      %v3213 = vsel %vm600, %v3205, %v3207
      %3223 = vst [vmem:[#allocation5 + $0xd8] sm:$0xc0] %v3208
      %3224 = vst [vmem:[#allocation5 + $0xe0] sm:$0xc0] %v3209
      %3225 = vst.msk [vmem:[#allocation5 + $0xe8] sm:$0xc0] %vm2424, %v3195
      %3226 = vst [vmem:[#allocation5 + $0xf0] sm:$0xff] %v3210
      %3227 = vst [vmem:[#allocation5 + $0xf8] sm:$0xff] %v3211
      %3228 = vst.msk [vmem:[#allocation5 + $0x100] sm:$0xff] %vm438, %v3201
      %3229 = vst [vmem:[#allocation5 + $0x108] sm:$0x7] %v3212
      %3230 = vst [vmem:[#allocation5 + $0x110] sm:$0x7] %v3213
      %3231 = vst.msk [vmem:[#allocation5 + $0x118] sm:$0x7] %vm2431, %v3207
      %v3232 = vrot.slane %v2920, 5
      %v3233 = vrot.slane %v2921, 5
      %v3234 = vrot.slane %v2922, 5
      %v3235 = vrot.slane %v2923, 5
      %v3236 = vsel %vm2433, %v3232, %v3235
      %v3237 = vrot.slane %v2924, 5
      %v3238 = vsel %vm2433, %v3233, %v3237
      %v3239 = vrot.slane %v2925, 5
      %v3240 = vsel %vm2433, %v3234, %v3239
      %3241 = vrot.lane.b32.xlu0 %v3232, 74
      %v3242 = vpop.permute.xlu0 %3241
      %3243 = vrot.lane.b32.xlu0 %v3233, 74
      %v3244 = vpop.permute.xlu0 %3243
      %3245 = vrot.lane.b32.xlu0 %v3234, 74
      %v3246 = vpop.permute.xlu0 %3245
      %3247 = vrot.lane.b32.xlu0 %v3236, 74
      %v3248 = vpop.permute.xlu0 %3247
      %3249 = vrot.lane.b32.xlu0 %v3238, 74
      %v3250 = vpop.permute.xlu0 %3249
      %3251 = vrot.lane.b32.xlu0 %v3240, 74
      %v3252 = vpop.permute.xlu0 %3251
      %v3253 = vsel %vm629, %v3242, %v3244
      %v3254 = vsel %vm629, %v3244, %v3246
      %v3255 = vsel %vm629, %v3248, %v3250
      %v3256 = vsel %vm629, %v3250, %v3252
      %3263 = vst [vmem:[#allocation5 + $0x108] sm:$0xf8] %v3253
      %3264 = vst [vmem:[#allocation5 + $0x110] sm:$0xf8] %v3254
      %3265 = vst.msk [vmem:[#allocation5 + $0x118] sm:$0xf8] %vm2467, %v3246
      %3266 = vst [vmem:[#allocation5 + $0x120] sm:$0xff] %v3255
      %3267 = vst [vmem:[#allocation5 + $0x128] sm:$0xff] %v3256
      %3268 = vst.msk [vmem:[#allocation5 + $0x130] sm:$0xff] %vm438, %v3252
      %3269 = vrot.lane.b32.xlu0 %v2920, 73
      %v3270 = vpop.permute.xlu0 %3269
      %3271 = vrot.lane.b32.xlu0 %v2921, 73
      %v3272 = vpop.permute.xlu0 %3271
      %3273 = vrot.lane.b32.xlu0 %v2922, 73
      %v3274 = vpop.permute.xlu0 %3273
      %3275 = vrot.lane.b32.xlu0 %v2923, 73
      %v3276 = vpop.permute.xlu0 %3275
      %3277 = vrot.lane.b32.xlu0 %v2924, 73
      %v3278 = vpop.permute.xlu0 %3277
      %3279 = vrot.lane.b32.xlu0 %v2925, 73
      %v3280 = vpop.permute.xlu0 %3279
      %v3281 = vsel %vm658, %v3270, %v3272
      %v3282 = vsel %vm658, %v3272, %v3274
      %v3283 = vsel %vm658, %v3276, %v3278
      %v3284 = vsel %vm658, %v3278, %v3280
      %3291 = vst [vmem:[#allocation5 + $0x138] sm:$0xff] %v3281
      %3292 = vst [vmem:[#allocation5 + $0x140] sm:$0xff] %v3282
      %3293 = vst.msk [vmem:[#allocation5 + $0x148] sm:$0xff] %vm438, %v3274
      %3294 = vst [vmem:[#allocation5 + $0x150] sm:$0x1f] %v3283
      %3295 = vst [vmem:[#allocation5 + $0x158] sm:$0x1f] %v3284
      %3296 = vst.msk [vmem:[#allocation5 + $0x160] sm:$0x1f] %vm2137, %v3280
      %v3297 = vld [vmem:[%s5 + $0x4] sm:$0xff]
      %v3298 = vld [vmem:[%s5 + $0x1c] sm:$0xff]
      %v3299 = vld [vmem:[%s5 + $0x34] sm:$0xff]
      %v3300 = vld [vmem:[%s5 + $0x4c] sm:$0xff]
      %v3301 = vld [vmem:[%s5 + $0x64] sm:$0xff]
      %v3302 = vld [vmem:[#allocation5] sm:$0xff]
      %v3303 = vld [vmem:[#allocation5 + $0x8] sm:$0xff]
      %v3304 = vld [vmem:[#allocation5 + $0x10] sm:$0xff]
      %v3305 = vld [vmem:[#allocation5 + $0x18] sm:$0xff]
      %v3306 = vld [vmem:[#allocation5 + $0x20] sm:$0xff]
      %v3307 = vld [vmem:[#allocation5 + $0x28] sm:$0xff]
      %v3308 = vld [vmem:[#allocation5 + $0x30] sm:$0xff]
      %v3309 = vld [vmem:[#allocation5 + $0x38] sm:$0xff]
      %v3310 = vld [vmem:[#allocation5 + $0x40] sm:$0xff]
      %v3311 = vld [vmem:[#allocation5 + $0x48] sm:$0xff]
      %v3312 = vld [vmem:[#allocation5 + $0x50] sm:$0xff]
      %v3313 = vld [vmem:[#allocation5 + $0x58] sm:$0xff]
      %v3314 = vld [vmem:[#allocation5 + $0x60] sm:$0xff]
      %v3315 = vld [vmem:[#allocation5 + $0x68] sm:$0xff]
      %v3316 = vld [vmem:[#allocation5 + $0x70] sm:$0xff]
      %v3317 = vld [vmem:[#allocation5 + $0x78] sm:$0xff]
      %v3318 = vld [vmem:[#allocation5 + $0x80] sm:$0xff]
      %v3319 = vld [vmem:[#allocation5 + $0x88] sm:$0xff]
      %v3320 = vld [vmem:[#allocation5 + $0x90] sm:$0xff]
      %v3321 = vld [vmem:[#allocation5 + $0x98] sm:$0xff]
      %v3322 = vld [vmem:[#allocation5 + $0xa0] sm:$0xff]
      %v3323 = vld [vmem:[#allocation5 + $0xa8] sm:$0xff]
      %v3324 = vld [vmem:[#allocation5 + $0xb0] sm:$0xff]
      %v3325 = vld [vmem:[#allocation5 + $0xb8] sm:$0xff]
      %v3326 = vld [vmem:[#allocation5 + $0xc0] sm:$0xff]
      %v3327 = vld [vmem:[#allocation5 + $0xc8] sm:$0xff]
      %v3328 = vld [vmem:[#allocation5 + $0xd0] sm:$0xff]
      %v3329 = vld [vmem:[#allocation5 + $0xd8] sm:$0xff]
      %v3330 = vld [vmem:[#allocation5 + $0xe0] sm:$0xff]
      %v3331 = vld [vmem:[#allocation5 + $0xe8] sm:$0xff]
      %v3332 = vld [vmem:[#allocation5 + $0xf0] sm:$0xff]
      %v3333 = vld [vmem:[#allocation5 + $0xf8] sm:$0xff]
      %v3334 = vld [vmem:[#allocation5 + $0x100] sm:$0xff]
      %v3335 = vld [vmem:[#allocation5 + $0x108] sm:$0xff]
      %v3336 = vld [vmem:[#allocation5 + $0x110] sm:$0xff]
      %v3337 = vld [vmem:[#allocation5 + $0x118] sm:$0xff]
      %v3338 = vld [vmem:[#allocation5 + $0x120] sm:$0xff]
      %v3339 = vld [vmem:[#allocation5 + $0x128] sm:$0xff]
      %v3340 = vld [vmem:[#allocation5 + $0x130] sm:$0xff]
      %v3341 = vld [vmem:[#allocation5 + $0x138] sm:$0xff]
      %v3342 = vld [vmem:[#allocation5 + $0x140] sm:$0xff]
      %v3343 = vld [vmem:[#allocation5 + $0x148] sm:$0xff]
      %v3344 = vld [vmem:[#allocation5 + $0x150] sm:$0x1f]
      %v3345 = vld [vmem:[#allocation5 + $0x158] sm:$0x1f]
      %v3346 = vld [vmem:[#allocation5 + $0x160] sm:$0x1f]
      %v3352 = vunpack.c.l.b16 %v3297
      %v3353 = vunpack.c.h.b16 %v3297
      %v3354 = vunpack.c.l.b16 %v3298
      %v3355 = vunpack.c.h.b16 %v3298
      %v3356 = vunpack.c.l.b16 %v3299
      %v3357 = vunpack.c.h.b16 %v3299
      %v3358 = vunpack.c.l.b16 %v3300
      %v3359 = vunpack.c.h.b16 %v3300
      %v3360 = vunpack.c.l.b16 %v3301
      %v3361 = vunpack.c.h.b16 %v3301
      %v3362 = vpack.c.b16 %v3354, %v3352
      %v3363 = vpack.c.b16 %v3355, %v3353
      %v3364 = vpack.c.b16 %v3358, %v3356
      %v3365 = vpack.c.b16 %v3359, %v3357
      %v3366 = vpack.c.b16 %v3360, %v3360
      %v3367 = vpack.c.b16 %v3361, %v3361
      %3368 = vrot.lane.b32.xlu0 %v3362, 112
      %v3369 = vpop.permute.xlu0 %3368
      %3370 = vrot.lane.b32.xlu0 %v3363, 112
      %v3371 = vpop.permute.xlu0 %3370
      %3372 = vrot.lane.b32.xlu0 %v3364, 112
      %v3373 = vpop.permute.xlu0 %3372
      %3374 = vrot.lane.b32.xlu0 %v3365, 112
      %v3375 = vpop.permute.xlu0 %3374
      %3376 = vrot.lane.b32.xlu0 %v3366, 112
      %v3377 = vpop.permute.xlu0 %3376
      %3378 = vrot.lane.b32.xlu0 %v3367, 112
      %v3379 = vpop.permute.xlu0 %3378
      %v3380 = vsel %vm1562, %v3369, %v3371
      %v3381 = vsel %vm1562, %v3373, %v3375
      %v3382 = vsel %vm1562, %v3377, %v3379
      %v3387 = vsel %vm2568, %v3371, 0
      %v3390 = vsel %vm2568, %v3375, 0
      %v3393 = vsel %vm2568, %v3379, 0
      %v3396 = vsel %vm2572, %v3344, 0
      %v3399 = vsel %vm2572, %v3345, 0
      %v3402 = vsel %vm2572, %v3346, 0
      %3404 = vmatprep.subr.bf16.mxu0 %v3303
      %3405 = vmatpush1.bf16.msra.mxu0 %v3302
      %3406 = vmatprep.subr.bf16.mxu0 %v3306
      %3407 = vmatpush1.bf16.msra.mxu0 %v3305
      %3408 = vmatprep.subr.bf16.mxu0 %v3309
      %3409 = vmatpush1.bf16.msra.mxu0 %v3308
      %3410 = vmatprep.subr.bf16.mxu0 %v3312
      %3411 = vmatpush1.bf16.msra.mxu0 %v3311
      %3412 = vmatprep.subr.bf16.mxu0 %v3315
      %3413 = vmatpush1.bf16.msra.mxu0 %v3314
      %3414 = vmatprep.subr.bf16.mxu0 %v3318
      %3415 = vmatpush1.bf16.msra.mxu0 %v3317
      %3416 = vmatprep.subr.bf16.mxu0 %v3321
      %3417 = vmatpush1.bf16.msra.mxu0 %v3320
      %3418 = vmatprep.subr.bf16.mxu0 %v3324
      %3419 = vmatpush1.bf16.msra.mxu0 %v3323
      %3420 = vmatprep.subr.bf16.mxu0 %v3327
      %3421 = vmatpush1.bf16.msra.mxu0 %v3326
      %3422 = vmatprep.subr.bf16.mxu0 %v3330
      %3423 = vmatpush1.bf16.msra.mxu0 %v3329
      %3424 = vmatprep.subr.bf16.mxu0 %v3333
      %3425 = vmatpush1.bf16.msra.mxu0 %v3332
      %3426 = vmatprep.subr.bf16.mxu0 %v3336
      %3427 = vmatpush1.bf16.msra.mxu0 %v3335
      %3428 = vmatprep.subr.bf16.mxu0 %v3339
      %3429 = vmatpush1.bf16.msra.mxu0 %v3338
      %3430 = vmatprep.subr.bf16.mxu0 %v3342
      %3431 = vmatpush1.bf16.msra.mxu0 %v3341
      %3432 = vmatprep.subr.bf16.mxu0 %v3399
      %3433 = vmatpush1.bf16.msra.mxu0 %v3396
      %3434 = vmatprep.subr.bf16.mxu0 0
      %3435 = vmatpush1.bf16.msra.mxu0 0
      %3436 = vmatprep.mubr.bf16.mxu0 %v3387
      %3437 = vmatmul.mubr.bf16.gmra.mrb[0].mxu0 %v3380
      %v3438 = vpop.f32.mrb[0].mxu0
      %v3439 = vadd.f32 0.0, %v3438
      %v3440 = vpop.f32.mrb[0].mxu0
      %v3441 = vadd.f32 0.0, %v3440
      %v3442 = vpop.f32.mrb[0].mxu0
      %v3443 = vadd.f32 0.0, %v3442
      %v3444 = vpop.f32.mrb[0].mxu0
      %v3445 = vadd.f32 0.0, %v3444
      %3446 = vmatprep.mubr.bf16.mxu0 %v3390
      %3447 = vmatmul.mubr.bf16.gmra.mrb[0].mxu0 %v3381
      %v3448 = vpop.f32.mrb[0].mxu0
      %v3449 = vadd.f32 0.0, %v3448
      %v3450 = vpop.f32.mrb[0].mxu0
      %v3451 = vadd.f32 0.0, %v3450
      %v3452 = vpop.f32.mrb[0].mxu0
      %v3453 = vadd.f32 0.0, %v3452
      %v3454 = vpop.f32.mrb[0].mxu0
      %v3455 = vadd.f32 0.0, %v3454
      %3456 = vmatprep.mubr.bf16.mxu0 %v3393
      %3457 = vmatmul.mubr.bf16.gmra.mrb[0].mxu0 %v3382
      %v3458 = vpop.f32.mrb[0].mxu0
      %v3459 = vadd.f32 0.0, %v3458
      %v3460 = vpop.f32.mrb[0].mxu0
      %v3461 = vadd.f32 0.0, %v3460
      %v3462 = vpop.f32.mrb[0].mxu0
      %v3463 = vpop.f32.mrb[0].mxu0
      %3464 = vdwg.mxu0
      %3465 = vmatprep.subr.bf16.mxu0 0
      %3466 = vmatpush1.bf16.msra.mxu0 %v3304
      %3467 = vmatprep.subr.bf16.mxu0 0
      %3468 = vmatpush1.bf16.msra.mxu0 %v3307
      %3469 = vmatprep.subr.bf16.mxu0 0
      %3470 = vmatpush1.bf16.msra.mxu0 %v3310
      %3471 = vmatprep.subr.bf16.mxu0 0
      %3472 = vmatpush1.bf16.msra.mxu0 %v3313
      %3473 = vmatprep.subr.bf16.mxu0 0
      %3474 = vmatpush1.bf16.msra.mxu0 %v3316
      %3475 = vmatprep.subr.bf16.mxu0 0
      %3476 = vmatpush1.bf16.msra.mxu0 %v3319
      %3477 = vmatprep.subr.bf16.mxu0 0
      %3478 = vmatpush1.bf16.msra.mxu0 %v3322
      %3479 = vmatprep.subr.bf16.mxu0 0
      %3480 = vmatpush1.bf16.msra.mxu0 %v3325
      %3481 = vmatprep.subr.bf16.mxu0 0
      %3482 = vmatpush1.bf16.msra.mxu0 %v3328
      %3483 = vmatprep.subr.bf16.mxu0 0
      %3484 = vmatpush1.bf16.msra.mxu0 %v3331
      %3485 = vmatprep.subr.bf16.mxu0 0
      %3486 = vmatpush1.bf16.msra.mxu0 %v3334
      %3487 = vmatprep.subr.bf16.mxu0 0
      %3488 = vmatpush1.bf16.msra.mxu0 %v3337
      %3489 = vmatprep.subr.bf16.mxu0 0
      %3490 = vmatpush1.bf16.msra.mxu0 %v3340
      %3491 = vmatprep.subr.bf16.mxu0 0
      %3492 = vmatpush1.bf16.msra.mxu0 %v3343
      %3493 = vmatprep.subr.bf16.mxu0 0
      %3494 = vmatpush1.bf16.msra.mxu0 %v3402
      %3495 = vmatprep.subr.bf16.mxu0 0
      %3496 = vmatpush1.bf16.msra.mxu0 0
      %3497 = vmatprep.mubr.bf16.mxu0 %v3387
      %3498 = vmatmul.mubr.bf16.gmra.mrb[0].mxu0 %v3380
      %v3499 = vpop.f32.mrb[0].mxu0
      %v3500 = vadd.f32 0.0, %v3499
      %v3501 = vpop.f32.mrb[0].mxu0
      %v3502 = vpop.f32.mrb[0].mxu0
      %v3503 = vadd.f32 0.0, %v3502
      %v3504 = vpop.f32.mrb[0].mxu0
      %3505 = vmatprep.mubr.bf16.mxu0 %v3390
      %3506 = vmatmul.mubr.bf16.gmra.mrb[0].mxu0 %v3381
      %v3507 = vpop.f32.mrb[0].mxu0
      %v3508 = vadd.f32 0.0, %v3507
      %v3509 = vpop.f32.mrb[0].mxu0
      %v3510 = vpop.f32.mrb[0].mxu0
      %v3511 = vadd.f32 0.0, %v3510
      %v3512 = vpop.f32.mrb[0].mxu0
      %3513 = vmatprep.mubr.bf16.mxu0 %v3393
      %3514 = vmatmul.mubr.bf16.gmra.mrb[0].mxu0 %v3382
      %v3515 = vpop.f32.mrb[0].mxu0
      %v3516 = vadd.f32 0.0, %v3515
      %v3517 = vpop.f32.mrb[0].mxu0
      %v3518 = vpop.f32.mrb[0].mxu0
      %v3519 = vpop.f32.mrb[0].mxu0
      %3520 = vdwg.mxu0
      %v3526 = vunpack.c.l.b16 %v2860
      %v3527 = vunpack.c.h.b16 %v2860
      %v3528 = vunpack.c.l.b16 %v2861
      %v3529 = vunpack.c.h.b16 %v2861
      %v3530 = vunpack.c.l.b16 %v2862
      %v3531 = vunpack.c.h.b16 %v2862
      %v3532 = vunpack.c.l.b16 %v2863
      %v3533 = vunpack.c.h.b16 %v2863
      %v3534 = vunpack.c.l.b16 %v2864
      %v3535 = vunpack.c.h.b16 %v2864
      %v3536 = vpack.c.b16 %v3528, %v3526
      %v3537 = vpack.c.b16 %v3529, %v3527
      %v3538 = vpack.c.b16 %v3532, %v3530
      %v3539 = vpack.c.b16 %v3533, %v3531
      %v3540 = vpack.c.b16 %v3534, %v3534
      %v3541 = vpack.c.b16 %v3535, %v3535
      %v3546 = vsel %vm1799, %v3537, 0
      %v3549 = vsel %vm1799, %v3539, 0
      %v3552 = vsel %vm1799, %v3541, 0
      %3554 = vmatprep.subr.bf16.mxu0 %v2866
      %3555 = vmatpush1.bf16.msra.mxu0 %v2865
      %3556 = vmatprep.subr.bf16.mxu0 %v2869
      %3557 = vmatpush1.bf16.msra.mxu0 %v2868
      %3558 = vmatprep.subr.bf16.mxu0 %v2872
      %3559 = vmatpush1.bf16.msra.mxu0 %v2871
      %3560 = vmatprep.subr.bf16.mxu0 %v2875
      %3561 = vmatpush1.bf16.msra.mxu0 %v2874
      %3562 = vmatprep.subr.bf16.mxu0 %v2878
      %3563 = vmatpush1.bf16.msra.mxu0 %v2877
      %3564 = vmatprep.subr.bf16.mxu0 %v2881
      %3565 = vmatpush1.bf16.msra.mxu0 %v2880
      %3566 = vmatprep.subr.bf16.mxu0 %v2884
      %3567 = vmatpush1.bf16.msra.mxu0 %v2883
      %3568 = vmatprep.subr.bf16.mxu0 %v2887
      %3569 = vmatpush1.bf16.msra.mxu0 %v2886
      %3570 = vmatprep.subr.bf16.mxu0 %v2890
      %3571 = vmatpush1.bf16.msra.mxu0 %v2889
      %3572 = vmatprep.subr.bf16.mxu0 0
      %3573 = vmatpush1.bf16.msra.mxu0 0
      %3574 = vmatprep.subr.bf16.mxu0 0
      %3575 = vmatpush1.bf16.msra.mxu0 0
      %3576 = vmatprep.subr.bf16.mxu0 0
      %3577 = vmatpush1.bf16.msra.mxu0 0
      %3578 = vmatprep.subr.bf16.mxu0 0
      %3579 = vmatpush1.bf16.msra.mxu0 0
      %3580 = vmatprep.subr.bf16.mxu0 0
      %3581 = vmatpush1.bf16.msra.mxu0 0
      %3582 = vmatprep.subr.bf16.mxu0 0
      %3583 = vmatpush1.bf16.msra.mxu0 0
      %3584 = vmatprep.subr.bf16.mxu0 0
      %3585 = vmatpush1.bf16.msra.mxu0 0
      %3586 = vmatprep.mubr.bf16.mxu0 %v3546
      %3587 = vmatmul.mubr.bf16.gmra.mrb[0].mxu0 %v3536
      %v3588 = vpop.f32.mrb[0].mxu0
      %v3589 = vadd.f32 %v3439, %v3588
      %v3590 = vpop.f32.mrb[0].mxu0
      %v3591 = vadd.f32 %v3441, %v3590
      %v3592 = vpop.f32.mrb[0].mxu0
      %v3593 = vadd.f32 %v3443, %v3592
      %v3594 = vpop.f32.mrb[0].mxu0
      %v3595 = vadd.f32 %v3445, %v3594
      %3596 = vmatprep.mubr.bf16.mxu0 %v3549
      %3597 = vmatmul.mubr.bf16.gmra.mrb[0].mxu0 %v3538
      %v3598 = vpop.f32.mrb[0].mxu0
      %v3599 = vadd.f32 %v3449, %v3598
      %v3600 = vpop.f32.mrb[0].mxu0
      %v3601 = vadd.f32 %v3451, %v3600
      %v3602 = vpop.f32.mrb[0].mxu0
      %v3603 = vadd.f32 %v3453, %v3602
      %v3604 = vpop.f32.mrb[0].mxu0
      %v3605 = vadd.f32 %v3455, %v3604
      %3606 = vmatprep.mubr.bf16.mxu0 %v3552
      %3607 = vmatmul.mubr.bf16.gmra.mrb[0].mxu0 %v3540
      %v3608 = vpop.f32.mrb[0].mxu0
      %v3609 = vadd.f32 %v3459, %v3608
      %v3610 = vpop.f32.mrb[0].mxu0
      %v3611 = vadd.f32 %v3461, %v3610
      %v3612 = vpop.f32.mrb[0].mxu0
      %v3613 = vpop.f32.mrb[0].mxu0
      %3614 = vdwg.mxu0
      %3615 = vmatprep.subr.bf16.mxu0 0
      %3616 = vmatpush1.bf16.msra.mxu0 %v2867
      %3617 = vmatprep.subr.bf16.mxu0 0
      %3618 = vmatpush1.bf16.msra.mxu0 %v2870
      %3619 = vmatprep.subr.bf16.mxu0 0
      %3620 = vmatpush1.bf16.msra.mxu0 %v2873
      %3621 = vmatprep.subr.bf16.mxu0 0
      %3622 = vmatpush1.bf16.msra.mxu0 %v2876
      %3623 = vmatprep.subr.bf16.mxu0 0
      %3624 = vmatpush1.bf16.msra.mxu0 %v2879
      %3625 = vmatprep.subr.bf16.mxu0 0
      %3626 = vmatpush1.bf16.msra.mxu0 %v2882
      %3627 = vmatprep.subr.bf16.mxu0 0
      %3628 = vmatpush1.bf16.msra.mxu0 %v2885
      %3629 = vmatprep.subr.bf16.mxu0 0
      %3630 = vmatpush1.bf16.msra.mxu0 %v2888
      %3631 = vmatprep.subr.bf16.mxu0 0
      %3632 = vmatpush1.bf16.msra.mxu0 %v2891
      %3633 = vmatprep.subr.bf16.mxu0 0
      %3634 = vmatpush1.bf16.msra.mxu0 0
      %3635 = vmatprep.subr.bf16.mxu0 0
      %3636 = vmatpush1.bf16.msra.mxu0 0
      %3637 = vmatprep.subr.bf16.mxu0 0
      %3638 = vmatpush1.bf16.msra.mxu0 0
      %3639 = vmatprep.subr.bf16.mxu0 0
      %3640 = vmatpush1.bf16.msra.mxu0 0
      %3641 = vmatprep.subr.bf16.mxu0 0
      %3642 = vmatpush1.bf16.msra.mxu0 0
      %3643 = vmatprep.subr.bf16.mxu0 0
      %3644 = vmatpush1.bf16.msra.mxu0 0
      %3645 = vmatprep.subr.bf16.mxu0 0
      %3646 = vmatpush1.bf16.msra.mxu0 0
      %3647 = vmatprep.mubr.bf16.mxu0 %v3546
      %3648 = vmatmul.mubr.bf16.gmra.mrb[0].mxu0 %v3536
      %v3649 = vpop.f32.mrb[0].mxu0
      %v3650 = vadd.f32 %v3500, %v3649
      %v3651 = vpop.f32.mrb[0].mxu0
      %v3652 = vpop.f32.mrb[0].mxu0
      %v3653 = vadd.f32 %v3503, %v3652
      %v3654 = vpop.f32.mrb[0].mxu0
      %3655 = vmatprep.mubr.bf16.mxu0 %v3549
      %3656 = vmatmul.mubr.bf16.gmra.mrb[0].mxu0 %v3538
      %v3657 = vpop.f32.mrb[0].mxu0
      %v3658 = vadd.f32 %v3508, %v3657
      %v3659 = vpop.f32.mrb[0].mxu0
      %v3660 = vpop.f32.mrb[0].mxu0
      %v3661 = vadd.f32 %v3511, %v3660
      %v3662 = vpop.f32.mrb[0].mxu0
      %3663 = vmatprep.mubr.bf16.mxu0 %v3552
      %3664 = vmatmul.mubr.bf16.gmra.mrb[0].mxu0 %v3540
      %v3665 = vpop.f32.mrb[0].mxu0
      %v3666 = vadd.f32 %v3516, %v3665
      %v3667 = vpop.f32.mrb[0].mxu0
      %v3668 = vpop.f32.mrb[0].mxu0
      %v3669 = vpop.f32.mrb[0].mxu0
      %3670 = vdwg.mxu0
      %v3671 = vld [vmem:[%s354] sm:$0xff]
      %v3672 = vld [vmem:[%s354 + $0x8] sm:$0xf]
      %v3673 = vld [vmem:[%s354 + $0xc] sm:$0xff]
      %v3674 = vld [vmem:[%s354 + $0x14] sm:$0xf]
      %v3675 = vld [vmem:[%s354 + $0x18] sm:$0xff]
      %v3676 = vld [vmem:[%s354 + $0x20] sm:$0xf]
      %v3677 = vld [vmem:[%s354 + $0x24] sm:$0xff]
      %v3678 = vld [vmem:[%s354 + $0x2c] sm:$0xf]
      %v3687 = vunpack.c.l.b16 %v3671
      %v3688 = vunpack.c.h.b16 %v3671
      %v3689 = vunpack.c.l.b16 %v3672
      %v3690 = vunpack.c.l.b16 %v3673
      %v3691 = vunpack.c.h.b16 %v3673
      %v3692 = vunpack.c.l.b16 %v3674
      %v3693 = vunpack.c.l.b16 %v3675
      %v3694 = vunpack.c.h.b16 %v3675
      %v3695 = vunpack.c.l.b16 %v3676
      %v3696 = vunpack.c.l.b16 %v3677
      %v3697 = vunpack.c.h.b16 %v3677
      %v3698 = vunpack.c.l.b16 %v3678
      %v3699 = vpack.c.b16 %v3690, %v3687
      %v3700 = vpack.c.b16 %v3691, %v3688
      %v3701 = vpack.c.b16 %v3692, %v3689
      %v3702 = vpack.c.b16 %v3696, %v3693
      %v3703 = vpack.c.b16 %v3697, %v3694
      %v3704 = vpack.c.b16 %v3698, %v3695
      %3705 = vrot.lane.b32.xlu0 %v3699, 111
      %v3706 = vpop.permute.xlu0 %3705
      %3707 = vrot.lane.b32.xlu0 %v3700, 111
      %v3708 = vpop.permute.xlu0 %3707
      %3709 = vrot.lane.b32.xlu0 %v3701, 111
      %v3710 = vpop.permute.xlu0 %3709
      %3711 = vrot.lane.b32.xlu0 %v3702, 111
      %v3712 = vpop.permute.xlu0 %3711
      %3713 = vrot.lane.b32.xlu0 %v3703, 111
      %v3714 = vpop.permute.xlu0 %3713
      %3715 = vrot.lane.b32.xlu0 %v3704, 111
      %v3716 = vpop.permute.xlu0 %3715
      %v3717 = vsel %vm425, %v3706, %v3708
      %v3718 = vsel %vm425, %v3708, %v3710
      %v3719 = vsel %vm425, %v3712, %v3714
      %v3720 = vsel %vm425, %v3714, %v3716
      %3727 = vst [vmem:[#allocation5] sm:$0xff] %v3717
      %3728 = vst [vmem:[#allocation5 + $0x8] sm:$0xff] %v3718
      %3729 = vst.msk [vmem:[#allocation5 + $0x10] sm:$0xff] %vm438, %v3710
      %3730 = vst [vmem:[#allocation5 + $0x18] sm:$0xff] %v3719
      %3731 = vst [vmem:[#allocation5 + $0x20] sm:$0xff] %v3720
      %3732 = vst.msk [vmem:[#allocation5 + $0x28] sm:$0xff] %vm438, %v3716
      %3733 = vrot.lane.b32.xlu0 %v3699, 110
      %v3734 = vpop.permute.xlu0 %3733
      %3735 = vrot.lane.b32.xlu0 %v3700, 110
      %v3736 = vpop.permute.xlu0 %3735
      %3737 = vrot.lane.b32.xlu0 %v3701, 110
      %v3738 = vpop.permute.xlu0 %3737
      %3739 = vrot.lane.b32.xlu0 %v3702, 110
      %v3740 = vpop.permute.xlu0 %3739
      %3741 = vrot.lane.b32.xlu0 %v3703, 110
      %v3742 = vpop.permute.xlu0 %3741
      %3743 = vrot.lane.b32.xlu0 %v3704, 110
      %v3744 = vpop.permute.xlu0 %3743
      %v3745 = vsel %vm455, %v3734, %v3736
      %v3746 = vsel %vm455, %v3736, %v3738
      %v3747 = vsel %vm455, %v3740, %v3742
      %v3748 = vsel %vm455, %v3742, %v3744
      %3755 = vst [vmem:[#allocation5 + $0x30] sm:$0xff] %v3745
      %3756 = vst [vmem:[#allocation5 + $0x38] sm:$0xff] %v3746
      %3757 = vst.msk [vmem:[#allocation5 + $0x40] sm:$0xff] %vm438, %v3738
      %3758 = vst [vmem:[#allocation5 + $0x48] sm:$0xff] %v3747
      %3759 = vst [vmem:[#allocation5 + $0x50] sm:$0xff] %v3748
      %3760 = vst.msk [vmem:[#allocation5 + $0x58] sm:$0xff] %vm438, %v3744
      %3761 = vrot.lane.b32.xlu0 %v3699, 109
      %v3762 = vpop.permute.xlu0 %3761
      %3763 = vrot.lane.b32.xlu0 %v3700, 109
      %v3764 = vpop.permute.xlu0 %3763
      %3765 = vrot.lane.b32.xlu0 %v3701, 109
      %v3766 = vpop.permute.xlu0 %3765
      %3767 = vrot.lane.b32.xlu0 %v3702, 109
      %v3768 = vpop.permute.xlu0 %3767
      %3769 = vrot.lane.b32.xlu0 %v3703, 109
      %v3770 = vpop.permute.xlu0 %3769
      %3771 = vrot.lane.b32.xlu0 %v3704, 109
      %v3772 = vpop.permute.xlu0 %3771
      %v3773 = vsel %vm484, %v3762, %v3764
      %v3774 = vsel %vm484, %v3764, %v3766
      %v3775 = vsel %vm484, %v3768, %v3770
      %v3776 = vsel %vm484, %v3770, %v3772
      %3783 = vst [vmem:[#allocation5 + $0x60] sm:$0xff] %v3773
      %3784 = vst [vmem:[#allocation5 + $0x68] sm:$0xff] %v3774
      %3785 = vst.msk [vmem:[#allocation5 + $0x70] sm:$0xff] %vm438, %v3766
      %3786 = vst [vmem:[#allocation5 + $0x78] sm:$0xff] %v3775
      %3787 = vst [vmem:[#allocation5 + $0x80] sm:$0xff] %v3776
      %3788 = vst.msk [vmem:[#allocation5 + $0x88] sm:$0xff] %vm438, %v3772
      %3789 = vrot.lane.b32.xlu0 %v3699, 93
      %v3790 = vpop.permute.xlu0 %3789
      %3791 = vrot.lane.b32.xlu0 %v3700, 93
      %v3792 = vpop.permute.xlu0 %3791
      %3793 = vrot.lane.b32.xlu0 %v3701, 93
      %v3794 = vpop.permute.xlu0 %3793
      %3795 = vrot.lane.b32.xlu0 %v3702, 93
      %v3796 = vpop.permute.xlu0 %3795
      %3797 = vrot.lane.b32.xlu0 %v3703, 93
      %v3798 = vpop.permute.xlu0 %3797
      %3799 = vrot.lane.b32.xlu0 %v3704, 93
      %v3800 = vpop.permute.xlu0 %3799
      %v3801 = vsel %vm513, %v3790, %v3792
      %v3802 = vsel %vm513, %v3792, %v3794
      %v3803 = vsel %vm513, %v3796, %v3798
      %v3804 = vsel %vm513, %v3798, %v3800
      %3811 = vst [vmem:[#allocation5 + $0x90] sm:$0xff] %v3801
      %3812 = vst [vmem:[#allocation5 + $0x98] sm:$0xff] %v3802
      %3813 = vst.msk [vmem:[#allocation5 + $0xa0] sm:$0xff] %vm438, %v3794
      %3814 = vst [vmem:[#allocation5 + $0xa8] sm:$0xff] %v3803
      %3815 = vst [vmem:[#allocation5 + $0xb0] sm:$0xff] %v3804
      %3816 = vst.msk [vmem:[#allocation5 + $0xb8] sm:$0xff] %vm438, %v3800
      %3817 = vrot.lane.b32.xlu0 %v3699, 92
      %v3818 = vpop.permute.xlu0 %3817
      %3819 = vrot.lane.b32.xlu0 %v3700, 92
      %v3820 = vpop.permute.xlu0 %3819
      %3821 = vrot.lane.b32.xlu0 %v3701, 92
      %v3822 = vpop.permute.xlu0 %3821
      %3823 = vrot.lane.b32.xlu0 %v3702, 92
      %v3824 = vpop.permute.xlu0 %3823
      %3825 = vrot.lane.b32.xlu0 %v3703, 92
      %v3826 = vpop.permute.xlu0 %3825
      %3827 = vrot.lane.b32.xlu0 %v3704, 92
      %v3828 = vpop.permute.xlu0 %3827
      %v3829 = vsel %vm542, %v3818, %v3820
      %v3830 = vsel %vm542, %v3820, %v3822
      %v3831 = vsel %vm542, %v3824, %v3826
      %v3832 = vsel %vm542, %v3826, %v3828
      %3839 = vst [vmem:[#allocation5 + $0xc0] sm:$0xff] %v3829
      %3840 = vst [vmem:[#allocation5 + $0xc8] sm:$0xff] %v3830
      %3841 = vst.msk [vmem:[#allocation5 + $0xd0] sm:$0xff] %vm438, %v3822
      %3842 = vst [vmem:[#allocation5 + $0xd8] sm:$0xff] %v3831
      %3843 = vst [vmem:[#allocation5 + $0xe0] sm:$0xff] %v3832
      %3844 = vst.msk [vmem:[#allocation5 + $0xe8] sm:$0xff] %vm438, %v3828
      %3845 = vrot.lane.b32.xlu0 %v3699, 91
      %v3846 = vpop.permute.xlu0 %3845
      %3847 = vrot.lane.b32.xlu0 %v3700, 91
      %v3848 = vpop.permute.xlu0 %3847
      %3849 = vrot.lane.b32.xlu0 %v3701, 91
      %v3850 = vpop.permute.xlu0 %3849
      %3851 = vrot.lane.b32.xlu0 %v3702, 91
      %v3852 = vpop.permute.xlu0 %3851
      %3853 = vrot.lane.b32.xlu0 %v3703, 91
      %v3854 = vpop.permute.xlu0 %3853
      %3855 = vrot.lane.b32.xlu0 %v3704, 91
      %v3856 = vpop.permute.xlu0 %3855
      %v3857 = vsel %vm571, %v3846, %v3848
      %v3858 = vsel %vm571, %v3848, %v3850
      %v3859 = vsel %vm571, %v3852, %v3854
      %v3860 = vsel %vm571, %v3854, %v3856
      %3867 = vst [vmem:[#allocation5 + $0xf0] sm:$0xff] %v3857
      %3868 = vst [vmem:[#allocation5 + $0xf8] sm:$0xff] %v3858
      %3869 = vst.msk [vmem:[#allocation5 + $0x100] sm:$0xff] %vm438, %v3850
      %3870 = vst [vmem:[#allocation5 + $0x108] sm:$0xff] %v3859
      %3871 = vst [vmem:[#allocation5 + $0x110] sm:$0xff] %v3860
      %3872 = vst.msk [vmem:[#allocation5 + $0x118] sm:$0xff] %vm438, %v3856
      %3873 = vrot.lane.b32.xlu0 %v3699, 75
      %v3874 = vpop.permute.xlu0 %3873
      %3875 = vrot.lane.b32.xlu0 %v3700, 75
      %v3876 = vpop.permute.xlu0 %3875
      %3877 = vrot.lane.b32.xlu0 %v3701, 75
      %v3878 = vpop.permute.xlu0 %3877
      %3879 = vrot.lane.b32.xlu0 %v3702, 75
      %v3880 = vpop.permute.xlu0 %3879
      %3881 = vrot.lane.b32.xlu0 %v3703, 75
      %v3882 = vpop.permute.xlu0 %3881
      %3883 = vrot.lane.b32.xlu0 %v3704, 75
      %v3884 = vpop.permute.xlu0 %3883
      %v3885 = vsel %vm600, %v3874, %v3876
      %v3886 = vsel %vm600, %v3876, %v3878
      %v3887 = vsel %vm600, %v3880, %v3882
      %v3888 = vsel %vm600, %v3882, %v3884
      %3895 = vst [vmem:[#allocation5 + $0x120] sm:$0xff] %v3885
      %3896 = vst [vmem:[#allocation5 + $0x128] sm:$0xff] %v3886
      %3897 = vst.msk [vmem:[#allocation5 + $0x130] sm:$0xff] %vm438, %v3878
      %3898 = vst [vmem:[#allocation5 + $0x138] sm:$0xff] %v3887
      %3899 = vst [vmem:[#allocation5 + $0x140] sm:$0xff] %v3888
      %3900 = vst.msk [vmem:[#allocation5 + $0x148] sm:$0xff] %vm438, %v3884
      %3901 = vrot.lane.b32.xlu0 %v3699, 74
      %v3902 = vpop.permute.xlu0 %3901
      %3903 = vrot.lane.b32.xlu0 %v3700, 74
      %v3904 = vpop.permute.xlu0 %3903
      %3905 = vrot.lane.b32.xlu0 %v3701, 74
      %v3906 = vpop.permute.xlu0 %3905
      %3907 = vrot.lane.b32.xlu0 %v3702, 74
      %v3908 = vpop.permute.xlu0 %3907
      %3909 = vrot.lane.b32.xlu0 %v3703, 74
      %v3910 = vpop.permute.xlu0 %3909
      %3911 = vrot.lane.b32.xlu0 %v3704, 74
      %v3912 = vpop.permute.xlu0 %3911
      %v3913 = vsel %vm629, %v3902, %v3904
      %v3914 = vsel %vm629, %v3904, %v3906
      %v3915 = vsel %vm629, %v3908, %v3910
      %v3916 = vsel %vm629, %v3910, %v3912
      %3923 = vst [vmem:[#allocation5 + $0x150] sm:$0xff] %v3913
      %3924 = vst [vmem:[#allocation5 + $0x158] sm:$0xff] %v3914
      %3925 = vst.msk [vmem:[#allocation5 + $0x160] sm:$0xff] %vm438, %v3906
      %3926 = vst [vmem:[#allocation5 + $0x168] sm:$0xff] %v3915
      %3927 = vst [vmem:[#allocation5 + $0x170] sm:$0xff] %v3916
      %3928 = vst.msk [vmem:[#allocation5 + $0x178] sm:$0xff] %vm438, %v3912
      %3929 = vrot.lane.b32.xlu0 %v3699, 73
      %v3930 = vpop.permute.xlu0 %3929
      %3931 = vrot.lane.b32.xlu0 %v3700, 73
      %v3932 = vpop.permute.xlu0 %3931
      %3933 = vrot.lane.b32.xlu0 %v3701, 73
      %v3934 = vpop.permute.xlu0 %3933
      %3935 = vrot.lane.b32.xlu0 %v3702, 73
      %v3936 = vpop.permute.xlu0 %3935
      %3937 = vrot.lane.b32.xlu0 %v3703, 73
      %v3938 = vpop.permute.xlu0 %3937
      %3939 = vrot.lane.b32.xlu0 %v3704, 73
      %v3940 = vpop.permute.xlu0 %3939
      %v3941 = vsel %vm658, %v3930, %v3932
      %v3942 = vsel %vm658, %v3932, %v3934
      %v3943 = vsel %vm658, %v3936, %v3938
      %v3944 = vsel %vm658, %v3938, %v3940
      %3951 = vst [vmem:[#allocation5 + $0x180] sm:$0xff] %v3941
      %3952 = vst [vmem:[#allocation5 + $0x188] sm:$0xff] %v3942
      %3953 = vst.msk [vmem:[#allocation5 + $0x190] sm:$0xff] %vm438, %v3934
      %3954 = vst [vmem:[#allocation5 + $0x198] sm:$0xff] %v3943
      %3955 = vst [vmem:[#allocation5 + $0x1a0] sm:$0xff] %v3944
      %3956 = vst.msk [vmem:[#allocation5 + $0x1a8] sm:$0xff] %vm438, %v3940
      %v3957 = vld [vmem:[%s5 + $0x8] sm:$0xff]
      %v3958 = vld [vmem:[%s5 + $0x10] sm:$0xff]
      %v3959 = vld [vmem:[%s5 + $0x20] sm:$0xff]
      %v3960 = vld [vmem:[%s5 + $0x28] sm:$0xff]
      %v3961 = vld [vmem:[%s5 + $0x38] sm:$0xff]
      %v3962 = vld [vmem:[%s5 + $0x40] sm:$0xff]
      %v3963 = vld [vmem:[%s5 + $0x50] sm:$0xff]
      %v3964 = vld [vmem:[%s5 + $0x58] sm:$0xff]
      %v3965 = vld [vmem:[%s5 + $0x68] sm:$0xff]
      %v3966 = vld [vmem:[%s5 + $0x70] sm:$0xff]
      %v3967 = vld [vmem:[#allocation5] sm:$0xff]
      %v3968 = vld [vmem:[#allocation5 + $0x8] sm:$0xff]
      %v3969 = vld [vmem:[#allocation5 + $0x10] sm:$0xff]
      %v3970 = vld [vmem:[#allocation5 + $0x18] sm:$0xff]
      %v3971 = vld [vmem:[#allocation5 + $0x20] sm:$0xff]
      %v3972 = vld [vmem:[#allocation5 + $0x28] sm:$0xff]
      %v3973 = vld [vmem:[#allocation5 + $0x30] sm:$0xff]
      %v3974 = vld [vmem:[#allocation5 + $0x38] sm:$0xff]
      %v3975 = vld [vmem:[#allocation5 + $0x40] sm:$0xff]
      %v3976 = vld [vmem:[#allocation5 + $0x48] sm:$0xff]
      %v3977 = vld [vmem:[#allocation5 + $0x50] sm:$0xff]
      %v3978 = vld [vmem:[#allocation5 + $0x58] sm:$0xff]
      %v3979 = vld [vmem:[#allocation5 + $0x60] sm:$0xff]
      %v3980 = vld [vmem:[#allocation5 + $0x68] sm:$0xff]
      %v3981 = vld [vmem:[#allocation5 + $0x70] sm:$0xff]
      %v3982 = vld [vmem:[#allocation5 + $0x78] sm:$0xff]
      %v3983 = vld [vmem:[#allocation5 + $0x80] sm:$0xff]
      %v3984 = vld [vmem:[#allocation5 + $0x88] sm:$0xff]
      %v3985 = vld [vmem:[#allocation5 + $0x90] sm:$0xff]
      %v3986 = vld [vmem:[#allocation5 + $0x98] sm:$0xff]
      %v3987 = vld [vmem:[#allocation5 + $0xa0] sm:$0xff]
      %v3988 = vld [vmem:[#allocation5 + $0xa8] sm:$0xff]
      %v3989 = vld [vmem:[#allocation5 + $0xb0] sm:$0xff]
      %v3990 = vld [vmem:[#allocation5 + $0xb8] sm:$0xff]
      %v3991 = vld [vmem:[#allocation5 + $0xc0] sm:$0xff]
      %v3992 = vld [vmem:[#allocation5 + $0xc8] sm:$0xff]
      %v3993 = vld [vmem:[#allocation5 + $0xd0] sm:$0xff]
      %v3994 = vld [vmem:[#allocation5 + $0xd8] sm:$0xff]
      %v3995 = vld [vmem:[#allocation5 + $0xe0] sm:$0xff]
      %v3996 = vld [vmem:[#allocation5 + $0xe8] sm:$0xff]
      %v3997 = vld [vmem:[#allocation5 + $0xf0] sm:$0xff]
      %v3998 = vld [vmem:[#allocation5 + $0xf8] sm:$0xff]
      %v3999 = vld [vmem:[#allocation5 + $0x100] sm:$0xff]
      %v4000 = vld [vmem:[#allocation5 + $0x108] sm:$0xff]
      %v4001 = vld [vmem:[#allocation5 + $0x110] sm:$0xff]
      %v4002 = vld [vmem:[#allocation5 + $0x118] sm:$0xff]
      %v4003 = vld [vmem:[#allocation5 + $0x120] sm:$0xff]
      %v4004 = vld [vmem:[#allocation5 + $0x128] sm:$0xff]
      %v4005 = vld [vmem:[#allocation5 + $0x130] sm:$0xff]
      %v4006 = vld [vmem:[#allocation5 + $0x138] sm:$0xff]
      %v4007 = vld [vmem:[#allocation5 + $0x140] sm:$0xff]
      %v4008 = vld [vmem:[#allocation5 + $0x148] sm:$0xff]
      %v4009 = vld [vmem:[#allocation5 + $0x150] sm:$0xff]
      %v4010 = vld [vmem:[#allocation5 + $0x158] sm:$0xff]
      %v4011 = vld [vmem:[#allocation5 + $0x160] sm:$0xff]
      %v4012 = vld [vmem:[#allocation5 + $0x168] sm:$0xff]
      %v4013 = vld [vmem:[#allocation5 + $0x170] sm:$0xff]
      %v4014 = vld [vmem:[#allocation5 + $0x178] sm:$0xff]
      %v4015 = vld [vmem:[#allocation5 + $0x180] sm:$0xff]
      %v4016 = vld [vmem:[#allocation5 + $0x188] sm:$0xff]
      %v4017 = vld [vmem:[#allocation5 + $0x190] sm:$0xff]
      %v4018 = vld [vmem:[#allocation5 + $0x198] sm:$0xff]
      %v4019 = vld [vmem:[#allocation5 + $0x1a0] sm:$0xff]
      %v4020 = vld [vmem:[#allocation5 + $0x1a8] sm:$0xff]
      %v4031 = vunpack.c.l.b16 %v3957
      %v4032 = vunpack.c.h.b16 %v3957
      %v4033 = vunpack.c.l.b16 %v3958
      %v4034 = vunpack.c.h.b16 %v3958
      %v4035 = vunpack.c.l.b16 %v3959
      %v4036 = vunpack.c.h.b16 %v3959
      %v4037 = vunpack.c.l.b16 %v3960
      %v4038 = vunpack.c.h.b16 %v3960
      %v4039 = vunpack.c.l.b16 %v3961
      %v4040 = vunpack.c.h.b16 %v3961
      %v4041 = vunpack.c.l.b16 %v3962
      %v4042 = vunpack.c.h.b16 %v3962
      %v4043 = vunpack.c.l.b16 %v3963
      %v4044 = vunpack.c.h.b16 %v3963
      %v4045 = vunpack.c.l.b16 %v3964
      %v4046 = vunpack.c.h.b16 %v3964
      %v4047 = vunpack.c.l.b16 %v3965
      %v4048 = vunpack.c.h.b16 %v3965
      %v4049 = vunpack.c.l.b16 %v3966
      %v4050 = vunpack.c.h.b16 %v3966
      %v4051 = vpack.c.b16 %v4035, %v4031
      %v4052 = vpack.c.b16 %v4036, %v4032
      %v4053 = vpack.c.b16 %v4037, %v4033
      %v4054 = vpack.c.b16 %v4038, %v4034
      %v4055 = vpack.c.b16 %v4043, %v4039
      %v4056 = vpack.c.b16 %v4044, %v4040
      %v4057 = vpack.c.b16 %v4045, %v4041
      %v4058 = vpack.c.b16 %v4046, %v4042
      %v4059 = vpack.c.b16 %v4047, %v4047
      %v4060 = vpack.c.b16 %v4048, %v4048
      %v4061 = vpack.c.b16 %v4049, %v4049
      %v4062 = vpack.c.b16 %v4050, %v4050
      %4063 = vrot.lane.b32.xlu0 %v4051, 6
      %v4064 = vpop.permute.xlu0 %4063
      %4065 = vrot.lane.b32.xlu0 %v4052, 6
      %v4066 = vpop.permute.xlu0 %4065
      %4067 = vrot.lane.b32.xlu0 %v4053, 6
      %v4068 = vpop.permute.xlu0 %4067
      %4069 = vrot.lane.b32.xlu0 %v4054, 6
      %v4070 = vpop.permute.xlu0 %4069
      %4071 = vrot.lane.b32.xlu0 %v4055, 6
      %v4072 = vpop.permute.xlu0 %4071
      %4073 = vrot.lane.b32.xlu0 %v4056, 6
      %v4074 = vpop.permute.xlu0 %4073
      %4075 = vrot.lane.b32.xlu0 %v4057, 6
      %v4076 = vpop.permute.xlu0 %4075
      %4077 = vrot.lane.b32.xlu0 %v4058, 6
      %v4078 = vpop.permute.xlu0 %4077
      %4079 = vrot.lane.b32.xlu0 %v4059, 6
      %v4080 = vpop.permute.xlu0 %4079
      %4081 = vrot.lane.b32.xlu0 %v4060, 6
      %v4082 = vpop.permute.xlu0 %4081
      %4083 = vrot.lane.b32.xlu0 %v4061, 6
      %v4084 = vpop.permute.xlu0 %4083
      %4085 = vrot.lane.b32.xlu0 %v4062, 6
      %v4086 = vpop.permute.xlu0 %4085
      %vm4087 = vcmask 48128
      %v4088 = vsel %vm4087, %v4064, %v4066
      %v4089 = vsel %vm4087, %v4066, %v4068
      %v4090 = vsel %vm4087, %v4068, %v4070
      %v4091 = vsel %vm4087, %v4072, %v4074
      %v4092 = vsel %vm4087, %v4074, %v4076
      %v4093 = vsel %vm4087, %v4076, %v4078
      %v4094 = vsel %vm4087, %v4080, %v4082
      %v4095 = vsel %vm4087, %v4082, %v4084
      %v4096 = vsel %vm4087, %v4084, %v4086
      %v4104 = vsel %vm438, %v4090, 0
      %v4107 = vsel %vm438, %v4093, 0
      %v4110 = vsel %vm438, %v4096, 0
      %4112 = vmatprep.subr.bf16.mxu0 %v3968
      %4113 = vmatpush1.bf16.msra.mxu0 %v3967
      %4114 = vmatprep.subr.bf16.mxu0 %v3971
      %4115 = vmatpush1.bf16.msra.mxu0 %v3970
      %4116 = vmatprep.subr.bf16.mxu0 %v3974
      %4117 = vmatpush1.bf16.msra.mxu0 %v3973
      %4118 = vmatprep.subr.bf16.mxu0 %v3977
      %4119 = vmatpush1.bf16.msra.mxu0 %v3976
      %4120 = vmatprep.subr.bf16.mxu0 %v3980
      %4121 = vmatpush1.bf16.msra.mxu0 %v3979
      %4122 = vmatprep.subr.bf16.mxu0 %v3983
      %4123 = vmatpush1.bf16.msra.mxu0 %v3982
      %4124 = vmatprep.subr.bf16.mxu0 %v3986
      %4125 = vmatpush1.bf16.msra.mxu0 %v3985
      %4126 = vmatprep.subr.bf16.mxu0 %v3989
      %4127 = vmatpush1.bf16.msra.mxu0 %v3988
      %4128 = vmatprep.subr.bf16.mxu0 %v3992
      %4129 = vmatpush1.bf16.msra.mxu0 %v3991
      %4130 = vmatprep.subr.bf16.mxu0 %v3995
      %4131 = vmatpush1.bf16.msra.mxu0 %v3994
      %4132 = vmatprep.subr.bf16.mxu0 %v3998
      %4133 = vmatpush1.bf16.msra.mxu0 %v3997
      %4134 = vmatprep.subr.bf16.mxu0 %v4001
      %4135 = vmatpush1.bf16.msra.mxu0 %v4000
      %4136 = vmatprep.subr.bf16.mxu0 %v4004
      %4137 = vmatpush1.bf16.msra.mxu0 %v4003
      %4138 = vmatprep.subr.bf16.mxu0 %v4007
      %4139 = vmatpush1.bf16.msra.mxu0 %v4006
      %4140 = vmatprep.subr.bf16.mxu0 %v4010
      %4141 = vmatpush1.bf16.msra.mxu0 %v4009
      %4142 = vmatprep.subr.bf16.mxu0 %v4013
      %4143 = vmatpush1.bf16.msra.mxu0 %v4012
      %4144 = vmatprep.mubr.bf16.mxu0 %v4089
      %4145 = vmatmul.mubr.bf16.gmra.mrb[0].mxu0 %v4088
      %v4146 = vpop.f32.mrb[0].mxu0
      %v4147 = vadd.f32 0.0, %v4146
      %v4148 = vpop.f32.mrb[0].mxu0
      %v4149 = vadd.f32 0.0, %v4148
      %v4150 = vpop.f32.mrb[0].mxu0
      %v4151 = vadd.f32 0.0, %v4150
      %v4152 = vpop.f32.mrb[0].mxu0
      %v4153 = vadd.f32 0.0, %v4152
      %4154 = vmatprep.mubr.bf16.mxu0 %v4092
      %4155 = vmatmul.mubr.bf16.gmra.mrb[0].mxu0 %v4091
      %v4156 = vpop.f32.mrb[0].mxu0
      %v4157 = vadd.f32 0.0, %v4156
      %v4158 = vpop.f32.mrb[0].mxu0
      %v4159 = vadd.f32 0.0, %v4158
      %v4160 = vpop.f32.mrb[0].mxu0
      %v4161 = vadd.f32 0.0, %v4160
      %v4162 = vpop.f32.mrb[0].mxu0
      %v4163 = vadd.f32 0.0, %v4162
      %4164 = vmatprep.mubr.bf16.mxu0 %v4095
      %4165 = vmatmul.mubr.bf16.gmra.mrb[0].mxu0 %v4094
      %v4166 = vpop.f32.mrb[0].mxu0
      %v4167 = vadd.f32 0.0, %v4166
      %v4168 = vpop.f32.mrb[0].mxu0
      %v4169 = vadd.f32 0.0, %v4168
      %v4170 = vpop.f32.mrb[0].mxu0
      %v4171 = vpop.f32.mrb[0].mxu0
      %4172 = vdwg.mxu0
      %4173 = vmatprep.subr.bf16.mxu0 %v4016
      %4174 = vmatpush1.bf16.msra.mxu0 %v4015
      %4175 = vmatprep.subr.bf16.mxu0 %v4019
      %4176 = vmatpush1.bf16.msra.mxu0 %v4018
      %4177 = vmatprep.subr.bf16.mxu0 0
      %4178 = vmatpush1.bf16.msra.mxu0 0
      %4179 = vmatprep.subr.bf16.mxu0 0
      %4180 = vmatpush1.bf16.msra.mxu0 0
      %4181 = vmatprep.subr.bf16.mxu0 0
      %4182 = vmatpush1.bf16.msra.mxu0 0
      %4183 = vmatprep.subr.bf16.mxu0 0
      %4184 = vmatpush1.bf16.msra.mxu0 0
      %4185 = vmatprep.subr.bf16.mxu0 0
      %4186 = vmatpush1.bf16.msra.mxu0 0
      %4187 = vmatprep.subr.bf16.mxu0 0
      %4188 = vmatpush1.bf16.msra.mxu0 0
      %4189 = vmatprep.subr.bf16.mxu0 0
      %4190 = vmatpush1.bf16.msra.mxu0 0
      %4191 = vmatprep.subr.bf16.mxu0 0
      %4192 = vmatpush1.bf16.msra.mxu0 0
      %4193 = vmatprep.subr.bf16.mxu0 0
      %4194 = vmatpush1.bf16.msra.mxu0 0
      %4195 = vmatprep.subr.bf16.mxu0 0
      %4196 = vmatpush1.bf16.msra.mxu0 0
      %4197 = vmatprep.subr.bf16.mxu0 0
      %4198 = vmatpush1.bf16.msra.mxu0 0
      %4199 = vmatprep.subr.bf16.mxu0 0
      %4200 = vmatpush1.bf16.msra.mxu0 0
      %4201 = vmatprep.subr.bf16.mxu0 0
      %4202 = vmatpush1.bf16.msra.mxu0 0
      %4203 = vmatprep.subr.bf16.mxu0 0
      %4204 = vmatpush1.bf16.msra.mxu0 0
      %4205 = vmatprep.mubr.bf16.mxu0 0
      %4206 = vmatmul.mubr.bf16.gmra.mrb[0].mxu0 %v4104
      %v4207 = vpop.f32.mrb[0].mxu0
      %v4208 = vadd.f32 %v4147, %v4207
      %v4209 = vpop.f32.mrb[0].mxu0
      %v4210 = vadd.f32 %v4149, %v4209
      %v4211 = vpop.f32.mrb[0].mxu0
      %v4212 = vadd.f32 %v4151, %v4211
      %v4213 = vpop.f32.mrb[0].mxu0
      %v4214 = vadd.f32 %v4153, %v4213
      %4215 = vmatprep.mubr.bf16.mxu0 0
      %4216 = vmatmul.mubr.bf16.gmra.mrb[0].mxu0 %v4107
      %v4217 = vpop.f32.mrb[0].mxu0
      %v4218 = vadd.f32 %v4157, %v4217
      %v4219 = vpop.f32.mrb[0].mxu0
      %v4220 = vadd.f32 %v4159, %v4219
      %v4221 = vpop.f32.mrb[0].mxu0
      %v4222 = vadd.f32 %v4161, %v4221
      %v4223 = vpop.f32.mrb[0].mxu0
      %v4224 = vadd.f32 %v4163, %v4223
      %4225 = vmatprep.mubr.bf16.mxu0 0
      %4226 = vmatmul.mubr.bf16.gmra.mrb[0].mxu0 %v4110
      %v4227 = vpop.f32.mrb[0].mxu0
      %v4228 = vadd.f32 %v4167, %v4227
      %v4229 = vpop.f32.mrb[0].mxu0
      %v4230 = vadd.f32 %v4169, %v4229
      %v4231 = vpop.f32.mrb[0].mxu0
      %v4232 = vpop.f32.mrb[0].mxu0
      %4233 = vdwg.mxu0
      %4234 = vmatprep.subr.bf16.mxu0 0
      %4235 = vmatpush1.bf16.msra.mxu0 %v3969
      %4236 = vmatprep.subr.bf16.mxu0 0
      %4237 = vmatpush1.bf16.msra.mxu0 %v3972
      %4238 = vmatprep.subr.bf16.mxu0 0
      %4239 = vmatpush1.bf16.msra.mxu0 %v3975
      %4240 = vmatprep.subr.bf16.mxu0 0
      %4241 = vmatpush1.bf16.msra.mxu0 %v3978
      %4242 = vmatprep.subr.bf16.mxu0 0
      %4243 = vmatpush1.bf16.msra.mxu0 %v3981
      %4244 = vmatprep.subr.bf16.mxu0 0
      %4245 = vmatpush1.bf16.msra.mxu0 %v3984
      %4246 = vmatprep.subr.bf16.mxu0 0
      %4247 = vmatpush1.bf16.msra.mxu0 %v3987
      %4248 = vmatprep.subr.bf16.mxu0 0
      %4249 = vmatpush1.bf16.msra.mxu0 %v3990
      %4250 = vmatprep.subr.bf16.mxu0 0
      %4251 = vmatpush1.bf16.msra.mxu0 %v3993
      %4252 = vmatprep.subr.bf16.mxu0 0
      %4253 = vmatpush1.bf16.msra.mxu0 %v3996
      %4254 = vmatprep.subr.bf16.mxu0 0
      %4255 = vmatpush1.bf16.msra.mxu0 %v3999
      %4256 = vmatprep.subr.bf16.mxu0 0
      %4257 = vmatpush1.bf16.msra.mxu0 %v4002
      %4258 = vmatprep.subr.bf16.mxu0 0
      %4259 = vmatpush1.bf16.msra.mxu0 %v4005
      %4260 = vmatprep.subr.bf16.mxu0 0
      %4261 = vmatpush1.bf16.msra.mxu0 %v4008
      %4262 = vmatprep.subr.bf16.mxu0 0
      %4263 = vmatpush1.bf16.msra.mxu0 %v4011
      %4264 = vmatprep.subr.bf16.mxu0 0
      %4265 = vmatpush1.bf16.msra.mxu0 %v4014
      %4266 = vmatprep.mubr.bf16.mxu0 %v4089
      %4267 = vmatmul.mubr.bf16.gmra.mrb[0].mxu0 %v4088
      %v4268 = vpop.f32.mrb[0].mxu0
      %v4269 = vadd.f32 0.0, %v4268
      %v4270 = vpop.f32.mrb[0].mxu0
      %v4271 = vpop.f32.mrb[0].mxu0
      %v4272 = vadd.f32 0.0, %v4271
      %v4273 = vpop.f32.mrb[0].mxu0
      %4274 = vmatprep.mubr.bf16.mxu0 %v4092
      %4275 = vmatmul.mubr.bf16.gmra.mrb[0].mxu0 %v4091
      %v4276 = vpop.f32.mrb[0].mxu0
      %v4277 = vadd.f32 0.0, %v4276
      %v4278 = vpop.f32.mrb[0].mxu0
      %v4279 = vpop.f32.mrb[0].mxu0
      %v4280 = vadd.f32 0.0, %v4279
      %v4281 = vpop.f32.mrb[0].mxu0
      %4282 = vmatprep.mubr.bf16.mxu0 %v4095
      %4283 = vmatmul.mubr.bf16.gmra.mrb[0].mxu0 %v4094
      %v4284 = vpop.f32.mrb[0].mxu0
      %v4285 = vadd.f32 0.0, %v4284
      %v4286 = vpop.f32.mrb[0].mxu0
      %v4287 = vpop.f32.mrb[0].mxu0
      %v4288 = vpop.f32.mrb[0].mxu0
      %4289 = vdwg.mxu0
      %4290 = vmatprep.subr.bf16.mxu0 0
      %4291 = vmatpush1.bf16.msra.mxu0 %v4017
      %4292 = vmatprep.subr.bf16.mxu0 0
      %4293 = vmatpush1.bf16.msra.mxu0 %v4020
      %4294 = vmatprep.subr.bf16.mxu0 0
      %4295 = vmatpush1.bf16.msra.mxu0 0
      %4296 = vmatprep.subr.bf16.mxu0 0
      %4297 = vmatpush1.bf16.msra.mxu0 0
      %4298 = vmatprep.subr.bf16.mxu0 0
      %4299 = vmatpush1.bf16.msra.mxu0 0
      %4300 = vmatprep.subr.bf16.mxu0 0
      %4301 = vmatpush1.bf16.msra.mxu0 0
      %4302 = vmatprep.subr.bf16.mxu0 0
      %4303 = vmatpush1.bf16.msra.mxu0 0
      %4304 = vmatprep.subr.bf16.mxu0 0
      %4305 = vmatpush1.bf16.msra.mxu0 0
      %4306 = vmatprep.subr.bf16.mxu0 0
      %4307 = vmatpush1.bf16.msra.mxu0 0
      %4308 = vmatprep.subr.bf16.mxu0 0
      %4309 = vmatpush1.bf16.msra.mxu0 0
      %4310 = vmatprep.subr.bf16.mxu0 0
      %4311 = vmatpush1.bf16.msra.mxu0 0
      %4312 = vmatprep.subr.bf16.mxu0 0
      %4313 = vmatpush1.bf16.msra.mxu0 0
      %4314 = vmatprep.subr.bf16.mxu0 0
      %4315 = vmatpush1.bf16.msra.mxu0 0
      %4316 = vmatprep.subr.bf16.mxu0 0
      %4317 = vmatpush1.bf16.msra.mxu0 0
      %4318 = vmatprep.subr.bf16.mxu0 0
      %4319 = vmatpush1.bf16.msra.mxu0 0
      %4320 = vmatprep.subr.bf16.mxu0 0
      %4321 = vmatpush1.bf16.msra.mxu0 0
      %4322 = vmatprep.mubr.bf16.mxu0 0
      %4323 = vmatmul.mubr.bf16.gmra.mrb[0].mxu0 %v4104
      %v4324 = vpop.f32.mrb[0].mxu0
      %v4325 = vadd.f32 %v4269, %v4324
      %v4326 = vpop.f32.mrb[0].mxu0
      %v4327 = vpop.f32.mrb[0].mxu0
      %v4328 = vadd.f32 %v4272, %v4327
      %v4329 = vpop.f32.mrb[0].mxu0
      %4330 = vmatprep.mubr.bf16.mxu0 0
      %4331 = vmatmul.mubr.bf16.gmra.mrb[0].mxu0 %v4107
      %v4332 = vpop.f32.mrb[0].mxu0
      %v4333 = vadd.f32 %v4277, %v4332
      %v4334 = vpop.f32.mrb[0].mxu0
      %v4335 = vpop.f32.mrb[0].mxu0
      %v4336 = vadd.f32 %v4280, %v4335
      %v4337 = vpop.f32.mrb[0].mxu0
      %4338 = vmatprep.mubr.bf16.mxu0 0
      %4339 = vmatmul.mubr.bf16.gmra.mrb[0].mxu0 %v4110
      %v4340 = vpop.f32.mrb[0].mxu0
      %v4341 = vadd.f32 %v4285, %v4340
      %v4342 = vpop.f32.mrb[0].mxu0
      %v4343 = vpop.f32.mrb[0].mxu0
      %v4344 = vpop.f32.mrb[0].mxu0
      %4345 = vdwg.mxu0
      %v4346 = vadd.f32 %v3589, %v4208
      %v4347 = vadd.f32 %v3591, %v4210
      %v4348 = vadd.f32 %v3650, %v4325
      %v4349 = vadd.f32 %v3593, %v4212
      %v4350 = vadd.f32 %v3595, %v4214
      %v4351 = vadd.f32 %v3653, %v4328
      %v4352 = vadd.f32 %v3599, %v4218
      %v4353 = vadd.f32 %v3601, %v4220
      %v4354 = vadd.f32 %v3658, %v4333
      %v4355 = vadd.f32 %v3603, %v4222
      %v4356 = vadd.f32 %v3605, %v4224
      %v4357 = vadd.f32 %v3661, %v4336
      %v4358 = vadd.f32 %v3609, %v4228
      %v4359 = vadd.f32 %v3611, %v4230
      %v4360 = vadd.f32 %v3666, %v4341
      %v4361 = vld [vmem:[%s9] sm:$0xff]
      %v4362 = vld [vmem:[%s9 + $0x8] sm:$0xff]
      %v4363 = vld [vmem:[%s9 + $0x10] sm:$0xff]
      %v4364 = vld [vmem:[%s9 + $0x18] sm:$0xff]
      %v4365 = vld [vmem:[%s9 + $0x20] sm:$0xff]
      %4367 = vset.pattern.permute.xlu0 0
      %4368 = vperm.xlu0 %4367, %v4361
      %v4369 = vpop.permute.xlu0 %4368
      %4372 = vset.pattern.permute.xlu0 0
      %4373 = vperm.xlu0 %4372, %v4362
      %v4374 = vpop.permute.xlu0 %4373
      %4377 = vset.pattern.permute.xlu0 0
      %4378 = vperm.xlu0 %4377, %v4363
      %v4379 = vpop.permute.xlu0 %4378
      %4382 = vset.pattern.permute.xlu0 0
      %4383 = vperm.xlu0 %4382, %v4364
      %v4384 = vpop.permute.xlu0 %4383
      %4387 = vset.pattern.permute.xlu0 0
      %4388 = vperm.xlu0 %4387, %v4365
      %v4389 = vpop.permute.xlu0 %4388
      %v4391 = vadd.f32 %v4346, %v4369
      %v4392 = vadd.f32 %v4347, %v4369
      %v4393 = vadd.f32 %v4348, %v4369
      %v4394 = vadd.f32 %v4349, %v4374
      %v4395 = vadd.f32 %v4350, %v4374
      %v4396 = vadd.f32 %v4351, %v4374
      %v4397 = vadd.f32 %v4352, %v4379
      %v4398 = vadd.f32 %v4353, %v4379
      %v4399 = vadd.f32 %v4354, %v4379
      %v4400 = vadd.f32 %v4355, %v4384
      %v4401 = vadd.f32 %v4356, %v4384
      %v4402 = vadd.f32 %v4357, %v4384
      %v4403 = vadd.f32 %v4358, %v4389
      %v4404 = vadd.f32 %v4359, %v4389
      %v4405 = vadd.f32 %v4360, %v4389
      %vm4406 = vcmp.ge.f32.partialorder %v4391, 0.0
      %vm4407 = vcmp.ge.f32.partialorder %v4392, 0.0
      %vm4408 = vcmp.ge.f32.partialorder %v4393, 0.0
      %vm4409 = vcmp.ge.f32.partialorder %v4394, 0.0
      %vm4410 = vcmp.ge.f32.partialorder %v4395, 0.0
      %vm4411 = vcmp.ge.f32.partialorder %v4396, 0.0
      %vm4412 = vcmp.ge.f32.partialorder %v4397, 0.0
      %vm4413 = vcmp.ge.f32.partialorder %v4398, 0.0
      %vm4414 = vcmp.ge.f32.partialorder %v4399, 0.0
      %vm4415 = vcmp.ge.f32.partialorder %v4400, 0.0
      %vm4416 = vcmp.ge.f32.partialorder %v4401, 0.0
      %vm4417 = vcmp.ge.f32.partialorder %v4402, 0.0
      %vm4418 = vcmp.ge.f32.partialorder %v4403, 0.0
      %vm4419 = vcmp.ge.f32.partialorder %v4404, 0.0
      %vm4420 = vcmp.ge.f32.partialorder %v4405, 0.0
      %v4421 = vmul.f32 %v4391, 0.01
      %v4422 = vmul.f32 %v4392, 0.01
      %v4423 = vmul.f32 %v4393, 0.01
      %v4424 = vmul.f32 %v4394, 0.01
      %v4425 = vmul.f32 %v4395, 0.01
      %v4426 = vmul.f32 %v4396, 0.01
      %v4427 = vmul.f32 %v4397, 0.01
      %v4428 = vmul.f32 %v4398, 0.01
      %v4429 = vmul.f32 %v4399, 0.01
      %v4430 = vmul.f32 %v4400, 0.01
      %v4431 = vmul.f32 %v4401, 0.01
      %v4432 = vmul.f32 %v4402, 0.01
      %v4433 = vmul.f32 %v4403, 0.01
      %v4434 = vmul.f32 %v4404, 0.01
      %v4435 = vmul.f32 %v4405, 0.01
      %v4436 = vsel %vm4406, %v4391, %v4421
      %v4437 = vsel %vm4407, %v4392, %v4422
      %v4438 = vsel %vm4408, %v4393, %v4423
      %v4439 = vsel %vm4409, %v4394, %v4424
      %v4440 = vsel %vm4410, %v4395, %v4425
      %v4441 = vsel %vm4411, %v4396, %v4426
      %v4442 = vsel %vm4412, %v4397, %v4427
      %v4443 = vsel %vm4413, %v4398, %v4428
      %v4444 = vsel %vm4414, %v4399, %v4429
      %v4445 = vsel %vm4415, %v4400, %v4430
      %v4446 = vsel %vm4416, %v4401, %v4431
      %v4447 = vsel %vm4417, %v4402, %v4432
      %v4448 = vsel %vm4418, %v4403, %v4433
      %v4449 = vsel %vm4419, %v4404, %v4434
      %v4450 = vsel %vm4420, %v4405, %v4435
      %v4451 = vmul.f32 %v4436, %v953
      %v4452 = vmul.f32 %v4437, %v957
      %v4453 = vmul.f32 %v4438, %v961
      %v4454 = vmul.f32 %v4439, %v953
      %v4455 = vmul.f32 %v4440, %v957
      %v4456 = vmul.f32 %v4441, %v961
      %v4457 = vmul.f32 %v4442, %v953
      %v4458 = vmul.f32 %v4443, %v957
      %v4459 = vmul.f32 %v4444, %v961
      %v4460 = vmul.f32 %v4445, %v953
      %v4461 = vmul.f32 %v4446, %v957
      %v4462 = vmul.f32 %v4447, %v961
      %v4463 = vmul.f32 %v4448, %v953
      %v4464 = vmul.f32 %v4449, %v957
      %v4465 = vmul.f32 %v4450, %v961
      %v4466 = vpack.c.bf16 %v4454, %v4451
      %v4467 = vpack.c.bf16 %v4455, %v4452
      %v4468 = vpack.c.bf16 %v4456, %v4453
      %v4469 = vpack.c.bf16 %v4460, %v4457
      %v4470 = vpack.c.bf16 %v4461, %v4458
      %v4471 = vpack.c.bf16 %v4462, %v4459
      %v4472 = vpack.c.bf16 %v4463, %v4463
      %v4473 = vpack.c.bf16 %v4464, %v4464
      %v4474 = vpack.c.bf16 %v4465, %v4465
      %v4484 = vunpack.c.l.b16 %v4466
      %v4485 = vunpack.c.l.b16 %v4467
      %v4486 = vunpack.c.l.b16 %v4468
      %v4487 = vunpack.c.h.b16 %v4466
      %v4488 = vunpack.c.h.b16 %v4467
      %v4489 = vunpack.c.h.b16 %v4468
      %v4490 = vunpack.c.l.b16 %v4469
      %v4491 = vunpack.c.l.b16 %v4470
      %v4492 = vunpack.c.l.b16 %v4471
      %v4493 = vunpack.c.h.b16 %v4469
      %v4494 = vunpack.c.h.b16 %v4470
      %v4495 = vunpack.c.h.b16 %v4471
      %v4496 = vunpack.c.l.b16 %v4472
      %v4497 = vunpack.c.l.b16 %v4473
      %v4498 = vunpack.c.l.b16 %v4474
      %v4499 = vpack.c.b16 %v4485, %v4484
      %v4500 = vpack.c.b16 %v4486, %v4486
      %v4501 = vpack.c.b16 %v4488, %v4487
      %v4502 = vpack.c.b16 %v4489, %v4489
      %v4503 = vpack.c.b16 %v4491, %v4490
      %v4504 = vpack.c.b16 %v4492, %v4492
      %v4505 = vpack.c.b16 %v4494, %v4493
      %v4506 = vpack.c.b16 %v4495, %v4495
      %v4507 = vpack.c.b16 %v4497, %v4496
      %v4508 = vpack.c.b16 %v4498, %v4498
      %4519 = vst [vmem:[%s359 + $0x30] sm:$0xff] %v4499
      %4520 = vst.msk [vmem:[%s359 + $0x38] sm:$0xf] %vm1009, %v4500
      %4521 = vst [vmem:[%s359 + $0x3c] sm:$0xff] %v4501
      %4522 = vst.msk [vmem:[%s359 + $0x44] sm:$0xf] %vm1009, %v4502
      %4523 = vst [vmem:[%s359 + $0x48] sm:$0xff] %v4503
      %4524 = vst.msk [vmem:[%s359 + $0x50] sm:$0xf] %vm1009, %v4504
      %4525 = vst [vmem:[%s359 + $0x54] sm:$0xff] %v4505
      %4526 = vst.msk [vmem:[%s359 + $0x5c] sm:$0xf] %vm1009, %v4506
      %4527 = vst [vmem:[%s359 + $0x60] sm:$0xff] %v4507
      %4528 = vst.msk [vmem:[%s359 + $0x68] sm:$0xf] %vm1009, %v4508
      %p4529 = scmp.lt.s32.totalorder %s21, 1
      %s4530 = scalar_select %p4529, %s21, 1
      %s4531 = smul.addr %s4530, 27
      %s4532 = smul.addr %s4531, 4
      %s4533 = scalar_lea.vmem %s10, %s4532
      // Predicated region
      $region61: #{_lambda_.1} parent=59 // pred_check
        %p4534 = pneg %p254
      $region62: #{_lambda_.1} parent=59 // pred_check_branch
        %4536 = sbr.rel (%p4534) target = $region64
      $region63: #{_lambda_.1} parent=59 // pred_region
        _
      $region64: #{_lambda_.1} parent=59 // pred_fallthru
        _
    $region60: #{_lambda_.1} parent=5 // pred_fallthru
      _
    %p4537 = scmp.le.s32.totalorder 2, %s16
    // Predicated region
    $region65: #{_lambda_.1} parent=5 // pred_check
      %p4538 = pneg %p4537
    $region66: #{_lambda_.1} parent=5 // pred_check_branch
      %4540 = sbr.rel (%p4538) target = $region68
    $region67: #{_lambda_.1} parent=5 // pred_region
      %s4541 = ssub.s32 %s16, 2
      // Predicated region
      $region69: #{_lambda_.1} parent=67 // pred_check
        %p4542 = pneg %p260
      $region70: #{_lambda_.1} parent=67 // pred_check_branch
        %4544 = sbr.rel (%p4542) target = $region72
      $region71: #{_lambda_.1} parent=67 // pred_region
        %p4545 = scmp.lt.s32.totalorder %s22, 1
        %s4546 = scalar_select %p4545, %s22, 1
        %s4547 = smul.addr %s4546, 27
        %s4548 = smul.addr %s4547, 4
        %s4549 = scalar_lea.vmem %s10, %s4548
      $region72: #{_lambda_.1} parent=67 // pred_fallthru
        _
    $region68: #{_lambda_.1} parent=5 // pred_fallthru
      _
  $region6: #{_lambda_.1} parent=0 // loop_footer
    %s20 = sadd.s32 1, %s16
  $region7: #{_lambda_.1} parent=0 // loop_footer_branch
    %15 = sbr.rel target = $region3
  $region8: #{_lambda_.1} parent=0 // loop_exit
    _

</llo_original>
